<compile_context>
chip_gen: v7x
topology: tpu7x:2x2x1
jax: 0.10.0
libtpu: 0.0.40
codegen_flags: <defaults>
</compile_context>

<pallas_src>
import jax
import jax.numpy as jnp
from jax.experimental import pallas as pl
from jax.experimental.pallas import tpu as pltpu

EPS = 1e-6
COMPUTE_DTYPE = jnp.float32    # LN / ReLU / max / bias / accumulation dtype
OPERAND_DTYPE = jnp.bfloat16   # MXU operand + intermediate activation dtype
OUTPUT_DTYPE = jnp.float32     # returned fc maps (matches PyTorch f32 outputs)


# ------------------------------- tiling config --------------------------------

def _tiling_defaults():
    """Generation-aware (row_tile, vmem_limit): bigger tiles on v5e/v6e (128 MiB
    VMEM), conservative on v7x (64 MiB/TC) and unknown chips."""
    try:
        kind = jax.devices()[0].device_kind.lower()
    except Exception:  # pragma: no cover - defensive
        kind = ""
    if ("v5" in kind) or ("v6" in kind):
        return 1024, 96 * 1024 * 1024
    return 512, 48 * 1024 * 1024


MAX_ROW_TILE, VMEM_LIMIT_BYTES = _tiling_defaults()


def _round_up(x, m):
    return (x + m - 1) // m * m


def _row_tiling(rows, max_tile=None):
    """Pick a row tile (multiple of 8, <= max_tile) and padded row count.

    Guarantees >= 2 grid steps whenever `rows` permits so the "parallel" axis
    can shard across v7x's two TensorCores and DMA/compute overlap exists."""
    if max_tile is None:
        max_tile = MAX_ROW_TILE
    half = _round_up(max((rows + 1) // 2, 1), 8)
    tm = max(8, min(max_tile, half))
    padded = _round_up(max(rows, 1), tm)
    return tm, padded


def _compiler_params():
    return pltpu.CompilerParams(
        dimension_semantics=("parallel",),
        vmem_limit_bytes=VMEM_LIMIT_BYTES,
    )


# ----------------------------- in-kernel helpers -------------------------------

def _layer_norm_relu(y, gamma, beta):
    """Per-pixel LayerNorm over channels (single reduction pass) + affine + ReLU.

    y is f32 (MXU accumulation); gamma/beta are f32."""
    n = y.shape[-1]
    s1 = jnp.sum(y, axis=-1, keepdims=True)
    s2 = jnp.sum(y * y, axis=-1, keepdims=True)
    inv_n = 1.0 / n
    mean = s1 * inv_n
    var = jnp.maximum(s2 * inv_n - mean * mean, 0.0)
    yn = (y - mean) * jax.lax.rsqrt(var + EPS)
    return jnp.maximum(yn * gamma + beta, 0.0)


# ------------------------------- Pallas kernels --------------------------------

def conv_ln_relu_kernel(p_ref, w_ref, g_ref, b_ref, o_ref):
    # bf16 operands straight off the DMA; f32 accumulation + LN + ReLU.
    y = jnp.dot(p_ref[...], w_ref[...], preferred_element_type=jnp.float32)
    act = _layer_norm_relu(y, g_ref[...], b_ref[...])
    o_ref[...] = act.astype(o_ref.dtype)


def conv_ln_relu_fc_kernel(p_ref, w_ref, g_ref, b_ref, fw_ref, fb_ref,
                           o_ref, f_ref):
    # conv3x3 (im2col matmul) + LN + ReLU, then the fused 1x1 fc (+bias) on the
    # same VMEM-resident activation tile; writes both the conv map and fc map.
    y = jnp.dot(p_ref[...], w_ref[...], preferred_element_type=jnp.float32)
    act = _layer_norm_relu(y, g_ref[...], b_ref[...])
    o_ref[...] = act.astype(o_ref.dtype)
    fc = jnp.dot(act.astype(fw_ref.dtype), fw_ref[...],
                 preferred_element_type=jnp.float32) + fb_ref[...]
    f_ref[...] = fc.astype(f_ref.dtype)


def conv_ln_relu_fc_nostore_kernel(p_ref, w_ref, g_ref, b_ref, fw_ref, fb_ref,
                                   f_ref):
    # conv4 variant: the conv map is discarded by the module, so its HBM store
    # (and output double buffer) is skipped entirely.
    y = jnp.dot(p_ref[...], w_ref[...], preferred_element_type=jnp.float32)
    act = _layer_norm_relu(y, g_ref[...], b_ref[...])
    fc = jnp.dot(act.astype(fw_ref.dtype), fw_ref[...],
                 preferred_element_type=jnp.float32) + fb_ref[...]
    f_ref[...] = fc.astype(f_ref.dtype)


def maxpool_fc_kernel(x_ref, fw_ref, fb_ref, o_ref, f_ref):
    # x: (TM, 9*C) lane-dense tap slab -> elementwise max over 9 C-wide chunks
    # (static lane slices, VPU max), fused with the 1x1 fc (+bias).
    x = x_ref[...]
    c = o_ref.shape[-1]
    m = x[:, 0:c]
    for t in range(1, 9):
        m = jnp.maximum(m, x[:, t * c:(t + 1) * c])
    o_ref[...] = m.astype(o_ref.dtype)
    fc = jnp.dot(m.astype(fw_ref.dtype), fw_ref[...],
                 preferred_element_type=jnp.float32) + fb_ref[...]
    f_ref[...] = fc.astype(f_ref.dtype)


# ------------------------------ JAX glue / wrappers -----------------------------

def _im2col(x, stride):
    # x: (N, H, W, C) -> patches (N*Ho*Wo, 9*C), taps ordered (ky, kx, c).
    N, H, W, C = x.shape
    Ho = (H + 2 - 3) // stride + 1
    Wo = (W + 2 - 3) // stride + 1
    xp = jnp.pad(x, ((0, 0), (1, 1), (1, 1), (0, 0)))
    cols = []
    for ky in range(3):
        for kx in range(3):
            cols.append(
                xp[:, ky:ky + stride * (Ho - 1) + 1:stride,
                   kx:kx + stride * (Wo - 1) + 1:stride, :])
    patches = jnp.concatenate(cols, axis=-1)  # (N, Ho, Wo, 9*C)
    return patches.reshape(N * Ho * Wo, 9 * C), (N, Ho, Wo)


def conv3x3_ln_relu(x, w_hwio, gamma, beta, stride, fc_w=None, fc_b=None,
                    store_conv=True):
    """conv3x3(pad=1, no bias) + LayerNorm2d + ReLU, optionally fused with the
    following 1x1 fc (+bias).  Returns (conv NHWC or None, fc NHWC or None)."""
    patches, (N, Ho, Wo) = _im2col(x.astype(OPERAND_DTYPE), stride)
    rows, K = patches.shape
    Cout = w_hwio.shape[-1]
    # Wrapper-side (XLA) bf16 casts: the kernel DMAs bf16, no in-kernel cast.
    w2 = w_hwio.reshape(K, Cout).astype(OPERAND_DTYPE)
    g2 = gamma.reshape(1, Cout).astype(COMPUTE_DTYPE)
    b2 = beta.reshape(1, Cout).astype(COMPUTE_DTYPE)

    tm, padded = _row_tiling(rows)
    if padded != rows:
        patches = jnp.pad(patches, ((0, padded - rows), (0, 0)))
    grid = (padded // tm,)

    op = jnp.dtype(OPERAND_DTYPE).itemsize

    def row_spec(cols):
        return pl.BlockSpec((tm, cols), lambda i: (i, 0))

    def full_spec(r, c):
        # Grid-invariant operand: constant index_map => Pallas skips re-DMA.
        return pl.BlockSpec((r, c), lambda i: (0, 0))

    if fc_w is None:
        cost = pl.CostEstimate(
            flops=2 * padded * K * Cout,
            transcendentals=padded,
            bytes_accessed=(padded * K * op + K * Cout * op + 2 * Cout * 4
                            + padded * Cout * op))
        out = pl.pallas_call(
            conv_ln_relu_kernel,
            out_shape=jax.ShapeDtypeStruct((padded, Cout), OPERAND_DTYPE),
            grid=grid,
            in_specs=[row_spec(K), full_spec(K, Cout),
                      full_spec(1, Cout), full_spec(1, Cout)],
            out_specs=row_spec(Cout),
            compiler_params=_compiler_params(),
            cost_estimate=cost,
        )(patches, w2, g2, b2)
        return out[:rows].reshape(N, Ho, Wo, Cout), None

    E = fc_w.shape[-1]
    fw = fc_w.astype(OPERAND_DTYPE)
    fb = fc_b.reshape(1, E).astype(COMPUTE_DTYPE)
    flops = 2 * padded * K * Cout + 2 * padded * Cout * E
    in_bytes = (padded * K * op + K * Cout * op + 2 * Cout * 4
                + Cout * E * op + E * 4)

    if store_conv:
        cost = pl.CostEstimate(
            flops=flops, transcendentals=padded,
            bytes_accessed=in_bytes + padded * Cout * op + padded * E * 4)
        conv_o, fc_o = pl.pallas_call(
            conv_ln_relu_fc_kernel,
            out_shape=(jax.ShapeDtypeStruct((padded, Cout), OPERAND_DTYPE),
                       jax.ShapeDtypeStruct((padded, E), OUTPUT_DTYPE)),
            grid=grid,
            in_specs=[row_spec(K), full_spec(K, Cout),
                      full_spec(1, Cout), full_spec(1, Cout),
                      full_spec(Cout, E), full_spec(1, E)],
            out_specs=[row_spec(Cout), row_spec(E)],
            compiler_params=_compiler_params(),
            cost_estimate=cost,
        )(patches, w2, g2, b2, fw, fb)
        conv = conv_o[:rows].reshape(N, Ho, Wo, Cout)
        fc = fc_o[:rows].reshape(N, Ho, Wo, E)
        return conv, fc

    cost = pl.CostEstimate(flops=flops, transcendentals=padded,
                           bytes_accessed=in_bytes + padded * E * 4)
    fc_o = pl.pallas_call(
        conv_ln_relu_fc_nostore_kernel,
        out_shape=jax.ShapeDtypeStruct((padded, E), OUTPUT_DTYPE),
        grid=grid,
        in_specs=[row_spec(K), full_spec(K, Cout),
                  full_spec(1, Cout), full_spec(1, Cout),
                  full_spec(Cout, E), full_spec(1, E)],
        out_specs=row_spec(E),
        compiler_params=_compiler_params(),
        cost_estimate=cost,
    )(patches, w2, g2, b2, fw, fb)
    return None, fc_o[:rows].reshape(N, Ho, Wo, E)


def maxpool3x3_s2_fc(x, fc_w, fc_b):
    """maxpool kernel=3 stride=2 pad=1 fused with the following 1x1 fc (+bias).

    Returns (pooled NHWC in OPERAND_DTYPE, fc NHWC in OUTPUT_DTYPE)."""
    x = x.astype(OPERAND_DTYPE)
    N, H, W, C = x.shape
    Ho = (H + 2 - 3) // 2 + 1
    Wo = (W + 2 - 3) // 2 + 1
    neg = jnp.finfo(x.dtype).min
    xp = jnp.pad(x, ((0, 0), (1, 1), (1, 1), (0, 0)), constant_values=neg)
    slabs = []
    for ky in range(3):
        for kx in range(3):
            slabs.append(
                xp[:, ky:ky + 2 * (Ho - 1) + 1:2, kx:kx + 2 * (Wo - 1) + 1:2, :])
    # Lane-dense (rows, 9*C) slab: last dim >= 128 lanes for real channel counts,
    # so loads are unmasked (vs the old (9, rows, C) layout with 64-lane loads).
    taps = jnp.concatenate(slabs, axis=-1).reshape(N * Ho * Wo, 9 * C)

    rows = N * Ho * Wo
    E = fc_w.shape[-1]
    tm, padded = _row_tiling(rows)
    if padded != rows:
        taps = jnp.pad(taps, ((0, padded - rows), (0, 0)))  # zero rows; discarded
    grid = (padded // tm,)

    fw = fc_w.astype(OPERAND_DTYPE)
    fb = fc_b.reshape(1, E).astype(COMPUTE_DTYPE)

    op = jnp.dtype(OPERAND_DTYPE).itemsize
    cost = pl.CostEstimate(
        flops=2 * padded * C * E + 8 * padded * C,
        transcendentals=0,
        bytes_accessed=(padded * 9 * C * op + C * E * op + E * 4
                        + padded * C * op + padded * E * 4))

    pool_o, fc_o = pl.pallas_call(
        maxpool_fc_kernel,
        out_shape=(jax.ShapeDtypeStruct((padded, C), OPERAND_DTYPE),
                   jax.ShapeDtypeStruct((padded, E), OUTPUT_DTYPE)),
        grid=grid,
        in_specs=[pl.BlockSpec((tm, 9 * C), lambda i: (i, 0)),
                  pl.BlockSpec((C, E), lambda i: (0, 0)),
                  pl.BlockSpec((1, E), lambda i: (0, 0))],
        out_specs=[pl.BlockSpec((tm, C), lambda i: (i, 0)),
                   pl.BlockSpec((tm, E), lambda i: (i, 0))],
        compiler_params=_compiler_params(),
        cost_estimate=cost,
    )(taps, fw, fb)
    pool = pool_o[:rows].reshape(N, Ho, Wo, C)
    fc = fc_o[:rows].reshape(N, Ho, Wo, E)
    return pool, fc


# ----------------------------- Parameter setup ----------------------------------

def init_params(key, inplanes=64, embed_dim=384, dtype=jnp.float32):
    keys = jax.random.split(key, 16)
    ki = iter(range(16))

    def conv_w(k, cin, cout):
        fan_in = 9 * cin
        std = (2.0 / fan_in) ** 0.5
        return (std * jax.random.normal(k, (3, 3, cin, cout))).astype(dtype)

    def fc_w(k, cin, cout):
        std = (2.0 / cin) ** 0.5
        return (std * jax.random.normal(k, (cin, cout))).astype(dtype)

    p = {}
    chans = [(3, inplanes), (inplanes, inplanes), (inplanes, inplanes)]
    for n, (cin, cout) in enumerate(chans):
        p[f"stem{n}_w"] = conv_w(keys[next(ki)], cin, cout)
        p[f"stem{n}_g"] = jnp.ones((cout,), dtype)
        p[f"stem{n}_b"] = jnp.zeros((cout,), dtype)
    for name, cin, cout in [("conv2", inplanes, 2 * inplanes),
                            ("conv3", 2 * inplanes, 4 * inplanes),
                            ("conv4", 4 * inplanes, 4 * inplanes)]:
        p[f"{name}_w"] = conv_w(keys[next(ki)], cin, cout)
        p[f"{name}_g"] = jnp.ones((cout,), dtype)
        p[f"{name}_b"] = jnp.zeros((cout,), dtype)
    for name, cin in [("fc1", inplanes), ("fc2", 2 * inplanes),
                      ("fc3", 4 * inplanes), ("fc4", 4 * inplanes)]:
        p[f"{name}_w"] = fc_w(keys[next(ki)], cin, embed_dim)
        p[f"{name}_b"] = jnp.zeros((embed_dim,), dtype)
    return p


# ------------------------------- Forward pass ------------------------------------

def spatial_prior_module_forward(x_nchw, params):
    # x_nchw: (N, 3, H, W) — PyTorch layout; internally NHWC / bf16 operands.
    x = jnp.transpose(x_nchw, (0, 2, 3, 1)).astype(OPERAND_DTYPE)

    # stem: three conv3x3 + LN + ReLU, then maxpool (fused with fc1).
    h, _ = conv3x3_ln_relu(x, params["stem0_w"], params["stem0_g"],
                           params["stem0_b"], stride=2)
    h, _ = conv3x3_ln_relu(h, params["stem1_w"], params["stem1_g"],
                           params["stem1_b"], stride=1)
    h, _ = conv3x3_ln_relu(h, params["stem2_w"], params["stem2_g"],
                           params["stem2_b"], stride=1)
    c1, c1f = maxpool3x3_s2_fc(h, params["fc1_w"], params["fc1_b"])

    # conv2/3/4 each fused with their 1x1 fc (+bias); conv4's map is not stored.
    c2, c2f = conv3x3_ln_relu(c1, params["conv2_w"], params["conv2_g"],
                              params["conv2_b"], stride=2,
                              fc_w=params["fc2_w"], fc_b=params["fc2_b"])
    c3, c3f = conv3x3_ln_relu(c2, params["conv3_w"], params["conv3_g"],
                              params["conv3_b"], stride=2,
                              fc_w=params["fc3_w"], fc_b=params["fc3_b"])
    _, c4f = conv3x3_ln_relu(c3, params["conv4_w"], params["conv4_g"],
                             params["conv4_b"], stride=2,
                             fc_w=params["fc4_w"], fc_b=params["fc4_b"],
                             store_conv=False)

    N = x_nchw.shape[0]
    E = c1f.shape[-1]
    # c1 returned as a 4D NCHW map (like the PyTorch module).
    c1_out = jnp.transpose(c1f, (0, 3, 1, 2))
    # c2/c3/c4: (bs, dim, H*W).transpose(1,2) == NHWC flatten to (bs, HW, dim).
    c2_out = c2f.reshape(N, -1, E)
    c3_out = c3f.reshape(N, -1, E)
    c4_out = c4f.reshape(N, -1, E)
    return c1_out, c2_out, c3_out, c4_out


# ---------------------------------- Main -------------------------------------------

if __name__ == "__main__":
    key = jax.random.PRNGKey(0)
    kx, kp = jax.random.split(key)

    inplanes = 8
    embed_dim = 32
    x = jax.random.normal(kx, (2, 3, 16, 16), dtype=jnp.float32)  # NCHW like PyTorch

    params = init_params(kp, inplanes=inplanes, embed_dim=embed_dim)

    fwd = jax.jit(spatial_prior_module_forward)
    c1, c2, c3, c4 = fwd(x, params)
    jax.block_until_ready((c1, c2, c3, c4))

    # Sanity-check shapes implied by the PyTorch forward.
    assert c1.shape == (2, embed_dim, 4, 4), c1.shape
    assert c2.shape == (2, 4, embed_dim), c2.shape
    assert c3.shape == (2, 1, embed_dim), c3.shape
    assert c4.shape == (2, 1, embed_dim), c4.shape
    assert all(jnp.isfinite(t).all() for t in (c1, c2, c3, c4))

    print("KERNEL_OK")
</pallas_src>

<mosaic_0001>
module attributes {stable_mosaic.version = 11 : i64} {
  func.func @conv_ln_relu_kernel(%arg0: i32, %arg1: memref<64x27xbf16, #tpu.memory_space<vmem>>, %arg2: memref<27x8xbf16, #tpu.memory_space<vmem>>, %arg3: memref<1x8xf32, #tpu.memory_space<vmem>>, %arg4: memref<1x8xf32, #tpu.memory_space<vmem>>, %arg5: memref<64x8xbf16, #tpu.memory_space<vmem>>) attributes {dimension_semantics = [#tpu.dimension_semantics<parallel>], iteration_bounds = array<i64: 2>, scalar_prefetch = 0 : i64, scratch_operands = 0 : i64, tpu.core_type = #tpu.core_type<tc>, window_params = [{transform_indices = @transform_0, window_bounds = array<i64: 64, 27>}, {pipeline_mode = #tpu.pipeline_mode<synchronous>, transform_indices = @transform_1, window_bounds = array<i64: 27, 8>}, {pipeline_mode = #tpu.pipeline_mode<synchronous>, transform_indices = @transform_2, window_bounds = array<i64: 1, 8>}, {pipeline_mode = #tpu.pipeline_mode<synchronous>, transform_indices = @transform_3, window_bounds = array<i64: 1, 8>}, {transform_indices = @transform_4, window_bounds = array<i64: 64, 8>}]} {
    %c0 = arith.constant 0 : index
    %c0_0 = arith.constant 0 : index
    %0 = vector.load %arg1[%c0, %c0_0] : memref<64x27xbf16, #tpu.memory_space<vmem>>, vector<64x27xbf16>
    %c0_1 = arith.constant 0 : index
    %c0_2 = arith.constant 0 : index
    %1 = vector.load %arg2[%c0_1, %c0_2] : memref<27x8xbf16, #tpu.memory_space<vmem>>, vector<27x8xbf16>
    %cst = arith.constant dense<0.000000e+00> : vector<64x8xf32>
    %2 = tpu.matmul %0, %1, %cst {dimension_numbers = #tpu.dot_dimension_numbers<[1], [0], [0], [1], [0, 0, 1, 1], [], []>} : vector<64x27xbf16>, vector<27x8xbf16>, vector<64x8xf32> -> vector<64x8xf32>
    %c0_3 = arith.constant 0 : index
    %c0_4 = arith.constant 0 : index
    %3 = vector.load %arg3[%c0_3, %c0_4] : memref<1x8xf32, #tpu.memory_space<vmem>>, vector<1x8xf32>
    %c0_5 = arith.constant 0 : index
    %c0_6 = arith.constant 0 : index
    %4 = vector.load %arg4[%c0_5, %c0_6] : memref<1x8xf32, #tpu.memory_space<vmem>>, vector<1x8xf32>
    %cst_7 = arith.constant dense<0.000000e+00> : vector<64xf32>
    %5 = vector.multi_reduction <add>, %2, %cst_7 [1] : vector<64x8xf32> to vector<64xf32>
    %6 = vector.shape_cast %5 : vector<64xf32> to vector<64x1xf32>
    %7 = arith.mulf %2, %2 : vector<64x8xf32>
    %cst_8 = arith.constant dense<0.000000e+00> : vector<64xf32>
    %8 = vector.multi_reduction <add>, %7, %cst_8 [1] : vector<64x8xf32> to vector<64xf32>
    %9 = vector.shape_cast %8 : vector<64xf32> to vector<64x1xf32>
    %cst_9 = arith.constant 1.250000e-01 : f32
    %10 = vector.broadcast %cst_9 : f32 to vector<64x1xf32>
    %11 = arith.mulf %6, %10 : vector<64x1xf32>
    %cst_10 = arith.constant 1.250000e-01 : f32
    %12 = vector.broadcast %cst_10 : f32 to vector<64x1xf32>
    %13 = arith.mulf %9, %12 : vector<64x1xf32>
    %14 = arith.mulf %11, %11 : vector<64x1xf32>
    %15 = arith.subf %13, %14 : vector<64x1xf32>
    %cst_11 = arith.constant 0.000000e+00 : f32
    %16 = vector.broadcast %cst_11 : f32 to vector<64x1xf32>
    %17 = arith.maximumf %15, %16 : vector<64x1xf32>
    %18 = vector.broadcast %11 : vector<64x1xf32> to vector<64x8xf32>
    %19 = arith.subf %2, %18 : vector<64x8xf32>
    %cst_12 = arith.constant 9.99999997E-7 : f32
    %20 = vector.broadcast %cst_12 : f32 to vector<64x1xf32>
    %21 = arith.addf %17, %20 : vector<64x1xf32>
    %22 = math.rsqrt %21 : vector<64x1xf32>
    %23 = vector.broadcast %22 : vector<64x1xf32> to vector<64x8xf32>
    %24 = arith.mulf %19, %23 : vector<64x8xf32>
    %25 = vector.broadcast %3 : vector<1x8xf32> to vector<64x8xf32>
    %26 = arith.mulf %24, %25 : vector<64x8xf32>
    %27 = vector.broadcast %4 : vector<1x8xf32> to vector<64x8xf32>
    %28 = arith.addf %26, %27 : vector<64x8xf32>
    %cst_13 = arith.constant 0.000000e+00 : f32
    %29 = vector.broadcast %cst_13 : f32 to vector<64x8xf32>
    %30 = arith.maximumf %28, %29 : vector<64x8xf32>
    %31 = arith.truncf %30 : vector<64x8xf32> to vector<64x8xbf16>
    %c0_14 = arith.constant 0 : index
    %c0_15 = arith.constant 0 : index
    %32 = vector.load %arg5[%c0_14, %c0_15] : memref<64x8xbf16, #tpu.memory_space<vmem>>, vector<64x8xbf16>
    tpu.vector_store %arg5[%c0_14, %c0_15], %31 {strides = array<i32>} : memref<64x8xbf16, #tpu.memory_space<vmem>>, vector<64x8xbf16>,
    return
  }
  func.func @transform_0(%arg0: i32) -> (i32, i32) {
    %c0_i32 = arith.constant 0 : i32
    %c0_i32_0 = arith.constant 0 : i32
    return %arg0, %c0_i32 : i32, i32
  }
  func.func @transform_1(%arg0: i32) -> (i32, i32) {
    %c0_i32 = arith.constant 0 : i32
    %c0_i32_0 = arith.constant 0 : i32
    %c0_i32_1 = arith.constant 0 : i32
    return %c0_i32, %c0_i32_0 : i32, i32
  }
  func.func @transform_2(%arg0: i32) -> (i32, i32) {
    %c0_i32 = arith.constant 0 : i32
    %c0_i32_0 = arith.constant 0 : i32
    %c0_i32_1 = arith.constant 0 : i32
    return %c0_i32, %c0_i32_0 : i32, i32
  }
  func.func @transform_3(%arg0: i32) -> (i32, i32) {
    %c0_i32 = arith.constant 0 : i32
    %c0_i32_0 = arith.constant 0 : i32
    %c0_i32_1 = arith.constant 0 : i32
    return %c0_i32, %c0_i32_0 : i32, i32
  }
  func.func @transform_4(%arg0: i32) -> (i32, i32) {
    %c0_i32 = arith.constant 0 : i32
    %c0_i32_0 = arith.constant 0 : i32
    return %arg0, %c0_i32 : i32, i32
  }
}

module attributes {stable_mosaic.version = 11 : i64} {
  func.func @conv_ln_relu_kernel(%arg0: i32, %arg1: memref<64x72xbf16, #tpu.memory_space<vmem>>, %arg2: memref<72x8xbf16, #tpu.memory_space<vmem>>, %arg3: memref<1x8xf32, #tpu.memory_space<vmem>>, %arg4: memref<1x8xf32, #tpu.memory_space<vmem>>, %arg5: memref<64x8xbf16, #tpu.memory_space<vmem>>) attributes {dimension_semantics = [#tpu.dimension_semantics<parallel>], iteration_bounds = array<i64: 2>, scalar_prefetch = 0 : i64, scratch_operands = 0 : i64, tpu.core_type = #tpu.core_type<tc>, window_params = [{transform_indices = @transform_0, window_bounds = array<i64: 64, 72>}, {pipeline_mode = #tpu.pipeline_mode<synchronous>, transform_indices = @transform_1, window_bounds = array<i64: 72, 8>}, {pipeline_mode = #tpu.pipeline_mode<synchronous>, transform_indices = @transform_2, window_bounds = array<i64: 1, 8>}, {pipeline_mode = #tpu.pipeline_mode<synchronous>, transform_indices = @transform_3, window_bounds = array<i64: 1, 8>}, {transform_indices = @transform_4, window_bounds = array<i64: 64, 8>}]} {
    %c0 = arith.constant 0 : index
    %c0_0 = arith.constant 0 : index
    %0 = vector.load %arg1[%c0, %c0_0] : memref<64x72xbf16, #tpu.memory_space<vmem>>, vector<64x72xbf16>
    %c0_1 = arith.constant 0 : index
    %c0_2 = arith.constant 0 : index
    %1 = vector.load %arg2[%c0_1, %c0_2] : memref<72x8xbf16, #tpu.memory_space<vmem>>, vector<72x8xbf16>
    %cst = arith.constant dense<0.000000e+00> : vector<64x8xf32>
    %2 = tpu.matmul %0, %1, %cst {dimension_numbers = #tpu.dot_dimension_numbers<[1], [0], [0], [1], [0, 0, 1, 1], [], []>} : vector<64x72xbf16>, vector<72x8xbf16>, vector<64x8xf32> -> vector<64x8xf32>
    %c0_3 = arith.constant 0 : index
    %c0_4 = arith.constant 0 : index
    %3 = vector.load %arg3[%c0_3, %c0_4] : memref<1x8xf32, #tpu.memory_space<vmem>>, vector<1x8xf32>
    %c0_5 = arith.constant 0 : index
    %c0_6 = arith.constant 0 : index
    %4 = vector.load %arg4[%c0_5, %c0_6] : memref<1x8xf32, #tpu.memory_space<vmem>>, vector<1x8xf32>
    %cst_7 = arith.constant dense<0.000000e+00> : vector<64xf32>
    %5 = vector.multi_reduction <add>, %2, %cst_7 [1] : vector<64x8xf32> to vector<64xf32>
    %6 = vector.shape_cast %5 : vector<64xf32> to vector<64x1xf32>
    %7 = arith.mulf %2, %2 : vector<64x8xf32>
    %cst_8 = arith.constant dense<0.000000e+00> : vector<64xf32>
    %8 = vector.multi_reduction <add>, %7, %cst_8 [1] : vector<64x8xf32> to vector<64xf32>
    %9 = vector.shape_cast %8 : vector<64xf32> to vector<64x1xf32>
    %cst_9 = arith.constant 1.250000e-01 : f32
    %10 = vector.broadcast %cst_9 : f32 to vector<64x1xf32>
    %11 = arith.mulf %6, %10 : vector<64x1xf32>
    %cst_10 = arith.constant 1.250000e-01 : f32
    %12 = vector.broadcast %cst_10 : f32 to vector<64x1xf32>
    %13 = arith.mulf %9, %12 : vector<64x1xf32>
    %14 = arith.mulf %11, %11 : vector<64x1xf32>
    %15 = arith.subf %13, %14 : vector<64x1xf32>
    %cst_11 = arith.constant 0.000000e+00 : f32
    %16 = vector.broadcast %cst_11 : f32 to vector<64x1xf32>
    %17 = arith.maximumf %15, %16 : vector<64x1xf32>
    %18 = vector.broadcast %11 : vector<64x1xf32> to vector<64x8xf32>
    %19 = arith.subf %2, %18 : vector<64x8xf32>
    %cst_12 = arith.constant 9.99999997E-7 : f32
    %20 = vector.broadcast %cst_12 : f32 to vector<64x1xf32>
    %21 = arith.addf %17, %20 : vector<64x1xf32>
    %22 = math.rsqrt %21 : vector<64x1xf32>
    %23 = vector.broadcast %22 : vector<64x1xf32> to vector<64x8xf32>
    %24 = arith.mulf %19, %23 : vector<64x8xf32>
    %25 = vector.broadcast %3 : vector<1x8xf32> to vector<64x8xf32>
    %26 = arith.mulf %24, %25 : vector<64x8xf32>
    %27 = vector.broadcast %4 : vector<1x8xf32> to vector<64x8xf32>
    %28 = arith.addf %26, %27 : vector<64x8xf32>
    %cst_13 = arith.constant 0.000000e+00 : f32
    %29 = vector.broadcast %cst_13 : f32 to vector<64x8xf32>
    %30 = arith.maximumf %28, %29 : vector<64x8xf32>
    %31 = arith.truncf %30 : vector<64x8xf32> to vector<64x8xbf16>
    %c0_14 = arith.constant 0 : index
    %c0_15 = arith.constant 0 : index
    %32 = vector.load %arg5[%c0_14, %c0_15] : memref<64x8xbf16, #tpu.memory_space<vmem>>, vector<64x8xbf16>
    tpu.vector_store %arg5[%c0_14, %c0_15], %31 {strides = array<i32>} : memref<64x8xbf16, #tpu.memory_space<vmem>>, vector<64x8xbf16>,
    return
  }
  func.func @transform_0(%arg0: i32) -> (i32, i32) {
    %c0_i32 = arith.constant 0 : i32
    %c0_i32_0 = arith.constant 0 : i32
    return %arg0, %c0_i32 : i32, i32
  }
  func.func @transform_1(%arg0: i32) -> (i32, i32) {
    %c0_i32 = arith.constant 0 : i32
    %c0_i32_0 = arith.constant 0 : i32
    %c0_i32_1 = arith.constant 0 : i32
    return %c0_i32, %c0_i32_0 : i32, i32
  }
  func.func @transform_2(%arg0: i32) -> (i32, i32) {
    %c0_i32 = arith.constant 0 : i32
    %c0_i32_0 = arith.constant 0 : i32
    %c0_i32_1 = arith.constant 0 : i32
    return %c0_i32, %c0_i32_0 : i32, i32
  }
  func.func @transform_3(%arg0: i32) -> (i32, i32) {
    %c0_i32 = arith.constant 0 : i32
    %c0_i32_0 = arith.constant 0 : i32
    %c0_i32_1 = arith.constant 0 : i32
    return %c0_i32, %c0_i32_0 : i32, i32
  }
  func.func @transform_4(%arg0: i32) -> (i32, i32) {
    %c0_i32 = arith.constant 0 : i32
    %c0_i32_0 = arith.constant 0 : i32
    return %arg0, %c0_i32 : i32, i32
  }
}

module attributes {stable_mosaic.version = 11 : i64} {
  func.func @maxpool_fc_kernel(%arg0: i32, %arg1: memref<16x72xbf16, #tpu.memory_space<vmem>>, %arg2: memref<8x32xbf16, #tpu.memory_space<vmem>>, %arg3: memref<1x32xf32, #tpu.memory_space<vmem>>, %arg4: memref<16x8xbf16, #tpu.memory_space<vmem>>, %arg5: memref<16x32xf32, #tpu.memory_space<vmem>>) attributes {dimension_semantics = [#tpu.dimension_semantics<parallel>], iteration_bounds = array<i64: 2>, scalar_prefetch = 0 : i64, scratch_operands = 0 : i64, tpu.core_type = #tpu.core_type<tc>, window_params = [{transform_indices = @transform_0, window_bounds = array<i64: 16, 72>}, {pipeline_mode = #tpu.pipeline_mode<synchronous>, transform_indices = @transform_1, window_bounds = array<i64: 8, 32>}, {pipeline_mode = #tpu.pipeline_mode<synchronous>, transform_indices = @transform_2, window_bounds = array<i64: 1, 32>}, {transform_indices = @transform_3, window_bounds = array<i64: 16, 8>}, {transform_indices = @transform_4, window_bounds = array<i64: 16, 32>}]} {
    %c0 = arith.constant 0 : index
    %c0_0 = arith.constant 0 : index
    %0 = vector.load %arg1[%c0, %c0_0] : memref<16x72xbf16, #tpu.memory_space<vmem>>, vector<16x72xbf16>
    %1 = vector.extract_strided_slice %0 {offsets = [0, 0], sizes = [16, 8], strides = [1, 1]} : vector<16x72xbf16> to vector<16x8xbf16>
    %2 = vector.extract_strided_slice %0 {offsets = [0, 8], sizes = [16, 8], strides = [1, 1]} : vector<16x72xbf16> to vector<16x8xbf16>
    %3 = arith.maximumf %1, %2 : vector<16x8xbf16>
    %4 = vector.extract_strided_slice %0 {offsets = [0, 16], sizes = [16, 8], strides = [1, 1]} : vector<16x72xbf16> to vector<16x8xbf16>
    %5 = arith.maximumf %3, %4 : vector<16x8xbf16>
    %6 = vector.extract_strided_slice %0 {offsets = [0, 24], sizes = [16, 8], strides = [1, 1]} : vector<16x72xbf16> to vector<16x8xbf16>
    %7 = arith.maximumf %5, %6 : vector<16x8xbf16>
    %8 = vector.extract_strided_slice %0 {offsets = [0, 32], sizes = [16, 8], strides = [1, 1]} : vector<16x72xbf16> to vector<16x8xbf16>
    %9 = arith.maximumf %7, %8 : vector<16x8xbf16>
    %10 = vector.extract_strided_slice %0 {offsets = [0, 40], sizes = [16, 8], strides = [1, 1]} : vector<16x72xbf16> to vector<16x8xbf16>
    %11 = arith.maximumf %9, %10 : vector<16x8xbf16>
    %12 = vector.extract_strided_slice %0 {offsets = [0, 48], sizes = [16, 8], strides = [1, 1]} : vector<16x72xbf16> to vector<16x8xbf16>
    %13 = arith.maximumf %11, %12 : vector<16x8xbf16>
    %14 = vector.extract_strided_slice %0 {offsets = [0, 56], sizes = [16, 8], strides = [1, 1]} : vector<16x72xbf16> to vector<16x8xbf16>
    %15 = arith.maximumf %13, %14 : vector<16x8xbf16>
    %16 = vector.extract_strided_slice %0 {offsets = [0, 64], sizes = [16, 8], strides = [1, 1]} : vector<16x72xbf16> to vector<16x8xbf16>
    %17 = arith.maximumf %15, %16 : vector<16x8xbf16>
    %c0_1 = arith.constant 0 : index
    %c0_2 = arith.constant 0 : index
    %18 = vector.load %arg4[%c0_1, %c0_2] : memref<16x8xbf16, #tpu.memory_space<vmem>>, vector<16x8xbf16>
    tpu.vector_store %arg4[%c0_1, %c0_2], %17 {strides = array<i32>} : memref<16x8xbf16, #tpu.memory_space<vmem>>, vector<16x8xbf16>,
    %c0_3 = arith.constant 0 : index
    %c0_4 = arith.constant 0 : index
    %19 = vector.load %arg2[%c0_3, %c0_4] : memref<8x32xbf16, #tpu.memory_space<vmem>>, vector<8x32xbf16>
    %cst = arith.constant dense<0.000000e+00> : vector<16x32xf32>
    %20 = tpu.matmul %17, %19, %cst {dimension_numbers = #tpu.dot_dimension_numbers<[1], [0], [0], [1], [0, 0, 1, 1], [], []>} : vector<16x8xbf16>, vector<8x32xbf16>, vector<16x32xf32> -> vector<16x32xf32>
    %c0_5 = arith.constant 0 : index
    %c0_6 = arith.constant 0 : index
    %21 = vector.load %arg3[%c0_5, %c0_6] : memref<1x32xf32, #tpu.memory_space<vmem>>, vector<1x32xf32>
    %22 = vector.broadcast %21 : vector<1x32xf32> to vector<16x32xf32>
    %23 = arith.addf %20, %22 : vector<16x32xf32>
    %c0_7 = arith.constant 0 : index
    %c0_8 = arith.constant 0 : index
    %24 = vector.load %arg5[%c0_7, %c0_8] : memref<16x32xf32, #tpu.memory_space<vmem>>, vector<16x32xf32>
    tpu.vector_store %arg5[%c0_7, %c0_8], %23 {strides = array<i32>} : memref<16x32xf32, #tpu.memory_space<vmem>>, vector<16x32xf32>,
    return
  }
  func.func @transform_0(%arg0: i32) -> (i32, i32) {
    %c0_i32 = arith.constant 0 : i32
    %c0_i32_0 = arith.constant 0 : i32
    return %arg0, %c0_i32 : i32, i32
  }
  func.func @transform_1(%arg0: i32) -> (i32, i32) {
    %c0_i32 = arith.constant 0 : i32
    %c0_i32_0 = arith.constant 0 : i32
    %c0_i32_1 = arith.constant 0 : i32
    return %c0_i32, %c0_i32_0 : i32, i32
  }
  func.func @transform_2(%arg0: i32) -> (i32, i32) {
    %c0_i32 = arith.constant 0 : i32
    %c0_i32_0 = arith.constant 0 : i32
    %c0_i32_1 = arith.constant 0 : i32
    return %c0_i32, %c0_i32_0 : i32, i32
  }
  func.func @transform_3(%arg0: i32) -> (i32, i32) {
    %c0_i32 = arith.constant 0 : i32
    %c0_i32_0 = arith.constant 0 : i32
    return %arg0, %c0_i32 : i32, i32
  }
  func.func @transform_4(%arg0: i32) -> (i32, i32) {
    %c0_i32 = arith.constant 0 : i32
    %c0_i32_0 = arith.constant 0 : i32
    return %arg0, %c0_i32 : i32, i32
  }
}

module attributes {stable_mosaic.version = 11 : i64} {
  func.func @conv_ln_relu_fc_kernel(%arg0: i32, %arg1: memref<8x72xbf16, #tpu.memory_space<vmem>>, %arg2: memref<72x16xbf16, #tpu.memory_space<vmem>>, %arg3: memref<1x16xf32, #tpu.memory_space<vmem>>, %arg4: memref<1x16xf32, #tpu.memory_space<vmem>>, %arg5: memref<16x32xbf16, #tpu.memory_space<vmem>>, %arg6: memref<1x32xf32, #tpu.memory_space<vmem>>, %arg7: memref<8x16xbf16, #tpu.memory_space<vmem>>, %arg8: memref<8x32xf32, #tpu.memory_space<vmem>>) attributes {dimension_semantics = [#tpu.dimension_semantics<parallel>], iteration_bounds = array<i64: 1>, scalar_prefetch = 0 : i64, scratch_operands = 0 : i64, tpu.core_type = #tpu.core_type<tc>, window_params = [{transform_indices = @transform_0, window_bounds = array<i64: 8, 72>}, {pipeline_mode = #tpu.pipeline_mode<synchronous>, transform_indices = @transform_1, window_bounds = array<i64: 72, 16>}, {pipeline_mode = #tpu.pipeline_mode<synchronous>, transform_indices = @transform_2, window_bounds = array<i64: 1, 16>}, {pipeline_mode = #tpu.pipeline_mode<synchronous>, transform_indices = @transform_3, window_bounds = array<i64: 1, 16>}, {pipeline_mode = #tpu.pipeline_mode<synchronous>, transform_indices = @transform_4, window_bounds = array<i64: 16, 32>}, {pipeline_mode = #tpu.pipeline_mode<synchronous>, transform_indices = @transform_5, window_bounds = array<i64: 1, 32>}, {transform_indices = @transform_6, window_bounds = array<i64: 8, 16>}, {transform_indices = @transform_7, window_bounds = array<i64: 8, 32>}]} {
    %c0 = arith.constant 0 : index
    %c0_0 = arith.constant 0 : index
    %0 = vector.load %arg1[%c0, %c0_0] : memref<8x72xbf16, #tpu.memory_space<vmem>>, vector<8x72xbf16>
    %c0_1 = arith.constant 0 : index
    %c0_2 = arith.constant 0 : index
    %1 = vector.load %arg2[%c0_1, %c0_2] : memref<72x16xbf16, #tpu.memory_space<vmem>>, vector<72x16xbf16>
    %cst = arith.constant dense<0.000000e+00> : vector<8x16xf32>
    %2 = tpu.matmul %0, %1, %cst {dimension_numbers = #tpu.dot_dimension_numbers<[1], [0], [0], [1], [0, 0, 1, 1], [], []>} : vector<8x72xbf16>, vector<72x16xbf16>, vector<8x16xf32> -> vector<8x16xf32>
    %c0_3 = arith.constant 0 : index
    %c0_4 = arith.constant 0 : index
    %3 = vector.load %arg3[%c0_3, %c0_4] : memref<1x16xf32, #tpu.memory_space<vmem>>, vector<1x16xf32>
    %c0_5 = arith.constant 0 : index
    %c0_6 = arith.constant 0 : index
    %4 = vector.load %arg4[%c0_5, %c0_6] : memref<1x16xf32, #tpu.memory_space<vmem>>, vector<1x16xf32>
    %cst_7 = arith.constant dense<0.000000e+00> : vector<8xf32>
    %5 = vector.multi_reduction <add>, %2, %cst_7 [1] : vector<8x16xf32> to vector<8xf32>
    %6 = vector.shape_cast %5 : vector<8xf32> to vector<8x1xf32>
    %7 = arith.mulf %2, %2 : vector<8x16xf32>
    %cst_8 = arith.constant dense<0.000000e+00> : vector<8xf32>
    %8 = vector.multi_reduction <add>, %7, %cst_8 [1] : vector<8x16xf32> to vector<8xf32>
    %9 = vector.shape_cast %8 : vector<8xf32> to vector<8x1xf32>
    %cst_9 = arith.constant 6.250000e-02 : f32
    %10 = vector.broadcast %cst_9 : f32 to vector<8x1xf32>
    %11 = arith.mulf %6, %10 : vector<8x1xf32>
    %cst_10 = arith.constant 6.250000e-02 : f32
    %12 = vector.broadcast %cst_10 : f32 to vector<8x1xf32>
    %13 = arith.mulf %9, %12 : vector<8x1xf32>
    %14 = arith.mulf %11, %11 : vector<8x1xf32>
    %15 = arith.subf %13, %14 : vector<8x1xf32>
    %cst_11 = arith.constant 0.000000e+00 : f32
    %16 = vector.broadcast %cst_11 : f32 to vector<8x1xf32>
    %17 = arith.maximumf %15, %16 : vector<8x1xf32>
    %18 = vector.broadcast %11 : vector<8x1xf32> to vector<8x16xf32>
    %19 = arith.subf %2, %18 : vector<8x16xf32>
    %cst_12 = arith.constant 9.99999997E-7 : f32
    %20 = vector.broadcast %cst_12 : f32 to vector<8x1xf32>
    %21 = arith.addf %17, %20 : vector<8x1xf32>
    %22 = math.rsqrt %21 : vector<8x1xf32>
    %23 = vector.broadcast %22 : vector<8x1xf32> to vector<8x16xf32>
    %24 = arith.mulf %19, %23 : vector<8x16xf32>
    %25 = vector.broadcast %3 : vector<1x16xf32> to vector<8x16xf32>
    %26 = arith.mulf %24, %25 : vector<8x16xf32>
    %27 = vector.broadcast %4 : vector<1x16xf32> to vector<8x16xf32>
    %28 = arith.addf %26, %27 : vector<8x16xf32>
    %cst_13 = arith.constant 0.000000e+00 : f32
    %29 = vector.broadcast %cst_13 : f32 to vector<8x16xf32>
    %30 = arith.maximumf %28, %29 : vector<8x16xf32>
    %31 = arith.truncf %30 : vector<8x16xf32> to vector<8x16xbf16>
    %c0_14 = arith.constant 0 : index
    %c0_15 = arith.constant 0 : index
    %32 = vector.load %arg7[%c0_14, %c0_15] : memref<8x16xbf16, #tpu.memory_space<vmem>>, vector<8x16xbf16>
    tpu.vector_store %arg7[%c0_14, %c0_15], %31 {strides = array<i32>} : memref<8x16xbf16, #tpu.memory_space<vmem>>, vector<8x16xbf16>,
    %33 = arith.truncf %30 : vector<8x16xf32> to vector<8x16xbf16>
    %c0_16 = arith.constant 0 : index
    %c0_17 = arith.constant 0 : index
    %34 = vector.load %arg5[%c0_16, %c0_17] : memref<16x32xbf16, #tpu.memory_space<vmem>>, vector<16x32xbf16>
    %cst_18 = arith.constant dense<0.000000e+00> : vector<8x32xf32>
    %35 = tpu.matmul %33, %34, %cst_18 {dimension_numbers = #tpu.dot_dimension_numbers<[1], [0], [0], [1], [0, 0, 1, 1], [], []>} : vector<8x16xbf16>, vector<16x32xbf16>, vector<8x32xf32> -> vector<8x32xf32>
    %c0_19 = arith.constant 0 : index
    %c0_20 = arith.constant 0 : index
    %36 = vector.load %arg6[%c0_19, %c0_20] : memref<1x32xf32, #tpu.memory_space<vmem>>, vector<1x32xf32>
    %37 = vector.broadcast %36 : vector<1x32xf32> to vector<8x32xf32>
    %38 = arith.addf %35, %37 : vector<8x32xf32>
    %c0_21 = arith.constant 0 : index
    %c0_22 = arith.constant 0 : index
    %39 = vector.load %arg8[%c0_21, %c0_22] : memref<8x32xf32, #tpu.memory_space<vmem>>, vector<8x32xf32>
    tpu.vector_store %arg8[%c0_21, %c0_22], %38 {strides = array<i32>} : memref<8x32xf32, #tpu.memory_space<vmem>>, vector<8x32xf32>,
    return
  }
  func.func @transform_0(%arg0: i32) -> (i32, i32) {
    %c0_i32 = arith.constant 0 : i32
    %c0_i32_0 = arith.constant 0 : i32
    return %arg0, %c0_i32 : i32, i32
  }
  func.func @transform_1(%arg0: i32) -> (i32, i32) {
    %c0_i32 = arith.constant 0 : i32
    %c0_i32_0 = arith.constant 0 : i32
    %c0_i32_1 = arith.constant 0 : i32
    return %c0_i32, %c0_i32_0 : i32, i32
  }
  func.func @transform_2(%arg0: i32) -> (i32, i32) {
    %c0_i32 = arith.constant 0 : i32
    %c0_i32_0 = arith.constant 0 : i32
    %c0_i32_1 = arith.constant 0 : i32
    return %c0_i32, %c0_i32_0 : i32, i32
  }
  func.func @transform_3(%arg0: i32) -> (i32, i32) {
    %c0_i32 = arith.constant 0 : i32
    %c0_i32_0 = arith.constant 0 : i32
    %c0_i32_1 = arith.constant 0 : i32
    return %c0_i32, %c0_i32_0 : i32, i32
  }
  func.func @transform_4(%arg0: i32) -> (i32, i32) {
    %c0_i32 = arith.constant 0 : i32
    %c0_i32_0 = arith.constant 0 : i32
    %c0_i32_1 = arith.constant 0 : i32
    return %c0_i32, %c0_i32_0 : i32, i32
  }
  func.func @transform_5(%arg0: i32) -> (i32, i32) {
    %c0_i32 = arith.constant 0 : i32
    %c0_i32_0 = arith.constant 0 : i32
    %c0_i32_1 = arith.constant 0 : i32
    return %c0_i32, %c0_i32_0 : i32, i32
  }
  func.func @transform_6(%arg0: i32) -> (i32, i32) {
    %c0_i32 = arith.constant 0 : i32
    %c0_i32_0 = arith.constant 0 : i32
    return %arg0, %c0_i32 : i32, i32
  }
  func.func @transform_7(%arg0: i32) -> (i32, i32) {
    %c0_i32 = arith.constant 0 : i32
    %c0_i32_0 = arith.constant 0 : i32
    return %arg0, %c0_i32 : i32, i32
  }
}

module attributes {stable_mosaic.version = 11 : i64} {
  func.func @conv_ln_relu_fc_kernel(%arg0: i32, %arg1: memref<8x144xbf16, #tpu.memory_space<vmem>>, %arg2: memref<144x32xbf16, #tpu.memory_space<vmem>>, %arg3: memref<1x32xf32, #tpu.memory_space<vmem>>, %arg4: memref<1x32xf32, #tpu.memory_space<vmem>>, %arg5: memref<32x32xbf16, #tpu.memory_space<vmem>>, %arg6: memref<1x32xf32, #tpu.memory_space<vmem>>, %arg7: memref<8x32xbf16, #tpu.memory_space<vmem>>, %arg8: memref<8x32xf32, #tpu.memory_space<vmem>>) attributes {dimension_semantics = [#tpu.dimension_semantics<parallel>], iteration_bounds = array<i64: 1>, scalar_prefetch = 0 : i64, scratch_operands = 0 : i64, tpu.core_type = #tpu.core_type<tc>, window_params = [{transform_indices = @transform_0, window_bounds = array<i64: 8, 144>}, {pipeline_mode = #tpu.pipeline_mode<synchronous>, transform_indices = @transform_1, window_bounds = array<i64: 144, 32>}, {pipeline_mode = #tpu.pipeline_mode<synchronous>, transform_indices = @transform_2, window_bounds = array<i64: 1, 32>}, {pipeline_mode = #tpu.pipeline_mode<synchronous>, transform_indices = @transform_3, window_bounds = array<i64: 1, 32>}, {pipeline_mode = #tpu.pipeline_mode<synchronous>, transform_indices = @transform_4, window_bounds = array<i64: 32, 32>}, {pipeline_mode = #tpu.pipeline_mode<synchronous>, transform_indices = @transform_5, window_bounds = array<i64: 1, 32>}, {transform_indices = @transform_6, window_bounds = array<i64: 8, 32>}, {transform_indices = @transform_7, window_bounds = array<i64: 8, 32>}]} {
    %c0 = arith.constant 0 : index
    %c0_0 = arith.constant 0 : index
    %0 = vector.load %arg1[%c0, %c0_0] : memref<8x144xbf16, #tpu.memory_space<vmem>>, vector<8x144xbf16>
    %c0_1 = arith.constant 0 : index
    %c0_2 = arith.constant 0 : index
    %1 = vector.load %arg2[%c0_1, %c0_2] : memref<144x32xbf16, #tpu.memory_space<vmem>>, vector<144x32xbf16>
    %cst = arith.constant dense<0.000000e+00> : vector<8x32xf32>
    %2 = tpu.matmul %0, %1, %cst {dimension_numbers = #tpu.dot_dimension_numbers<[1], [0], [0], [1], [0, 0, 1, 1], [], []>} : vector<8x144xbf16>, vector<144x32xbf16>, vector<8x32xf32> -> vector<8x32xf32>
    %c0_3 = arith.constant 0 : index
    %c0_4 = arith.constant 0 : index
    %3 = vector.load %arg3[%c0_3, %c0_4] : memref<1x32xf32, #tpu.memory_space<vmem>>, vector<1x32xf32>
    %c0_5 = arith.constant 0 : index
    %c0_6 = arith.constant 0 : index
    %4 = vector.load %arg4[%c0_5, %c0_6] : memref<1x32xf32, #tpu.memory_space<vmem>>, vector<1x32xf32>
    %cst_7 = arith.constant dense<0.000000e+00> : vector<8xf32>
    %5 = vector.multi_reduction <add>, %2, %cst_7 [1] : vector<8x32xf32> to vector<8xf32>
    %6 = vector.shape_cast %5 : vector<8xf32> to vector<8x1xf32>
    %7 = arith.mulf %2, %2 : vector<8x32xf32>
    %cst_8 = arith.constant dense<0.000000e+00> : vector<8xf32>
    %8 = vector.multi_reduction <add>, %7, %cst_8 [1] : vector<8x32xf32> to vector<8xf32>
    %9 = vector.shape_cast %8 : vector<8xf32> to vector<8x1xf32>
    %cst_9 = arith.constant 3.125000e-02 : f32
    %10 = vector.broadcast %cst_9 : f32 to vector<8x1xf32>
    %11 = arith.mulf %6, %10 : vector<8x1xf32>
    %cst_10 = arith.constant 3.125000e-02 : f32
    %12 = vector.broadcast %cst_10 : f32 to vector<8x1xf32>
    %13 = arith.mulf %9, %12 : vector<8x1xf32>
    %14 = arith.mulf %11, %11 : vector<8x1xf32>
    %15 = arith.subf %13, %14 : vector<8x1xf32>
    %cst_11 = arith.constant 0.000000e+00 : f32
    %16 = vector.broadcast %cst_11 : f32 to vector<8x1xf32>
    %17 = arith.maximumf %15, %16 : vector<8x1xf32>
    %18 = vector.broadcast %11 : vector<8x1xf32> to vector<8x32xf32>
    %19 = arith.subf %2, %18 : vector<8x32xf32>
    %cst_12 = arith.constant 9.99999997E-7 : f32
    %20 = vector.broadcast %cst_12 : f32 to vector<8x1xf32>
    %21 = arith.addf %17, %20 : vector<8x1xf32>
    %22 = math.rsqrt %21 : vector<8x1xf32>
    %23 = vector.broadcast %22 : vector<8x1xf32> to vector<8x32xf32>
    %24 = arith.mulf %19, %23 : vector<8x32xf32>
    %25 = vector.broadcast %3 : vector<1x32xf32> to vector<8x32xf32>
    %26 = arith.mulf %24, %25 : vector<8x32xf32>
    %27 = vector.broadcast %4 : vector<1x32xf32> to vector<8x32xf32>
    %28 = arith.addf %26, %27 : vector<8x32xf32>
    %cst_13 = arith.constant 0.000000e+00 : f32
    %29 = vector.broadcast %cst_13 : f32 to vector<8x32xf32>
    %30 = arith.maximumf %28, %29 : vector<8x32xf32>
    %31 = arith.truncf %30 : vector<8x32xf32> to vector<8x32xbf16>
    %c0_14 = arith.constant 0 : index
    %c0_15 = arith.constant 0 : index
    %32 = vector.load %arg7[%c0_14, %c0_15] : memref<8x32xbf16, #tpu.memory_space<vmem>>, vector<8x32xbf16>
    tpu.vector_store %arg7[%c0_14, %c0_15], %31 {strides = array<i32>} : memref<8x32xbf16, #tpu.memory_space<vmem>>, vector<8x32xbf16>,
    %33 = arith.truncf %30 : vector<8x32xf32> to vector<8x32xbf16>
    %c0_16 = arith.constant 0 : index
    %c0_17 = arith.constant 0 : index
    %34 = vector.load %arg5[%c0_16, %c0_17] : memref<32x32xbf16, #tpu.memory_space<vmem>>, vector<32x32xbf16>
    %cst_18 = arith.constant dense<0.000000e+00> : vector<8x32xf32>
    %35 = tpu.matmul %33, %34, %cst_18 {dimension_numbers = #tpu.dot_dimension_numbers<[1], [0], [0], [1], [0, 0, 1, 1], [], []>} : vector<8x32xbf16>, vector<32x32xbf16>, vector<8x32xf32> -> vector<8x32xf32>
    %c0_19 = arith.constant 0 : index
    %c0_20 = arith.constant 0 : index
    %36 = vector.load %arg6[%c0_19, %c0_20] : memref<1x32xf32, #tpu.memory_space<vmem>>, vector<1x32xf32>
    %37 = vector.broadcast %36 : vector<1x32xf32> to vector<8x32xf32>
    %38 = arith.addf %35, %37 : vector<8x32xf32>
    %c0_21 = arith.constant 0 : index
    %c0_22 = arith.constant 0 : index
    %39 = vector.load %arg8[%c0_21, %c0_22] : memref<8x32xf32, #tpu.memory_space<vmem>>, vector<8x32xf32>
    tpu.vector_store %arg8[%c0_21, %c0_22], %38 {strides = array<i32>} : memref<8x32xf32, #tpu.memory_space<vmem>>, vector<8x32xf32>,
    return
  }
  func.func @transform_0(%arg0: i32) -> (i32, i32) {
    %c0_i32 = arith.constant 0 : i32
    %c0_i32_0 = arith.constant 0 : i32
    return %arg0, %c0_i32 : i32, i32
  }
  func.func @transform_1(%arg0: i32) -> (i32, i32) {
    %c0_i32 = arith.constant 0 : i32
    %c0_i32_0 = arith.constant 0 : i32
    %c0_i32_1 = arith.constant 0 : i32
    return %c0_i32, %c0_i32_0 : i32, i32
  }
  func.func @transform_2(%arg0: i32) -> (i32, i32) {
    %c0_i32 = arith.constant 0 : i32
    %c0_i32_0 = arith.constant 0 : i32
    %c0_i32_1 = arith.constant 0 : i32
    return %c0_i32, %c0_i32_0 : i32, i32
  }
  func.func @transform_3(%arg0: i32) -> (i32, i32) {
    %c0_i32 = arith.constant 0 : i32
    %c0_i32_0 = arith.constant 0 : i32
    %c0_i32_1 = arith.constant 0 : i32
    return %c0_i32, %c0_i32_0 : i32, i32
  }
  func.func @transform_4(%arg0: i32) -> (i32, i32) {
    %c0_i32 = arith.constant 0 : i32
    %c0_i32_0 = arith.constant 0 : i32
    %c0_i32_1 = arith.constant 0 : i32
    return %c0_i32, %c0_i32_0 : i32, i32
  }
  func.func @transform_5(%arg0: i32) -> (i32, i32) {
    %c0_i32 = arith.constant 0 : i32
    %c0_i32_0 = arith.constant 0 : i32
    %c0_i32_1 = arith.constant 0 : i32
    return %c0_i32, %c0_i32_0 : i32, i32
  }
  func.func @transform_6(%arg0: i32) -> (i32, i32) {
    %c0_i32 = arith.constant 0 : i32
    %c0_i32_0 = arith.constant 0 : i32
    return %arg0, %c0_i32 : i32, i32
  }
  func.func @transform_7(%arg0: i32) -> (i32, i32) {
    %c0_i32 = arith.constant 0 : i32
    %c0_i32_0 = arith.constant 0 : i32
    return %arg0, %c0_i32 : i32, i32
  }
}

module attributes {stable_mosaic.version = 11 : i64} {
  func.func @conv_ln_relu_fc_nostore_kernel(%arg0: i32, %arg1: memref<8x288xbf16, #tpu.memory_space<vmem>>, %arg2: memref<288x32xbf16, #tpu.memory_space<vmem>>, %arg3: memref<1x32xf32, #tpu.memory_space<vmem>>, %arg4: memref<1x32xf32, #tpu.memory_space<vmem>>, %arg5: memref<32x32xbf16, #tpu.memory_space<vmem>>, %arg6: memref<1x32xf32, #tpu.memory_space<vmem>>, %arg7: memref<8x32xf32, #tpu.memory_space<vmem>>) attributes {dimension_semantics = [#tpu.dimension_semantics<parallel>], iteration_bounds = array<i64: 1>, scalar_prefetch = 0 : i64, scratch_operands = 0 : i64, tpu.core_type = #tpu.core_type<tc>, window_params = [{transform_indices = @transform_0, window_bounds = array<i64: 8, 288>}, {pipeline_mode = #tpu.pipeline_mode<synchronous>, transform_indices = @transform_1, window_bounds = array<i64: 288, 32>}, {pipeline_mode = #tpu.pipeline_mode<synchronous>, transform_indices = @transform_2, window_bounds = array<i64: 1, 32>}, {pipeline_mode = #tpu.pipeline_mode<synchronous>, transform_indices = @transform_3, window_bounds = array<i64: 1, 32>}, {pipeline_mode = #tpu.pipeline_mode<synchronous>, transform_indices = @transform_4, window_bounds = array<i64: 32, 32>}, {pipeline_mode = #tpu.pipeline_mode<synchronous>, transform_indices = @transform_5, window_bounds = array<i64: 1, 32>}, {transform_indices = @transform_6, window_bounds = array<i64: 8, 32>}]} {
    %c0 = arith.constant 0 : index
    %c0_0 = arith.constant 0 : index
    %0 = vector.load %arg1[%c0, %c0_0] : memref<8x288xbf16, #tpu.memory_space<vmem>>, vector<8x288xbf16>
    %c0_1 = arith.constant 0 : index
    %c0_2 = arith.constant 0 : index
    %1 = vector.load %arg2[%c0_1, %c0_2] : memref<288x32xbf16, #tpu.memory_space<vmem>>, vector<288x32xbf16>
    %cst = arith.constant dense<0.000000e+00> : vector<8x32xf32>
    %2 = tpu.matmul %0, %1, %cst {dimension_numbers = #tpu.dot_dimension_numbers<[1], [0], [0], [1], [0, 0, 1, 1], [], []>} : vector<8x288xbf16>, vector<288x32xbf16>, vector<8x32xf32> -> vector<8x32xf32>
    %c0_3 = arith.constant 0 : index
    %c0_4 = arith.constant 0 : index
    %3 = vector.load %arg3[%c0_3, %c0_4] : memref<1x32xf32, #tpu.memory_space<vmem>>, vector<1x32xf32>
    %c0_5 = arith.constant 0 : index
    %c0_6 = arith.constant 0 : index
    %4 = vector.load %arg4[%c0_5, %c0_6] : memref<1x32xf32, #tpu.memory_space<vmem>>, vector<1x32xf32>
    %cst_7 = arith.constant dense<0.000000e+00> : vector<8xf32>
    %5 = vector.multi_reduction <add>, %2, %cst_7 [1] : vector<8x32xf32> to vector<8xf32>
    %6 = vector.shape_cast %5 : vector<8xf32> to vector<8x1xf32>
    %7 = arith.mulf %2, %2 : vector<8x32xf32>
    %cst_8 = arith.constant dense<0.000000e+00> : vector<8xf32>
    %8 = vector.multi_reduction <add>, %7, %cst_8 [1] : vector<8x32xf32> to vector<8xf32>
    %9 = vector.shape_cast %8 : vector<8xf32> to vector<8x1xf32>
    %cst_9 = arith.constant 3.125000e-02 : f32
    %10 = vector.broadcast %cst_9 : f32 to vector<8x1xf32>
    %11 = arith.mulf %6, %10 : vector<8x1xf32>
    %cst_10 = arith.constant 3.125000e-02 : f32
    %12 = vector.broadcast %cst_10 : f32 to vector<8x1xf32>
    %13 = arith.mulf %9, %12 : vector<8x1xf32>
    %14 = arith.mulf %11, %11 : vector<8x1xf32>
    %15 = arith.subf %13, %14 : vector<8x1xf32>
    %cst_11 = arith.constant 0.000000e+00 : f32
    %16 = vector.broadcast %cst_11 : f32 to vector<8x1xf32>
    %17 = arith.maximumf %15, %16 : vector<8x1xf32>
    %18 = vector.broadcast %11 : vector<8x1xf32> to vector<8x32xf32>
    %19 = arith.subf %2, %18 : vector<8x32xf32>
    %cst_12 = arith.constant 9.99999997E-7 : f32
    %20 = vector.broadcast %cst_12 : f32 to vector<8x1xf32>
    %21 = arith.addf %17, %20 : vector<8x1xf32>
    %22 = math.rsqrt %21 : vector<8x1xf32>
    %23 = vector.broadcast %22 : vector<8x1xf32> to vector<8x32xf32>
    %24 = arith.mulf %19, %23 : vector<8x32xf32>
    %25 = vector.broadcast %3 : vector<1x32xf32> to vector<8x32xf32>
    %26 = arith.mulf %24, %25 : vector<8x32xf32>
    %27 = vector.broadcast %4 : vector<1x32xf32> to vector<8x32xf32>
    %28 = arith.addf %26, %27 : vector<8x32xf32>
    %cst_13 = arith.constant 0.000000e+00 : f32
    %29 = vector.broadcast %cst_13 : f32 to vector<8x32xf32>
    %30 = arith.maximumf %28, %29 : vector<8x32xf32>
    %31 = arith.truncf %30 : vector<8x32xf32> to vector<8x32xbf16>
    %c0_14 = arith.constant 0 : index
    %c0_15 = arith.constant 0 : index
    %32 = vector.load %arg5[%c0_14, %c0_15] : memref<32x32xbf16, #tpu.memory_space<vmem>>, vector<32x32xbf16>
    %cst_16 = arith.constant dense<0.000000e+00> : vector<8x32xf32>
    %33 = tpu.matmul %31, %32, %cst_16 {dimension_numbers = #tpu.dot_dimension_numbers<[1], [0], [0], [1], [0, 0, 1, 1], [], []>} : vector<8x32xbf16>, vector<32x32xbf16>, vector<8x32xf32> -> vector<8x32xf32>
    %c0_17 = arith.constant 0 : index
    %c0_18 = arith.constant 0 : index
    %34 = vector.load %arg6[%c0_17, %c0_18] : memref<1x32xf32, #tpu.memory_space<vmem>>, vector<1x32xf32>
    %35 = vector.broadcast %34 : vector<1x32xf32> to vector<8x32xf32>
    %36 = arith.addf %33, %35 : vector<8x32xf32>
    %c0_19 = arith.constant 0 : index
    %c0_20 = arith.constant 0 : index
    %37 = vector.load %arg7[%c0_19, %c0_20] : memref<8x32xf32, #tpu.memory_space<vmem>>, vector<8x32xf32>
    tpu.vector_store %arg7[%c0_19, %c0_20], %36 {strides = array<i32>} : memref<8x32xf32, #tpu.memory_space<vmem>>, vector<8x32xf32>,
    return
  }
  func.func @transform_0(%arg0: i32) -> (i32, i32) {
    %c0_i32 = arith.constant 0 : i32
    %c0_i32_0 = arith.constant 0 : i32
    return %arg0, %c0_i32 : i32, i32
  }
  func.func @transform_1(%arg0: i32) -> (i32, i32) {
    %c0_i32 = arith.constant 0 : i32
    %c0_i32_0 = arith.constant 0 : i32
    %c0_i32_1 = arith.constant 0 : i32
    return %c0_i32, %c0_i32_0 : i32, i32
  }
  func.func @transform_2(%arg0: i32) -> (i32, i32) {
    %c0_i32 = arith.constant 0 : i32
    %c0_i32_0 = arith.constant 0 : i32
    %c0_i32_1 = arith.constant 0 : i32
    return %c0_i32, %c0_i32_0 : i32, i32
  }
  func.func @transform_3(%arg0: i32) -> (i32, i32) {
    %c0_i32 = arith.constant 0 : i32
    %c0_i32_0 = arith.constant 0 : i32
    %c0_i32_1 = arith.constant 0 : i32
    return %c0_i32, %c0_i32_0 : i32, i32
  }
  func.func @transform_4(%arg0: i32) -> (i32, i32) {
    %c0_i32 = arith.constant 0 : i32
    %c0_i32_0 = arith.constant 0 : i32
    %c0_i32_1 = arith.constant 0 : i32
    return %c0_i32, %c0_i32_0 : i32, i32
  }
  func.func @transform_5(%arg0: i32) -> (i32, i32) {
    %c0_i32 = arith.constant 0 : i32
    %c0_i32_0 = arith.constant 0 : i32
    %c0_i32_1 = arith.constant 0 : i32
    return %c0_i32, %c0_i32_0 : i32, i32
  }
  func.func @transform_6(%arg0: i32) -> (i32, i32) {
    %c0_i32 = arith.constant 0 : i32
    %c0_i32_0 = arith.constant 0 : i32
    return %arg0, %c0_i32 : i32, i32
  }
}

</mosaic_0001>

<llo_original>
// kernel: spatial_prior_module_forward.7
$region0: #{spatial_prior_module_forward.7}
  #allocation0 [shape = 'u32[]', space=smem, size = 0x4, offset = 0x4, fixed_abs, tag = 'smem constant byte address 0x4 - core index']
  #allocation1 [shape = 'u32[144,128]{1,0:T(1,128)}', space=vmem, size = 0x12000, scoped, tag = 'internal scratch']
  %s0 = inlined_call_operand.vmem [shape: bf16[128,27], index: 0, kind: input, shape index: {}]
  %s1 = inlined_call_operand.vmem [shape: bf16[27,8], index: 1, kind: input, shape index: {}]
  %s2 = inlined_call_operand.vmem [shape: f32[1,8], index: 2, kind: input, shape index: {}]
  %s3 = inlined_call_operand.vmem [shape: f32[1,8], index: 3, kind: input, shape index: {}]
  %s4 = inlined_call_operand.vmem [shape: bf16[128,8], index: 4, kind: output, shape index: {}]
  %s5 = sld [smem:[#allocation0]]
  $region49: #{spatial_prior_module_forward.7} parent=0
    _
  %s7 = ssub.s32 1, %s5
  %s8 = scalar_select 0, %s7, %s5
  loop: start=0, step=1, limit=4
  $region2: #{spatial_prior_module_forward.7} parent=0 // loop_pre_header
    _
  $region3: #{spatial_prior_module_forward.7} parent=0 // loop_header
    %s10 = sphi 0, %s14
    %p11 = scmp.ge.s32.totalorder %s10, 4
    %s20 = sphi 0, %s22
    %s23 = sphi 0, %s20
    %s24 = sphi 0, %s23
    %s40 = sphi 0, %s24
    %s44 = sphi 0, %s44
    %s46 = sphi 0, %s44
    %s47 = sphi 0, %s46
    %s61 = sphi 0, %s47
    %s65 = sphi 0, %s65
    %s67 = sphi 0, %s65
    %s68 = sphi 0, %s67
    %s82 = sphi 0, %s68
    %s86 = sphi 0, %s86
    %s88 = sphi 0, %s86
    %s89 = sphi 0, %s88
    %s103 = sphi 0, %s89
    %s109 = sphi 0, %s111
    %s112 = sphi 0, %s109
    %s113 = sphi 0, %s112
    %s129 = sphi 0, %s113
  $region4: #{spatial_prior_module_forward.7} parent=0 // loop_header_branch
    %13 = sbr.rel (%p11) target = $region8
  $region5: #{spatial_prior_module_forward.7} parent=0 // loop_body
    %s15 = ssub.s32 %s10, 1
    %s16 = ssub.s32 %s10, 2
    %s17 = sadd.s32 %s10, 1
    %s18 = ssub.s32 %s10, %s17
    %p19 = scmp.eq.s32.totalorder %s18, 0
    %s21 = sadd.s32 %s20, 1
    %s22 = scalar_select %p19, %s20, %s21
    %p25 = pneg %p19
    %p26 = scmp.eq.s32.totalorder %s10, 1
    %p27 = por %p25, %p26
    %p28 = scmp.ne.s32.totalorder %s20, %s23
    %p29 = scmp.eq.s32.totalorder %s10, 0
    %p30 = por %p28, %p29
    %p31 = scmp.ne.s32.totalorder %s20, %s23
    %p32 = scmp.eq.s32.totalorder %s15, 1
    %p33 = por %p31, %p32
    %p34 = scmp.ne.s32.totalorder %s23, %s24
    %p35 = scmp.eq.s32.totalorder %s15, 0
    %p36 = por %p34, %p35
    %p37 = scmp.ne.s32.totalorder %s23, %s24
    %p38 = scmp.eq.s32.totalorder %s16, 1
    %p39 = por %p37, %p38
    %p41 = scmp.ne.s32.totalorder %s24, %s40
    %p42 = scmp.eq.s32.totalorder %s16, 0
    %p43 = por %p41, %p42
    %s45 = sadd.s32 %s44, 1
    %p48 = scmp.eq.s32.totalorder %s10, 1
    %p49 = scmp.ne.s32.totalorder %s44, %s46
    %p50 = scmp.eq.s32.totalorder %s10, 0
    %p51 = por %p49, %p50
    %p52 = scmp.ne.s32.totalorder %s44, %s46
    %p53 = scmp.eq.s32.totalorder %s15, 1
    %p54 = por %p52, %p53
    %p55 = scmp.ne.s32.totalorder %s46, %s47
    %p56 = scmp.eq.s32.totalorder %s15, 0
    %p57 = por %p55, %p56
    %p58 = scmp.ne.s32.totalorder %s46, %s47
    %p59 = scmp.eq.s32.totalorder %s16, 1
    %p60 = por %p58, %p59
    %p62 = scmp.ne.s32.totalorder %s47, %s61
    %p63 = scmp.eq.s32.totalorder %s16, 0
    %p64 = por %p62, %p63
    %s66 = sadd.s32 %s65, 1
    %p69 = scmp.eq.s32.totalorder %s10, 1
    %p70 = scmp.ne.s32.totalorder %s65, %s67
    %p71 = scmp.eq.s32.totalorder %s10, 0
    %p72 = por %p70, %p71
    %p73 = scmp.ne.s32.totalorder %s65, %s67
    %p74 = scmp.eq.s32.totalorder %s15, 1
    %p75 = por %p73, %p74
    %p76 = scmp.ne.s32.totalorder %s67, %s68
    %p77 = scmp.eq.s32.totalorder %s15, 0
    %p78 = por %p76, %p77
    %p79 = scmp.ne.s32.totalorder %s67, %s68
    %p80 = scmp.eq.s32.totalorder %s16, 1
    %p81 = por %p79, %p80
    %p83 = scmp.ne.s32.totalorder %s68, %s82
    %p84 = scmp.eq.s32.totalorder %s16, 0
    %p85 = por %p83, %p84
    %s87 = sadd.s32 %s86, 1
    %p90 = scmp.eq.s32.totalorder %s10, 1
    %p91 = scmp.ne.s32.totalorder %s86, %s88
    %p92 = scmp.eq.s32.totalorder %s10, 0
    %p93 = por %p91, %p92
    %p94 = scmp.ne.s32.totalorder %s86, %s88
    %p95 = scmp.eq.s32.totalorder %s15, 1
    %p96 = por %p94, %p95
    %p97 = scmp.ne.s32.totalorder %s88, %s89
    %p98 = scmp.eq.s32.totalorder %s15, 0
    %p99 = por %p97, %p98
    %p100 = scmp.ne.s32.totalorder %s88, %s89
    %p101 = scmp.eq.s32.totalorder %s16, 1
    %p102 = por %p100, %p101
    %p104 = scmp.ne.s32.totalorder %s89, %s103
    %p105 = scmp.eq.s32.totalorder %s16, 0
    %p106 = por %p104, %p105
    %s107 = ssub.s32 %s10, %s17
    %p108 = scmp.eq.s32.totalorder %s107, 0
    %s110 = sadd.s32 %s109, 1
    %s111 = scalar_select %p108, %s109, %s110
    %p114 = pneg %p108
    %p115 = scmp.eq.s32.totalorder %s10, 1
    %p116 = por %p114, %p115
    %p117 = scmp.ne.s32.totalorder %s109, %s112
    %p118 = scmp.eq.s32.totalorder %s10, 0
    %p119 = por %p117, %p118
    %p120 = scmp.ne.s32.totalorder %s109, %s112
    %p121 = scmp.eq.s32.totalorder %s15, 1
    %p122 = por %p120, %p121
    %p123 = scmp.ne.s32.totalorder %s112, %s113
    %p124 = scmp.eq.s32.totalorder %s15, 0
    %p125 = por %p123, %p124
    %p126 = scmp.ne.s32.totalorder %s112, %s113
    %p127 = scmp.eq.s32.totalorder %s16, 1
    %p128 = por %p126, %p127
    %p130 = scmp.ne.s32.totalorder %s113, %s129
    %p131 = scmp.eq.s32.totalorder %s16, 0
    %p132 = por %p130, %p131
    %p133 = scmp.le.s32.totalorder 1, %s10
    %p134 = scmp.lt.s32.totalorder %s10, 3
    %p135 = pnand %p133, %p134
    %p136 = pneg %p135
    // Predicated region
    $region9: #{spatial_prior_module_forward.7} parent=5 // pred_check
      _
    $region10: #{spatial_prior_module_forward.7} parent=5 // pred_check_branch
      %138 = sbr.rel (%p135) target = $region12
    $region11: #{spatial_prior_module_forward.7} parent=5 // pred_region
      %s139 = ssub.s32 %s10, 1
      // Predicated region
      $region13: #{spatial_prior_module_forward.7} parent=11 // pred_check
        %p140 = pneg %p57
      $region14: #{spatial_prior_module_forward.7} parent=11 // pred_check_branch
        %142 = sbr.rel (%p140) target = $region16
      $region15: #{spatial_prior_module_forward.7} parent=11 // pred_region
        _
      $region16: #{spatial_prior_module_forward.7} parent=11 // pred_fallthru
        _
      // Predicated region
      $region17: #{spatial_prior_module_forward.7} parent=11 // pred_check
        %p143 = pneg %p78
      $region18: #{spatial_prior_module_forward.7} parent=11 // pred_check_branch
        %145 = sbr.rel (%p143) target = $region20
      $region19: #{spatial_prior_module_forward.7} parent=11 // pred_region
        _
      $region20: #{spatial_prior_module_forward.7} parent=11 // pred_fallthru
        _
      // Predicated region
      $region21: #{spatial_prior_module_forward.7} parent=11 // pred_check
        %p146 = pneg %p99
      $region22: #{spatial_prior_module_forward.7} parent=11 // pred_check_branch
        %148 = sbr.rel (%p146) target = $region24
      $region23: #{spatial_prior_module_forward.7} parent=11 // pred_region
        _
      $region24: #{spatial_prior_module_forward.7} parent=11 // pred_fallthru
        _
    $region12: #{spatial_prior_module_forward.7} parent=5 // pred_fallthru
      _
    %p149 = scmp.lt.s32.totalorder %s10, 2
    // Predicated region
    $region25: #{spatial_prior_module_forward.7} parent=5 // pred_check
      %p150 = pneg %p149
    $region26: #{spatial_prior_module_forward.7} parent=5 // pred_check_branch
      %152 = sbr.rel (%p150) target = $region28
    $region27: #{spatial_prior_module_forward.7} parent=5 // pred_region
      // Predicated region
      $region29: #{spatial_prior_module_forward.7} parent=27 // pred_check
        %p153 = pneg %p30
      $region30: #{spatial_prior_module_forward.7} parent=27 // pred_check_branch
        %155 = sbr.rel (%p153) target = $region32
      $region31: #{spatial_prior_module_forward.7} parent=27 // pred_region
        %s156 = smul.u32 8, %s10
        %p157 = scmp.lt.s32.totalorder %s156, 15
        %s158 = scalar_select %p157, %s156, 15
        %s159 = smul.addr %s158, 4
        %s160 = scalar_lea.vmem %s0, %s159
        %s161 = smul.u32 8, %s10
      $region32: #{spatial_prior_module_forward.7} parent=27 // pred_fallthru
        _
    $region28: #{spatial_prior_module_forward.7} parent=5 // pred_fallthru
      _
    %p162 = scmp.le.s32.totalorder 1, %s10
    %p163 = scmp.lt.s32.totalorder %s10, 3
    %p164 = pnand %p162, %p163
    %p165 = pneg %p164
    // Predicated region
    $region33: #{spatial_prior_module_forward.7} parent=5 // pred_check
      _
    $region34: #{spatial_prior_module_forward.7} parent=5 // pred_check_branch
      %167 = sbr.rel (%p164) target = $region36
    $region35: #{spatial_prior_module_forward.7} parent=5 // pred_region
      %s168 = ssub.s32 %s10, 1
      %s169 = smul.u32 8, %s15
      %p170 = scmp.lt.s32.totalorder %s169, 15
      %s171 = scalar_select %p170, %s169, 15
      %s172 = smul.addr %s171, 4
      %s173 = scalar_lea.vmem %s0, %s172
      %p174 = pneg %p36
      %p175 = pneg %p33
      %p176 = pneg %p57
      %p177 = pneg %p54
      %p178 = pneg %p78
      %p179 = pneg %p75
      %p180 = pneg %p99
      %p181 = pneg %p96
      %p182 = pneg %p125
      %p183 = pneg %p122
      %s184 = smul.u32 8, %s15
      %p185 = scmp.lt.s32.totalorder %s184, 15
      %s186 = scalar_select %p185, %s184, 15
      %s187 = smul.addr %s186, 4
      %s188 = scalar_lea.vmem %s4, %s187
      %s189 = smul.u32 8, %s15
      %p190 = scmp.lt.s32.totalorder %s189, 15
      %s191 = scalar_select %p190, %s189, 15
      %s192 = smul.addr %s191, 4
      %s193 = scalar_lea.vmem %s0, %s192
      %s194 = smul.u32 8, %s15
      %s195 = smul.u32 8, %s15
      %p196 = scmp.lt.s32.totalorder %s195, 15
      %s197 = scalar_select %p196, %s195, 15
      %s198 = smul.addr %s197, 4
      %s199 = scalar_lea.vmem %s4, %s198
      %s200 = smul.u32 8, %s15
      %v202 = vld [vmem:[%s193] sm:$0xf]
      %v203 = vld [vmem:[%s193 + $0x4] sm:$0xf]
      %v204 = vld [vmem:[%s193 + $0x8] sm:$0xf]
      %v205 = vld [vmem:[%s193 + $0xc] sm:$0xf]
      %v206 = vld [vmem:[%s193 + $0x10] sm:$0xf]
      %v207 = vld [vmem:[%s193 + $0x14] sm:$0xf]
      %v208 = vld [vmem:[%s193 + $0x18] sm:$0xf]
      %v209 = vld [vmem:[%s193 + $0x1c] sm:$0xf]
      %v210 = vld [vmem:[%s1] sm:$0xf]
      %v211 = vld [vmem:[%s1 + $0x4] sm:$0xf]
      %v212 = vld [vmem:[%s1 + $0x8] sm:$0xf]
      %v213 = vld [vmem:[%s1 + $0xc] sm:$0x3]
      %v222 = vunpack.c.l.b16 %v202
      %v223 = vunpack.c.l.b16 %v203
      %v224 = vunpack.c.l.b16 %v204
      %v225 = vunpack.c.l.b16 %v205
      %v226 = vunpack.c.l.b16 %v206
      %v227 = vunpack.c.l.b16 %v207
      %v228 = vunpack.c.l.b16 %v208
      %v229 = vunpack.c.l.b16 %v209
      %v230 = vpack.c.b16 %v223, %v222
      %v231 = vpack.c.b16 %v225, %v224
      %v232 = vpack.c.b16 %v227, %v226
      %v233 = vpack.c.b16 %v229, %v228
      %v238 = vunpack.c.l.b16 %v210
      %v239 = vunpack.c.l.b16 %v211
      %v240 = vunpack.c.l.b16 %v212
      %v241 = vunpack.c.l.b16 %v213
      %v242 = vpack.c.b16 %v239, %v238
      %v243 = vpack.c.b16 %v241, %v240
      %vm245 = vcmask 220160
      %v247 = vsel %vm245, %v230, 0
      %v250 = vsel %vm245, %v231, 0
      %v253 = vsel %vm245, %v232, 0
      %v256 = vsel %vm245, %v233, 0
      %vm258 = vcmask 1044480
      %vm259 = vcmask 1045504
      %v260 = vsel %vm258, 4294967295, 65535
      %v261 = vsel %vm259, %v260, 0
      %v263 = vand.u32 %v243, %v261
      %265 = vmatprep.subr.bf16.mxu0 0
      %266 = vmatpush1.bf16.msra.mxu0 %v242
      %267 = vmatprep.subr.bf16.mxu0 0
      %268 = vmatpush1.bf16.msra.mxu0 %v263
      %269 = vmatprep.subr.bf16.mxu0 0
      %270 = vmatpush1.bf16.msra.mxu0 0
      %271 = vmatprep.subr.bf16.mxu0 0
      %272 = vmatpush1.bf16.msra.mxu0 0
      %273 = vmatprep.subr.bf16.mxu0 0
      %274 = vmatpush1.bf16.msra.mxu0 0
      %275 = vmatprep.subr.bf16.mxu0 0
      %276 = vmatpush1.bf16.msra.mxu0 0
      %277 = vmatprep.subr.bf16.mxu0 0
      %278 = vmatpush1.bf16.msra.mxu0 0
      %279 = vmatprep.subr.bf16.mxu0 0
      %280 = vmatpush1.bf16.msra.mxu0 0
      %281 = vmatprep.subr.bf16.mxu0 0
      %282 = vmatpush1.bf16.msra.mxu0 0
      %283 = vmatprep.subr.bf16.mxu0 0
      %284 = vmatpush1.bf16.msra.mxu0 0
      %285 = vmatprep.subr.bf16.mxu0 0
      %286 = vmatpush1.bf16.msra.mxu0 0
      %287 = vmatprep.subr.bf16.mxu0 0
      %288 = vmatpush1.bf16.msra.mxu0 0
      %289 = vmatprep.subr.bf16.mxu0 0
      %290 = vmatpush1.bf16.msra.mxu0 0
      %291 = vmatprep.subr.bf16.mxu0 0
      %292 = vmatpush1.bf16.msra.mxu0 0
      %293 = vmatprep.subr.bf16.mxu0 0
      %294 = vmatpush1.bf16.msra.mxu0 0
      %295 = vmatprep.subr.bf16.mxu0 0
      %296 = vmatpush1.bf16.msra.mxu0 0
      %297 = vmatprep.mubr.bf16.mxu0 0
      %298 = vmatmul.mubr.bf16.gmra.mrb[0].mxu0 %v247
      %v299 = vpop.f32.mrb[0].mxu0
      %v300 = vadd.f32 0.0, %v299
      %v301 = vpop.f32.mrb[0].mxu0
      %v302 = vpop.f32.mrb[0].mxu0
      %v303 = vadd.f32 0.0, %v302
      %v304 = vpop.f32.mrb[0].mxu0
      %305 = vmatprep.mubr.bf16.mxu0 0
      %306 = vmatmul.mubr.bf16.gmra.mrb[0].mxu0 %v250
      %v307 = vpop.f32.mrb[0].mxu0
      %v308 = vadd.f32 0.0, %v307
      %v309 = vpop.f32.mrb[0].mxu0
      %v310 = vpop.f32.mrb[0].mxu0
      %v311 = vadd.f32 0.0, %v310
      %v312 = vpop.f32.mrb[0].mxu0
      %313 = vmatprep.mubr.bf16.mxu0 0
      %314 = vmatmul.mubr.bf16.gmra.mrb[0].mxu0 %v253
      %v315 = vpop.f32.mrb[0].mxu0
      %v316 = vadd.f32 0.0, %v315
      %v317 = vpop.f32.mrb[0].mxu0
      %v318 = vpop.f32.mrb[0].mxu0
      %v319 = vadd.f32 0.0, %v318
      %v320 = vpop.f32.mrb[0].mxu0
      %321 = vmatprep.mubr.bf16.mxu0 0
      %322 = vmatmul.mubr.bf16.gmra.mrb[0].mxu0 %v256
      %v323 = vpop.f32.mrb[0].mxu0
      %v324 = vadd.f32 0.0, %v323
      %v325 = vpop.f32.mrb[0].mxu0
      %v326 = vpop.f32.mrb[0].mxu0
      %v327 = vadd.f32 0.0, %v326
      %v328 = vpop.f32.mrb[0].mxu0
      %329 = vdwg.mxu0
      %v330 = vld [vmem:[%s2] sm:$0x1]
      %v331 = vld [vmem:[%s3] sm:$0x1]
      %vm332 = vcmask 64512
      %v333 = vsel %vm332, %v300, 0.0
      %334 = vadd.xlane.f32.xlu0 %v333
      %v335 = vpop.xlane.xlu0 %334
      %v336 = vsel %vm332, %v303, 0.0
      %337 = vadd.xlane.f32.xlu0 %v336
      %v338 = vpop.xlane.xlu0 %337
      %v339 = vsel %vm332, %v308, 0.0
      %340 = vadd.xlane.f32.xlu0 %v339
      %v341 = vpop.xlane.xlu0 %340
      %v342 = vsel %vm332, %v311, 0.0
      %343 = vadd.xlane.f32.xlu0 %v342
      %v344 = vpop.xlane.xlu0 %343
      %v345 = vsel %vm332, %v316, 0.0
      %346 = vadd.xlane.f32.xlu0 %v345
      %v347 = vpop.xlane.xlu0 %346
      %v348 = vsel %vm332, %v319, 0.0
      %349 = vadd.xlane.f32.xlu0 %v348
      %v350 = vpop.xlane.xlu0 %349
      %v351 = vsel %vm332, %v324, 0.0
      %352 = vadd.xlane.f32.xlu0 %v351
      %v353 = vpop.xlane.xlu0 %352
      %v354 = vsel %vm332, %v327, 0.0
      %355 = vadd.xlane.f32.xlu0 %v354
      %v356 = vpop.xlane.xlu0 %355
      %v357 = vmul.f32 %v300, %v300
      %v358 = vmul.f32 %v303, %v303
      %v359 = vmul.f32 %v308, %v308
      %v360 = vmul.f32 %v311, %v311
      %v361 = vmul.f32 %v316, %v316
      %v362 = vmul.f32 %v319, %v319
      %v363 = vmul.f32 %v324, %v324
      %v364 = vmul.f32 %v327, %v327
      %v365 = vsel %vm332, %v357, 0.0
      %366 = vadd.xlane.f32.xlu0 %v365
      %v367 = vpop.xlane.xlu0 %366
      %v368 = vsel %vm332, %v358, 0.0
      %369 = vadd.xlane.f32.xlu0 %v368
      %v370 = vpop.xlane.xlu0 %369
      %v371 = vsel %vm332, %v359, 0.0
      %372 = vadd.xlane.f32.xlu0 %v371
      %v373 = vpop.xlane.xlu0 %372
      %v374 = vsel %vm332, %v360, 0.0
      %375 = vadd.xlane.f32.xlu0 %v374
      %v376 = vpop.xlane.xlu0 %375
      %v377 = vsel %vm332, %v361, 0.0
      %378 = vadd.xlane.f32.xlu0 %v377
      %v379 = vpop.xlane.xlu0 %378
      %v380 = vsel %vm332, %v362, 0.0
      %381 = vadd.xlane.f32.xlu0 %v380
      %v382 = vpop.xlane.xlu0 %381
      %v383 = vsel %vm332, %v363, 0.0
      %384 = vadd.xlane.f32.xlu0 %v383
      %v385 = vpop.xlane.xlu0 %384
      %v386 = vsel %vm332, %v364, 0.0
      %387 = vadd.xlane.f32.xlu0 %v386
      %v388 = vpop.xlane.xlu0 %387
      %v389 = vmul.f32 %v335, 0.125
      %v390 = vmul.f32 %v338, 0.125
      %v391 = vmul.f32 %v341, 0.125
      %v392 = vmul.f32 %v344, 0.125
      %v393 = vmul.f32 %v347, 0.125
      %v394 = vmul.f32 %v350, 0.125
      %v395 = vmul.f32 %v353, 0.125
      %v396 = vmul.f32 %v356, 0.125
      %v397 = vmul.f32 %v367, 0.125
      %v398 = vmul.f32 %v370, 0.125
      %v399 = vmul.f32 %v373, 0.125
      %v400 = vmul.f32 %v376, 0.125
      %v401 = vmul.f32 %v379, 0.125
      %v402 = vmul.f32 %v382, 0.125
      %v403 = vmul.f32 %v385, 0.125
      %v404 = vmul.f32 %v388, 0.125
      %v405 = vmul.f32 %v389, %v389
      %v406 = vmul.f32 %v390, %v390
      %v407 = vmul.f32 %v391, %v391
      %v408 = vmul.f32 %v392, %v392
      %v409 = vmul.f32 %v393, %v393
      %v410 = vmul.f32 %v394, %v394
      %v411 = vmul.f32 %v395, %v395
      %v412 = vmul.f32 %v396, %v396
      %v413 = vsub.f32 %v397, %v405
      %v414 = vsub.f32 %v398, %v406
      %v415 = vsub.f32 %v399, %v407
      %v416 = vsub.f32 %v400, %v408
      %v417 = vsub.f32 %v401, %v409
      %v418 = vsub.f32 %v402, %v410
      %v419 = vsub.f32 %v403, %v411
      %v420 = vsub.f32 %v404, %v412
      %v421 = vmax.f32 %v413, 0.0
      %v422 = vmax.f32 %v414, 0.0
      %v423 = vmax.f32 %v415, 0.0
      %v424 = vmax.f32 %v416, 0.0
      %v425 = vmax.f32 %v417, 0.0
      %v426 = vmax.f32 %v418, 0.0
      %v427 = vmax.f32 %v419, 0.0
      %v428 = vmax.f32 %v420, 0.0
      %v429 = vsub.f32 %v300, %v389
      %v430 = vsub.f32 %v303, %v390
      %v431 = vsub.f32 %v308, %v391
      %v432 = vsub.f32 %v311, %v392
      %v433 = vsub.f32 %v316, %v393
      %v434 = vsub.f32 %v319, %v394
      %v435 = vsub.f32 %v324, %v395
      %v436 = vsub.f32 %v327, %v396
      %v437 = vadd.f32 %v421, 1e-06
      %v438 = vadd.f32 %v422, 1e-06
      %v439 = vadd.f32 %v423, 1e-06
      %v440 = vadd.f32 %v424, 1e-06
      %v441 = vadd.f32 %v425, 1e-06
      %v442 = vadd.f32 %v426, 1e-06
      %v443 = vadd.f32 %v427, 1e-06
      %v444 = vadd.f32 %v428, 1e-06
      %v445 = vrsqrt.pop %v437
      %v446 = vrsqrt.pop %v438
      %v447 = vrsqrt.pop %v439
      %v448 = vrsqrt.pop %v440
      %v449 = vrsqrt.pop %v441
      %v450 = vrsqrt.pop %v442
      %v451 = vrsqrt.pop %v443
      %v452 = vrsqrt.pop %v444
      %v453 = vmul.f32 %v429, %v445
      %v454 = vmul.f32 %v430, %v446
      %v455 = vmul.f32 %v431, %v447
      %v456 = vmul.f32 %v432, %v448
      %v457 = vmul.f32 %v433, %v449
      %v458 = vmul.f32 %v434, %v450
      %v459 = vmul.f32 %v435, %v451
      %v460 = vmul.f32 %v436, %v452
      %v462 = vlaneseq
      %v463 = vshrl.u32 %v462, 7
      %v464 = vsub.s32 0, %v463
      %v465 = vrot.slane %v330, %v464
      %v467 = vmul.f32 %v453, %v465
      %v468 = vmul.f32 %v454, %v465
      %v469 = vmul.f32 %v455, %v465
      %v470 = vmul.f32 %v456, %v465
      %v471 = vmul.f32 %v457, %v465
      %v472 = vmul.f32 %v458, %v465
      %v473 = vmul.f32 %v459, %v465
      %v474 = vmul.f32 %v460, %v465
      %v476 = vlaneseq
      %v477 = vshrl.u32 %v476, 7
      %v478 = vsub.s32 0, %v477
      %v479 = vrot.slane %v331, %v478
      %v481 = vadd.f32 %v467, %v479
      %v482 = vadd.f32 %v468, %v479
      %v483 = vadd.f32 %v469, %v479
      %v484 = vadd.f32 %v470, %v479
      %v485 = vadd.f32 %v471, %v479
      %v486 = vadd.f32 %v472, %v479
      %v487 = vadd.f32 %v473, %v479
      %v488 = vadd.f32 %v474, %v479
      %v489 = vmax.f32 %v481, 0.0
      %v490 = vmax.f32 %v482, 0.0
      %v491 = vmax.f32 %v483, 0.0
      %v492 = vmax.f32 %v484, 0.0
      %v493 = vmax.f32 %v485, 0.0
      %v494 = vmax.f32 %v486, 0.0
      %v495 = vmax.f32 %v487, 0.0
      %v496 = vmax.f32 %v488, 0.0
      %v497 = vpack.c.bf16 %v490, %v489
      %v498 = vpack.c.bf16 %v492, %v491
      %v499 = vpack.c.bf16 %v494, %v493
      %v500 = vpack.c.bf16 %v496, %v495
      %v505 = vunpack.c.l.b16 %v497
      %v506 = vunpack.c.h.b16 %v497
      %v507 = vunpack.c.l.b16 %v498
      %v508 = vunpack.c.h.b16 %v498
      %v509 = vunpack.c.l.b16 %v499
      %v510 = vunpack.c.h.b16 %v499
      %v511 = vunpack.c.l.b16 %v500
      %v512 = vunpack.c.h.b16 %v500
      %v513 = vpack.c.b16 %v505, %v505
      %v514 = vpack.c.b16 %v506, %v506
      %v515 = vpack.c.b16 %v507, %v507
      %v516 = vpack.c.b16 %v508, %v508
      %v517 = vpack.c.b16 %v509, %v509
      %v518 = vpack.c.b16 %v510, %v510
      %v519 = vpack.c.b16 %v511, %v511
      %v520 = vpack.c.b16 %v512, %v512
      %vm529 = vcmask 60416
      %530 = vst.msk [vmem:[%s199] sm:$0xf] %vm529, %v513
      %531 = vst.msk [vmem:[%s199 + $0x4] sm:$0xf] %vm529, %v514
      %532 = vst.msk [vmem:[%s199 + $0x8] sm:$0xf] %vm529, %v515
      %533 = vst.msk [vmem:[%s199 + $0xc] sm:$0xf] %vm529, %v516
      %534 = vst.msk [vmem:[%s199 + $0x10] sm:$0xf] %vm529, %v517
      %535 = vst.msk [vmem:[%s199 + $0x14] sm:$0xf] %vm529, %v518
      %536 = vst.msk [vmem:[%s199 + $0x18] sm:$0xf] %vm529, %v519
      %537 = vst.msk [vmem:[%s199 + $0x1c] sm:$0xf] %vm529, %v520
      %s538 = smul.u32 8, %s15
      %p539 = scmp.lt.s32.totalorder %s538, 15
      %s540 = scalar_select %p539, %s538, 15
      %s541 = smul.addr %s540, 4
      %s542 = scalar_lea.vmem %s4, %s541
      // Predicated region
      $region37: #{spatial_prior_module_forward.7} parent=35 // pred_check
        %p543 = pneg %p122
      $region38: #{spatial_prior_module_forward.7} parent=35 // pred_check_branch
        %545 = sbr.rel (%p543) target = $region40
      $region39: #{spatial_prior_module_forward.7} parent=35 // pred_region
        %s546 = smul.u32 8, %s15
      $region40: #{spatial_prior_module_forward.7} parent=35 // pred_fallthru
        _
    $region36: #{spatial_prior_module_forward.7} parent=5 // pred_fallthru
      _
    %p547 = scmp.le.s32.totalorder 2, %s10
    // Predicated region
    $region41: #{spatial_prior_module_forward.7} parent=5 // pred_check
      %p548 = pneg %p547
    $region42: #{spatial_prior_module_forward.7} parent=5 // pred_check_branch
      %550 = sbr.rel (%p548) target = $region44
    $region43: #{spatial_prior_module_forward.7} parent=5 // pred_region
      %s551 = ssub.s32 %s10, 2
      // Predicated region
      $region45: #{spatial_prior_module_forward.7} parent=43 // pred_check
        %p552 = pneg %p128
      $region46: #{spatial_prior_module_forward.7} parent=43 // pred_check_branch
        %554 = sbr.rel (%p552) target = $region48
      $region47: #{spatial_prior_module_forward.7} parent=43 // pred_region
        %s555 = smul.u32 8, %s16
        %p556 = scmp.lt.s32.totalorder %s555, 15
        %s557 = scalar_select %p556, %s555, 15
        %s558 = smul.addr %s557, 4
        %s559 = scalar_lea.vmem %s4, %s558
      $region48: #{spatial_prior_module_forward.7} parent=43 // pred_fallthru
        _
    $region44: #{spatial_prior_module_forward.7} parent=5 // pred_fallthru
      _
  $region6: #{spatial_prior_module_forward.7} parent=0 // loop_footer
    %s14 = sadd.s32 1, %s10
  $region7: #{spatial_prior_module_forward.7} parent=0 // loop_footer_branch
    %9 = sbr.rel target = $region3
  $region8: #{spatial_prior_module_forward.7} parent=0 // loop_exit
    _

// kernel: spatial_prior_module_forward.8
$region0: #{spatial_prior_module_forward.8}
  #allocation0 [shape = 'u32[]', space=smem, size = 0x4, offset = 0x4, fixed_abs, tag = 'smem constant byte address 0x4 - core index']
  #allocation1 [shape = 'u32[144,128]{1,0:T(1,128)}', space=vmem, size = 0x12000, scoped, tag = 'internal scratch']
  %s0 = inlined_call_operand.vmem [shape: bf16[128,72], index: 0, kind: input, shape index: {}]
  %s1 = inlined_call_operand.vmem [shape: bf16[72,8], index: 1, kind: input, shape index: {}]
  %s2 = inlined_call_operand.vmem [shape: f32[1,8], index: 2, kind: input, shape index: {}]
  %s3 = inlined_call_operand.vmem [shape: f32[1,8], index: 3, kind: input, shape index: {}]
  %s4 = inlined_call_operand.vmem [shape: bf16[128,8], index: 4, kind: output, shape index: {}]
  %s5 = sld [smem:[#allocation0]]
  $region49: #{spatial_prior_module_forward.8} parent=0
    _
  %s7 = ssub.s32 1, %s5
  %s8 = scalar_select 0, %s7, %s5
  loop: start=0, step=1, limit=4
  $region2: #{spatial_prior_module_forward.8} parent=0 // loop_pre_header
    _
  $region3: #{spatial_prior_module_forward.8} parent=0 // loop_header
    %s10 = sphi 0, %s14
    %p11 = scmp.ge.s32.totalorder %s10, 4
    %s20 = sphi 0, %s22
    %s23 = sphi 0, %s20
    %s24 = sphi 0, %s23
    %s40 = sphi 0, %s24
    %s44 = sphi 0, %s44
    %s46 = sphi 0, %s44
    %s47 = sphi 0, %s46
    %s61 = sphi 0, %s47
    %s65 = sphi 0, %s65
    %s67 = sphi 0, %s65
    %s68 = sphi 0, %s67
    %s82 = sphi 0, %s68
    %s86 = sphi 0, %s86
    %s88 = sphi 0, %s86
    %s89 = sphi 0, %s88
    %s103 = sphi 0, %s89
    %s109 = sphi 0, %s111
    %s112 = sphi 0, %s109
    %s113 = sphi 0, %s112
    %s129 = sphi 0, %s113
  $region4: #{spatial_prior_module_forward.8} parent=0 // loop_header_branch
    %13 = sbr.rel (%p11) target = $region8
  $region5: #{spatial_prior_module_forward.8} parent=0 // loop_body
    %s15 = ssub.s32 %s10, 1
    %s16 = ssub.s32 %s10, 2
    %s17 = sadd.s32 %s10, 1
    %s18 = ssub.s32 %s10, %s17
    %p19 = scmp.eq.s32.totalorder %s18, 0
    %s21 = sadd.s32 %s20, 1
    %s22 = scalar_select %p19, %s20, %s21
    %p25 = pneg %p19
    %p26 = scmp.eq.s32.totalorder %s10, 1
    %p27 = por %p25, %p26
    %p28 = scmp.ne.s32.totalorder %s20, %s23
    %p29 = scmp.eq.s32.totalorder %s10, 0
    %p30 = por %p28, %p29
    %p31 = scmp.ne.s32.totalorder %s20, %s23
    %p32 = scmp.eq.s32.totalorder %s15, 1
    %p33 = por %p31, %p32
    %p34 = scmp.ne.s32.totalorder %s23, %s24
    %p35 = scmp.eq.s32.totalorder %s15, 0
    %p36 = por %p34, %p35
    %p37 = scmp.ne.s32.totalorder %s23, %s24
    %p38 = scmp.eq.s32.totalorder %s16, 1
    %p39 = por %p37, %p38
    %p41 = scmp.ne.s32.totalorder %s24, %s40
    %p42 = scmp.eq.s32.totalorder %s16, 0
    %p43 = por %p41, %p42
    %s45 = sadd.s32 %s44, 1
    %p48 = scmp.eq.s32.totalorder %s10, 1
    %p49 = scmp.ne.s32.totalorder %s44, %s46
    %p50 = scmp.eq.s32.totalorder %s10, 0
    %p51 = por %p49, %p50
    %p52 = scmp.ne.s32.totalorder %s44, %s46
    %p53 = scmp.eq.s32.totalorder %s15, 1
    %p54 = por %p52, %p53
    %p55 = scmp.ne.s32.totalorder %s46, %s47
    %p56 = scmp.eq.s32.totalorder %s15, 0
    %p57 = por %p55, %p56
    %p58 = scmp.ne.s32.totalorder %s46, %s47
    %p59 = scmp.eq.s32.totalorder %s16, 1
    %p60 = por %p58, %p59
    %p62 = scmp.ne.s32.totalorder %s47, %s61
    %p63 = scmp.eq.s32.totalorder %s16, 0
    %p64 = por %p62, %p63
    %s66 = sadd.s32 %s65, 1
    %p69 = scmp.eq.s32.totalorder %s10, 1
    %p70 = scmp.ne.s32.totalorder %s65, %s67
    %p71 = scmp.eq.s32.totalorder %s10, 0
    %p72 = por %p70, %p71
    %p73 = scmp.ne.s32.totalorder %s65, %s67
    %p74 = scmp.eq.s32.totalorder %s15, 1
    %p75 = por %p73, %p74
    %p76 = scmp.ne.s32.totalorder %s67, %s68
    %p77 = scmp.eq.s32.totalorder %s15, 0
    %p78 = por %p76, %p77
    %p79 = scmp.ne.s32.totalorder %s67, %s68
    %p80 = scmp.eq.s32.totalorder %s16, 1
    %p81 = por %p79, %p80
    %p83 = scmp.ne.s32.totalorder %s68, %s82
    %p84 = scmp.eq.s32.totalorder %s16, 0
    %p85 = por %p83, %p84
    %s87 = sadd.s32 %s86, 1
    %p90 = scmp.eq.s32.totalorder %s10, 1
    %p91 = scmp.ne.s32.totalorder %s86, %s88
    %p92 = scmp.eq.s32.totalorder %s10, 0
    %p93 = por %p91, %p92
    %p94 = scmp.ne.s32.totalorder %s86, %s88
    %p95 = scmp.eq.s32.totalorder %s15, 1
    %p96 = por %p94, %p95
    %p97 = scmp.ne.s32.totalorder %s88, %s89
    %p98 = scmp.eq.s32.totalorder %s15, 0
    %p99 = por %p97, %p98
    %p100 = scmp.ne.s32.totalorder %s88, %s89
    %p101 = scmp.eq.s32.totalorder %s16, 1
    %p102 = por %p100, %p101
    %p104 = scmp.ne.s32.totalorder %s89, %s103
    %p105 = scmp.eq.s32.totalorder %s16, 0
    %p106 = por %p104, %p105
    %s107 = ssub.s32 %s10, %s17
    %p108 = scmp.eq.s32.totalorder %s107, 0
    %s110 = sadd.s32 %s109, 1
    %s111 = scalar_select %p108, %s109, %s110
    %p114 = pneg %p108
    %p115 = scmp.eq.s32.totalorder %s10, 1
    %p116 = por %p114, %p115
    %p117 = scmp.ne.s32.totalorder %s109, %s112
    %p118 = scmp.eq.s32.totalorder %s10, 0
    %p119 = por %p117, %p118
    %p120 = scmp.ne.s32.totalorder %s109, %s112
    %p121 = scmp.eq.s32.totalorder %s15, 1
    %p122 = por %p120, %p121
    %p123 = scmp.ne.s32.totalorder %s112, %s113
    %p124 = scmp.eq.s32.totalorder %s15, 0
    %p125 = por %p123, %p124
    %p126 = scmp.ne.s32.totalorder %s112, %s113
    %p127 = scmp.eq.s32.totalorder %s16, 1
    %p128 = por %p126, %p127
    %p130 = scmp.ne.s32.totalorder %s113, %s129
    %p131 = scmp.eq.s32.totalorder %s16, 0
    %p132 = por %p130, %p131
    %p133 = scmp.le.s32.totalorder 1, %s10
    %p134 = scmp.lt.s32.totalorder %s10, 3
    %p135 = pnand %p133, %p134
    %p136 = pneg %p135
    // Predicated region
    $region9: #{spatial_prior_module_forward.8} parent=5 // pred_check
      _
    $region10: #{spatial_prior_module_forward.8} parent=5 // pred_check_branch
      %138 = sbr.rel (%p135) target = $region12
    $region11: #{spatial_prior_module_forward.8} parent=5 // pred_region
      %s139 = ssub.s32 %s10, 1
      // Predicated region
      $region13: #{spatial_prior_module_forward.8} parent=11 // pred_check
        %p140 = pneg %p57
      $region14: #{spatial_prior_module_forward.8} parent=11 // pred_check_branch
        %142 = sbr.rel (%p140) target = $region16
      $region15: #{spatial_prior_module_forward.8} parent=11 // pred_region
        _
      $region16: #{spatial_prior_module_forward.8} parent=11 // pred_fallthru
        _
      // Predicated region
      $region17: #{spatial_prior_module_forward.8} parent=11 // pred_check
        %p143 = pneg %p78
      $region18: #{spatial_prior_module_forward.8} parent=11 // pred_check_branch
        %145 = sbr.rel (%p143) target = $region20
      $region19: #{spatial_prior_module_forward.8} parent=11 // pred_region
        _
      $region20: #{spatial_prior_module_forward.8} parent=11 // pred_fallthru
        _
      // Predicated region
      $region21: #{spatial_prior_module_forward.8} parent=11 // pred_check
        %p146 = pneg %p99
      $region22: #{spatial_prior_module_forward.8} parent=11 // pred_check_branch
        %148 = sbr.rel (%p146) target = $region24
      $region23: #{spatial_prior_module_forward.8} parent=11 // pred_region
        _
      $region24: #{spatial_prior_module_forward.8} parent=11 // pred_fallthru
        _
    $region12: #{spatial_prior_module_forward.8} parent=5 // pred_fallthru
      _
    %p149 = scmp.lt.s32.totalorder %s10, 2
    // Predicated region
    $region25: #{spatial_prior_module_forward.8} parent=5 // pred_check
      %p150 = pneg %p149
    $region26: #{spatial_prior_module_forward.8} parent=5 // pred_check_branch
      %152 = sbr.rel (%p150) target = $region28
    $region27: #{spatial_prior_module_forward.8} parent=5 // pred_region
      // Predicated region
      $region29: #{spatial_prior_module_forward.8} parent=27 // pred_check
        %p153 = pneg %p30
      $region30: #{spatial_prior_module_forward.8} parent=27 // pred_check_branch
        %155 = sbr.rel (%p153) target = $region32
      $region31: #{spatial_prior_module_forward.8} parent=27 // pred_region
        %s156 = smul.u32 8, %s10
        %p157 = scmp.lt.s32.totalorder %s156, 15
        %s158 = scalar_select %p157, %s156, 15
        %s159 = smul.addr %s158, 4
        %s160 = scalar_lea.vmem %s0, %s159
        %s161 = smul.u32 8, %s10
      $region32: #{spatial_prior_module_forward.8} parent=27 // pred_fallthru
        _
    $region28: #{spatial_prior_module_forward.8} parent=5 // pred_fallthru
      _
    %p162 = scmp.le.s32.totalorder 1, %s10
    %p163 = scmp.lt.s32.totalorder %s10, 3
    %p164 = pnand %p162, %p163
    %p165 = pneg %p164
    // Predicated region
    $region33: #{spatial_prior_module_forward.8} parent=5 // pred_check
      _
    $region34: #{spatial_prior_module_forward.8} parent=5 // pred_check_branch
      %167 = sbr.rel (%p164) target = $region36
    $region35: #{spatial_prior_module_forward.8} parent=5 // pred_region
      %s168 = ssub.s32 %s10, 1
      %s169 = smul.u32 8, %s15
      %p170 = scmp.lt.s32.totalorder %s169, 15
      %s171 = scalar_select %p170, %s169, 15
      %s172 = smul.addr %s171, 4
      %s173 = scalar_lea.vmem %s0, %s172
      %p174 = pneg %p36
      %p175 = pneg %p33
      %p176 = pneg %p57
      %p177 = pneg %p54
      %p178 = pneg %p78
      %p179 = pneg %p75
      %p180 = pneg %p99
      %p181 = pneg %p96
      %p182 = pneg %p125
      %p183 = pneg %p122
      %s184 = smul.u32 8, %s15
      %p185 = scmp.lt.s32.totalorder %s184, 15
      %s186 = scalar_select %p185, %s184, 15
      %s187 = smul.addr %s186, 4
      %s188 = scalar_lea.vmem %s4, %s187
      %s189 = smul.u32 8, %s15
      %p190 = scmp.lt.s32.totalorder %s189, 15
      %s191 = scalar_select %p190, %s189, 15
      %s192 = smul.addr %s191, 4
      %s193 = scalar_lea.vmem %s0, %s192
      %s194 = smul.u32 8, %s15
      %s195 = smul.u32 8, %s15
      %p196 = scmp.lt.s32.totalorder %s195, 15
      %s197 = scalar_select %p196, %s195, 15
      %s198 = smul.addr %s197, 4
      %s199 = scalar_lea.vmem %s4, %s198
      %s200 = smul.u32 8, %s15
      %v202 = vld [vmem:[%s193] sm:$0xf]
      %v203 = vld [vmem:[%s193 + $0x4] sm:$0xf]
      %v204 = vld [vmem:[%s193 + $0x8] sm:$0xf]
      %v205 = vld [vmem:[%s193 + $0xc] sm:$0xf]
      %v206 = vld [vmem:[%s193 + $0x10] sm:$0xf]
      %v207 = vld [vmem:[%s193 + $0x14] sm:$0xf]
      %v208 = vld [vmem:[%s193 + $0x18] sm:$0xf]
      %v209 = vld [vmem:[%s193 + $0x1c] sm:$0xf]
      %v210 = vld [vmem:[%s1] sm:$0xf]
      %v211 = vld [vmem:[%s1 + $0x4] sm:$0xf]
      %v212 = vld [vmem:[%s1 + $0x8] sm:$0xf]
      %v213 = vld [vmem:[%s1 + $0xc] sm:$0xf]
      %v214 = vld [vmem:[%s1 + $0x10] sm:$0xf]
      %v215 = vld [vmem:[%s1 + $0x14] sm:$0xf]
      %v216 = vld [vmem:[%s1 + $0x18] sm:$0xf]
      %v217 = vld [vmem:[%s1 + $0x1c] sm:$0xf]
      %v218 = vld [vmem:[%s1 + $0x20] sm:$0xf]
      %v227 = vunpack.c.l.b16 %v202
      %v228 = vunpack.c.l.b16 %v203
      %v229 = vunpack.c.l.b16 %v204
      %v230 = vunpack.c.l.b16 %v205
      %v231 = vunpack.c.l.b16 %v206
      %v232 = vunpack.c.l.b16 %v207
      %v233 = vunpack.c.l.b16 %v208
      %v234 = vunpack.c.l.b16 %v209
      %v235 = vpack.c.b16 %v228, %v227
      %v236 = vpack.c.b16 %v230, %v229
      %v237 = vpack.c.b16 %v232, %v231
      %v238 = vpack.c.b16 %v234, %v233
      %v248 = vunpack.c.l.b16 %v210
      %v249 = vunpack.c.l.b16 %v211
      %v250 = vunpack.c.l.b16 %v212
      %v251 = vunpack.c.l.b16 %v213
      %v252 = vunpack.c.l.b16 %v214
      %v253 = vunpack.c.l.b16 %v215
      %v254 = vunpack.c.l.b16 %v216
      %v255 = vunpack.c.l.b16 %v217
      %v256 = vunpack.c.l.b16 %v218
      %v257 = vpack.c.b16 %v249, %v248
      %v258 = vpack.c.b16 %v251, %v250
      %v259 = vpack.c.b16 %v253, %v252
      %v260 = vpack.c.b16 %v255, %v254
      %v261 = vpack.c.b16 %v256, %v256
      %vm266 = vcmask 588800
      %v268 = vsel %vm266, %v235, 0
      %v271 = vsel %vm266, %v236, 0
      %v274 = vsel %vm266, %v237, 0
      %v277 = vsel %vm266, %v238, 0
      %vm279 = vcmask 1043456
      %v281 = vsel %vm279, %v261, 0
      %283 = vmatprep.subr.bf16.mxu0 0
      %284 = vmatpush1.bf16.msra.mxu0 %v257
      %285 = vmatprep.subr.bf16.mxu0 0
      %286 = vmatpush1.bf16.msra.mxu0 %v258
      %287 = vmatprep.subr.bf16.mxu0 0
      %288 = vmatpush1.bf16.msra.mxu0 %v259
      %289 = vmatprep.subr.bf16.mxu0 0
      %290 = vmatpush1.bf16.msra.mxu0 %v260
      %291 = vmatprep.subr.bf16.mxu0 0
      %292 = vmatpush1.bf16.msra.mxu0 %v281
      %293 = vmatprep.subr.bf16.mxu0 0
      %294 = vmatpush1.bf16.msra.mxu0 0
      %295 = vmatprep.subr.bf16.mxu0 0
      %296 = vmatpush1.bf16.msra.mxu0 0
      %297 = vmatprep.subr.bf16.mxu0 0
      %298 = vmatpush1.bf16.msra.mxu0 0
      %299 = vmatprep.subr.bf16.mxu0 0
      %300 = vmatpush1.bf16.msra.mxu0 0
      %301 = vmatprep.subr.bf16.mxu0 0
      %302 = vmatpush1.bf16.msra.mxu0 0
      %303 = vmatprep.subr.bf16.mxu0 0
      %304 = vmatpush1.bf16.msra.mxu0 0
      %305 = vmatprep.subr.bf16.mxu0 0
      %306 = vmatpush1.bf16.msra.mxu0 0
      %307 = vmatprep.subr.bf16.mxu0 0
      %308 = vmatpush1.bf16.msra.mxu0 0
      %309 = vmatprep.subr.bf16.mxu0 0
      %310 = vmatpush1.bf16.msra.mxu0 0
      %311 = vmatprep.subr.bf16.mxu0 0
      %312 = vmatpush1.bf16.msra.mxu0 0
      %313 = vmatprep.subr.bf16.mxu0 0
      %314 = vmatpush1.bf16.msra.mxu0 0
      %315 = vmatprep.mubr.bf16.mxu0 0
      %316 = vmatmul.mubr.bf16.gmra.mrb[0].mxu0 %v268
      %v317 = vpop.f32.mrb[0].mxu0
      %v318 = vadd.f32 0.0, %v317
      %v319 = vpop.f32.mrb[0].mxu0
      %v320 = vpop.f32.mrb[0].mxu0
      %v321 = vadd.f32 0.0, %v320
      %v322 = vpop.f32.mrb[0].mxu0
      %323 = vmatprep.mubr.bf16.mxu0 0
      %324 = vmatmul.mubr.bf16.gmra.mrb[0].mxu0 %v271
      %v325 = vpop.f32.mrb[0].mxu0
      %v326 = vadd.f32 0.0, %v325
      %v327 = vpop.f32.mrb[0].mxu0
      %v328 = vpop.f32.mrb[0].mxu0
      %v329 = vadd.f32 0.0, %v328
      %v330 = vpop.f32.mrb[0].mxu0
      %331 = vmatprep.mubr.bf16.mxu0 0
      %332 = vmatmul.mubr.bf16.gmra.mrb[0].mxu0 %v274
      %v333 = vpop.f32.mrb[0].mxu0
      %v334 = vadd.f32 0.0, %v333
      %v335 = vpop.f32.mrb[0].mxu0
      %v336 = vpop.f32.mrb[0].mxu0
      %v337 = vadd.f32 0.0, %v336
      %v338 = vpop.f32.mrb[0].mxu0
      %339 = vmatprep.mubr.bf16.mxu0 0
      %340 = vmatmul.mubr.bf16.gmra.mrb[0].mxu0 %v277
      %v341 = vpop.f32.mrb[0].mxu0
      %v342 = vadd.f32 0.0, %v341
      %v343 = vpop.f32.mrb[0].mxu0
      %v344 = vpop.f32.mrb[0].mxu0
      %v345 = vadd.f32 0.0, %v344
      %v346 = vpop.f32.mrb[0].mxu0
      %347 = vdwg.mxu0
      %v348 = vld [vmem:[%s2] sm:$0x1]
      %v349 = vld [vmem:[%s3] sm:$0x1]
      %vm350 = vcmask 64512
      %v351 = vsel %vm350, %v318, 0.0
      %352 = vadd.xlane.f32.xlu0 %v351
      %v353 = vpop.xlane.xlu0 %352
      %v354 = vsel %vm350, %v321, 0.0
      %355 = vadd.xlane.f32.xlu0 %v354
      %v356 = vpop.xlane.xlu0 %355
      %v357 = vsel %vm350, %v326, 0.0
      %358 = vadd.xlane.f32.xlu0 %v357
      %v359 = vpop.xlane.xlu0 %358
      %v360 = vsel %vm350, %v329, 0.0
      %361 = vadd.xlane.f32.xlu0 %v360
      %v362 = vpop.xlane.xlu0 %361
      %v363 = vsel %vm350, %v334, 0.0
      %364 = vadd.xlane.f32.xlu0 %v363
      %v365 = vpop.xlane.xlu0 %364
      %v366 = vsel %vm350, %v337, 0.0
      %367 = vadd.xlane.f32.xlu0 %v366
      %v368 = vpop.xlane.xlu0 %367
      %v369 = vsel %vm350, %v342, 0.0
      %370 = vadd.xlane.f32.xlu0 %v369
      %v371 = vpop.xlane.xlu0 %370
      %v372 = vsel %vm350, %v345, 0.0
      %373 = vadd.xlane.f32.xlu0 %v372
      %v374 = vpop.xlane.xlu0 %373
      %v375 = vmul.f32 %v318, %v318
      %v376 = vmul.f32 %v321, %v321
      %v377 = vmul.f32 %v326, %v326
      %v378 = vmul.f32 %v329, %v329
      %v379 = vmul.f32 %v334, %v334
      %v380 = vmul.f32 %v337, %v337
      %v381 = vmul.f32 %v342, %v342
      %v382 = vmul.f32 %v345, %v345
      %v383 = vsel %vm350, %v375, 0.0
      %384 = vadd.xlane.f32.xlu0 %v383
      %v385 = vpop.xlane.xlu0 %384
      %v386 = vsel %vm350, %v376, 0.0
      %387 = vadd.xlane.f32.xlu0 %v386
      %v388 = vpop.xlane.xlu0 %387
      %v389 = vsel %vm350, %v377, 0.0
      %390 = vadd.xlane.f32.xlu0 %v389
      %v391 = vpop.xlane.xlu0 %390
      %v392 = vsel %vm350, %v378, 0.0
      %393 = vadd.xlane.f32.xlu0 %v392
      %v394 = vpop.xlane.xlu0 %393
      %v395 = vsel %vm350, %v379, 0.0
      %396 = vadd.xlane.f32.xlu0 %v395
      %v397 = vpop.xlane.xlu0 %396
      %v398 = vsel %vm350, %v380, 0.0
      %399 = vadd.xlane.f32.xlu0 %v398
      %v400 = vpop.xlane.xlu0 %399
      %v401 = vsel %vm350, %v381, 0.0
      %402 = vadd.xlane.f32.xlu0 %v401
      %v403 = vpop.xlane.xlu0 %402
      %v404 = vsel %vm350, %v382, 0.0
      %405 = vadd.xlane.f32.xlu0 %v404
      %v406 = vpop.xlane.xlu0 %405
      %v407 = vmul.f32 %v353, 0.125
      %v408 = vmul.f32 %v356, 0.125
      %v409 = vmul.f32 %v359, 0.125
      %v410 = vmul.f32 %v362, 0.125
      %v411 = vmul.f32 %v365, 0.125
      %v412 = vmul.f32 %v368, 0.125
      %v413 = vmul.f32 %v371, 0.125
      %v414 = vmul.f32 %v374, 0.125
      %v415 = vmul.f32 %v385, 0.125
      %v416 = vmul.f32 %v388, 0.125
      %v417 = vmul.f32 %v391, 0.125
      %v418 = vmul.f32 %v394, 0.125
      %v419 = vmul.f32 %v397, 0.125
      %v420 = vmul.f32 %v400, 0.125
      %v421 = vmul.f32 %v403, 0.125
      %v422 = vmul.f32 %v406, 0.125
      %v423 = vmul.f32 %v407, %v407
      %v424 = vmul.f32 %v408, %v408
      %v425 = vmul.f32 %v409, %v409
      %v426 = vmul.f32 %v410, %v410
      %v427 = vmul.f32 %v411, %v411
      %v428 = vmul.f32 %v412, %v412
      %v429 = vmul.f32 %v413, %v413
      %v430 = vmul.f32 %v414, %v414
      %v431 = vsub.f32 %v415, %v423
      %v432 = vsub.f32 %v416, %v424
      %v433 = vsub.f32 %v417, %v425
      %v434 = vsub.f32 %v418, %v426
      %v435 = vsub.f32 %v419, %v427
      %v436 = vsub.f32 %v420, %v428
      %v437 = vsub.f32 %v421, %v429
      %v438 = vsub.f32 %v422, %v430
      %v439 = vmax.f32 %v431, 0.0
      %v440 = vmax.f32 %v432, 0.0
      %v441 = vmax.f32 %v433, 0.0
      %v442 = vmax.f32 %v434, 0.0
      %v443 = vmax.f32 %v435, 0.0
      %v444 = vmax.f32 %v436, 0.0
      %v445 = vmax.f32 %v437, 0.0
      %v446 = vmax.f32 %v438, 0.0
      %v447 = vsub.f32 %v318, %v407
      %v448 = vsub.f32 %v321, %v408
      %v449 = vsub.f32 %v326, %v409
      %v450 = vsub.f32 %v329, %v410
      %v451 = vsub.f32 %v334, %v411
      %v452 = vsub.f32 %v337, %v412
      %v453 = vsub.f32 %v342, %v413
      %v454 = vsub.f32 %v345, %v414
      %v455 = vadd.f32 %v439, 1e-06
      %v456 = vadd.f32 %v440, 1e-06
      %v457 = vadd.f32 %v441, 1e-06
      %v458 = vadd.f32 %v442, 1e-06
      %v459 = vadd.f32 %v443, 1e-06
      %v460 = vadd.f32 %v444, 1e-06
      %v461 = vadd.f32 %v445, 1e-06
      %v462 = vadd.f32 %v446, 1e-06
      %v463 = vrsqrt.pop %v455
      %v464 = vrsqrt.pop %v456
      %v465 = vrsqrt.pop %v457
      %v466 = vrsqrt.pop %v458
      %v467 = vrsqrt.pop %v459
      %v468 = vrsqrt.pop %v460
      %v469 = vrsqrt.pop %v461
      %v470 = vrsqrt.pop %v462
      %v471 = vmul.f32 %v447, %v463
      %v472 = vmul.f32 %v448, %v464
      %v473 = vmul.f32 %v449, %v465
      %v474 = vmul.f32 %v450, %v466
      %v475 = vmul.f32 %v451, %v467
      %v476 = vmul.f32 %v452, %v468
      %v477 = vmul.f32 %v453, %v469
      %v478 = vmul.f32 %v454, %v470
      %v480 = vlaneseq
      %v481 = vshrl.u32 %v480, 7
      %v482 = vsub.s32 0, %v481
      %v483 = vrot.slane %v348, %v482
      %v485 = vmul.f32 %v471, %v483
      %v486 = vmul.f32 %v472, %v483
      %v487 = vmul.f32 %v473, %v483
      %v488 = vmul.f32 %v474, %v483
      %v489 = vmul.f32 %v475, %v483
      %v490 = vmul.f32 %v476, %v483
      %v491 = vmul.f32 %v477, %v483
      %v492 = vmul.f32 %v478, %v483
      %v494 = vlaneseq
      %v495 = vshrl.u32 %v494, 7
      %v496 = vsub.s32 0, %v495
      %v497 = vrot.slane %v349, %v496
      %v499 = vadd.f32 %v485, %v497
      %v500 = vadd.f32 %v486, %v497
      %v501 = vadd.f32 %v487, %v497
      %v502 = vadd.f32 %v488, %v497
      %v503 = vadd.f32 %v489, %v497
      %v504 = vadd.f32 %v490, %v497
      %v505 = vadd.f32 %v491, %v497
      %v506 = vadd.f32 %v492, %v497
      %v507 = vmax.f32 %v499, 0.0
      %v508 = vmax.f32 %v500, 0.0
      %v509 = vmax.f32 %v501, 0.0
      %v510 = vmax.f32 %v502, 0.0
      %v511 = vmax.f32 %v503, 0.0
      %v512 = vmax.f32 %v504, 0.0
      %v513 = vmax.f32 %v505, 0.0
      %v514 = vmax.f32 %v506, 0.0
      %v515 = vpack.c.bf16 %v508, %v507
      %v516 = vpack.c.bf16 %v510, %v509
      %v517 = vpack.c.bf16 %v512, %v511
      %v518 = vpack.c.bf16 %v514, %v513
      %v523 = vunpack.c.l.b16 %v515
      %v524 = vunpack.c.h.b16 %v515
      %v525 = vunpack.c.l.b16 %v516
      %v526 = vunpack.c.h.b16 %v516
      %v527 = vunpack.c.l.b16 %v517
      %v528 = vunpack.c.h.b16 %v517
      %v529 = vunpack.c.l.b16 %v518
      %v530 = vunpack.c.h.b16 %v518
      %v531 = vpack.c.b16 %v523, %v523
      %v532 = vpack.c.b16 %v524, %v524
      %v533 = vpack.c.b16 %v525, %v525
      %v534 = vpack.c.b16 %v526, %v526
      %v535 = vpack.c.b16 %v527, %v527
      %v536 = vpack.c.b16 %v528, %v528
      %v537 = vpack.c.b16 %v529, %v529
      %v538 = vpack.c.b16 %v530, %v530
      %vm547 = vcmask 60416
      %548 = vst.msk [vmem:[%s199] sm:$0xf] %vm547, %v531
      %549 = vst.msk [vmem:[%s199 + $0x4] sm:$0xf] %vm547, %v532
      %550 = vst.msk [vmem:[%s199 + $0x8] sm:$0xf] %vm547, %v533
      %551 = vst.msk [vmem:[%s199 + $0xc] sm:$0xf] %vm547, %v534
      %552 = vst.msk [vmem:[%s199 + $0x10] sm:$0xf] %vm547, %v535
      %553 = vst.msk [vmem:[%s199 + $0x14] sm:$0xf] %vm547, %v536
      %554 = vst.msk [vmem:[%s199 + $0x18] sm:$0xf] %vm547, %v537
      %555 = vst.msk [vmem:[%s199 + $0x1c] sm:$0xf] %vm547, %v538
      %s556 = smul.u32 8, %s15
      %p557 = scmp.lt.s32.totalorder %s556, 15
      %s558 = scalar_select %p557, %s556, 15
      %s559 = smul.addr %s558, 4
      %s560 = scalar_lea.vmem %s4, %s559
      // Predicated region
      $region37: #{spatial_prior_module_forward.8} parent=35 // pred_check
        %p561 = pneg %p122
      $region38: #{spatial_prior_module_forward.8} parent=35 // pred_check_branch
        %563 = sbr.rel (%p561) target = $region40
      $region39: #{spatial_prior_module_forward.8} parent=35 // pred_region
        %s564 = smul.u32 8, %s15
      $region40: #{spatial_prior_module_forward.8} parent=35 // pred_fallthru
        _
    $region36: #{spatial_prior_module_forward.8} parent=5 // pred_fallthru
      _
    %p565 = scmp.le.s32.totalorder 2, %s10
    // Predicated region
    $region41: #{spatial_prior_module_forward.8} parent=5 // pred_check
      %p566 = pneg %p565
    $region42: #{spatial_prior_module_forward.8} parent=5 // pred_check_branch
      %568 = sbr.rel (%p566) target = $region44
    $region43: #{spatial_prior_module_forward.8} parent=5 // pred_region
      %s569 = ssub.s32 %s10, 2
      // Predicated region
      $region45: #{spatial_prior_module_forward.8} parent=43 // pred_check
        %p570 = pneg %p128
      $region46: #{spatial_prior_module_forward.8} parent=43 // pred_check_branch
        %572 = sbr.rel (%p570) target = $region48
      $region47: #{spatial_prior_module_forward.8} parent=43 // pred_region
        %s573 = smul.u32 8, %s16
        %p574 = scmp.lt.s32.totalorder %s573, 15
        %s575 = scalar_select %p574, %s573, 15
        %s576 = smul.addr %s575, 4
        %s577 = scalar_lea.vmem %s4, %s576
      $region48: #{spatial_prior_module_forward.8} parent=43 // pred_fallthru
        _
    $region44: #{spatial_prior_module_forward.8} parent=5 // pred_fallthru
      _
  $region6: #{spatial_prior_module_forward.8} parent=0 // loop_footer
    %s14 = sadd.s32 1, %s10
  $region7: #{spatial_prior_module_forward.8} parent=0 // loop_footer_branch
    %9 = sbr.rel target = $region3
  $region8: #{spatial_prior_module_forward.8} parent=0 // loop_exit
    _

// kernel: spatial_prior_module_forward.10
$region0: #{spatial_prior_module_forward.10}
  #allocation0 [shape = 'u32[]', space=smem, size = 0x4, offset = 0x4, fixed_abs, tag = 'smem constant byte address 0x4 - core index']
  #allocation1 [shape = 'u32[144,128]{1,0:T(1,128)}', space=vmem, size = 0x12000, scoped, tag = 'internal scratch']
  %s0 = inlined_call_operand.vmem [shape: bf16[32,72], index: 0, kind: input, shape index: {}]
  %s1 = inlined_call_operand.vmem [shape: bf16[8,32], index: 1, kind: input, shape index: {}]
  %s2 = inlined_call_operand.vmem [shape: f32[1,32], index: 2, kind: input, shape index: {}]
  %s3 = inlined_call_operand.vmem [shape: bf16[32,8], index: 3, kind: output, shape index: {0}]
  %s4 = inlined_call_operand.hbm [shape: f32[32,32], index: 4, kind: output, shape index: {1}]
  %5 = xla_tuple %s3, %s4
  %s6 = sld [smem:[#allocation0]]
  $region53: #{spatial_prior_module_forward.10} parent=0
    _
  %s8 = ssub.s32 1, %s6
  %s9 = scalar_select 0, %s8, %s6
  $region1: #{spatial_prior_module_forward.10} parent=0
    #allocation2 [shape = 'u8[16384]{0}', space=vmem, size = 0x4000, scoped, tag = 'output window, operand 1']
    #allocation3 [shape = 's32[2]{0}', space=sflag, size = 0x8, scoped, tag = 'scoped memory for spatial_prior_module_forward.10']
    %10 = vsyncpa [#allocation3], 0
    %s11 = scalar_lea.sflag [#allocation3], 1
    %12 = vsyncpa %s11, 0
    loop: start=0, step=1, limit=4
    $region2: #{spatial_prior_module_forward.10} parent=1 // loop_pre_header
      _
    $region3: #{spatial_prior_module_forward.10} parent=1 // loop_header
      %s14 = sphi 0, %s18
      %p15 = scmp.ge.s32.totalorder %s14, 4
      %s24 = sphi 0, %s26
      %s27 = sphi 0, %s24
      %s28 = sphi 0, %s27
      %s44 = sphi 0, %s28
      %s48 = sphi 0, %s48
      %s50 = sphi 0, %s48
      %s51 = sphi 0, %s50
      %s65 = sphi 0, %s51
      %s69 = sphi 0, %s69
      %s71 = sphi 0, %s69
      %s72 = sphi 0, %s71
      %s86 = sphi 0, %s72
      %s92 = sphi 0, %s94
      %s95 = sphi 0, %s92
      %s96 = sphi 0, %s95
      %s112 = sphi 0, %s96
      %s118 = sphi 0, %s120
      %s121 = sphi 0, %s118
      %s122 = sphi 0, %s121
      %s138 = sphi 0, %s122
    $region4: #{spatial_prior_module_forward.10} parent=1 // loop_header_branch
      %17 = sbr.rel (%p15) target = $region8
    $region5: #{spatial_prior_module_forward.10} parent=1 // loop_body
      %s19 = ssub.s32 %s14, 1
      %s20 = ssub.s32 %s14, 2
      %s21 = sadd.s32 %s14, 1
      %s22 = ssub.s32 %s14, %s21
      %p23 = scmp.eq.s32.totalorder %s22, 0
      %s25 = sadd.s32 %s24, 1
      %s26 = scalar_select %p23, %s24, %s25
      %p29 = pneg %p23
      %p30 = scmp.eq.s32.totalorder %s14, 1
      %p31 = por %p29, %p30
      %p32 = scmp.ne.s32.totalorder %s24, %s27
      %p33 = scmp.eq.s32.totalorder %s14, 0
      %p34 = por %p32, %p33
      %p35 = scmp.ne.s32.totalorder %s24, %s27
      %p36 = scmp.eq.s32.totalorder %s19, 1
      %p37 = por %p35, %p36
      %p38 = scmp.ne.s32.totalorder %s27, %s28
      %p39 = scmp.eq.s32.totalorder %s19, 0
      %p40 = por %p38, %p39
      %p41 = scmp.ne.s32.totalorder %s27, %s28
      %p42 = scmp.eq.s32.totalorder %s20, 1
      %p43 = por %p41, %p42
      %p45 = scmp.ne.s32.totalorder %s28, %s44
      %p46 = scmp.eq.s32.totalorder %s20, 0
      %p47 = por %p45, %p46
      %s49 = sadd.s32 %s48, 1
      %p52 = scmp.eq.s32.totalorder %s14, 1
      %p53 = scmp.ne.s32.totalorder %s48, %s50
      %p54 = scmp.eq.s32.totalorder %s14, 0
      %p55 = por %p53, %p54
      %p56 = scmp.ne.s32.totalorder %s48, %s50
      %p57 = scmp.eq.s32.totalorder %s19, 1
      %p58 = por %p56, %p57
      %p59 = scmp.ne.s32.totalorder %s50, %s51
      %p60 = scmp.eq.s32.totalorder %s19, 0
      %p61 = por %p59, %p60
      %p62 = scmp.ne.s32.totalorder %s50, %s51
      %p63 = scmp.eq.s32.totalorder %s20, 1
      %p64 = por %p62, %p63
      %p66 = scmp.ne.s32.totalorder %s51, %s65
      %p67 = scmp.eq.s32.totalorder %s20, 0
      %p68 = por %p66, %p67
      %s70 = sadd.s32 %s69, 1
      %p73 = scmp.eq.s32.totalorder %s14, 1
      %p74 = scmp.ne.s32.totalorder %s69, %s71
      %p75 = scmp.eq.s32.totalorder %s14, 0
      %p76 = por %p74, %p75
      %p77 = scmp.ne.s32.totalorder %s69, %s71
      %p78 = scmp.eq.s32.totalorder %s19, 1
      %p79 = por %p77, %p78
      %p80 = scmp.ne.s32.totalorder %s71, %s72
      %p81 = scmp.eq.s32.totalorder %s19, 0
      %p82 = por %p80, %p81
      %p83 = scmp.ne.s32.totalorder %s71, %s72
      %p84 = scmp.eq.s32.totalorder %s20, 1
      %p85 = por %p83, %p84
      %p87 = scmp.ne.s32.totalorder %s72, %s86
      %p88 = scmp.eq.s32.totalorder %s20, 0
      %p89 = por %p87, %p88
      %s90 = ssub.s32 %s14, %s21
      %p91 = scmp.eq.s32.totalorder %s90, 0
      %s93 = sadd.s32 %s92, 1
      %s94 = scalar_select %p91, %s92, %s93
      %p97 = pneg %p91
      %p98 = scmp.eq.s32.totalorder %s14, 1
      %p99 = por %p97, %p98
      %p100 = scmp.ne.s32.totalorder %s92, %s95
      %p101 = scmp.eq.s32.totalorder %s14, 0
      %p102 = por %p100, %p101
      %p103 = scmp.ne.s32.totalorder %s92, %s95
      %p104 = scmp.eq.s32.totalorder %s19, 1
      %p105 = por %p103, %p104
      %p106 = scmp.ne.s32.totalorder %s95, %s96
      %p107 = scmp.eq.s32.totalorder %s19, 0
      %p108 = por %p106, %p107
      %p109 = scmp.ne.s32.totalorder %s95, %s96
      %p110 = scmp.eq.s32.totalorder %s20, 1
      %p111 = por %p109, %p110
      %p113 = scmp.ne.s32.totalorder %s96, %s112
      %p114 = scmp.eq.s32.totalorder %s20, 0
      %p115 = por %p113, %p114
      %s116 = ssub.s32 %s14, %s21
      %p117 = scmp.eq.s32.totalorder %s116, 0
      %s119 = sadd.s32 %s118, 1
      %s120 = scalar_select %p117, %s118, %s119
      %p123 = pneg %p117
      %p124 = scmp.eq.s32.totalorder %s14, 1
      %p125 = por %p123, %p124
      %p126 = scmp.ne.s32.totalorder %s118, %s121
      %p127 = scmp.eq.s32.totalorder %s14, 0
      %p128 = por %p126, %p127
      %p129 = scmp.ne.s32.totalorder %s118, %s121
      %p130 = scmp.eq.s32.totalorder %s19, 1
      %p131 = por %p129, %p130
      %p132 = scmp.ne.s32.totalorder %s121, %s122
      %p133 = scmp.eq.s32.totalorder %s19, 0
      %p134 = por %p132, %p133
      %p135 = scmp.ne.s32.totalorder %s121, %s122
      %p136 = scmp.eq.s32.totalorder %s20, 1
      %p137 = por %p135, %p136
      %p139 = scmp.ne.s32.totalorder %s122, %s138
      %p140 = scmp.eq.s32.totalorder %s20, 0
      %p141 = por %p139, %p140
      %p142 = scmp.le.s32.totalorder 1, %s14
      %p143 = scmp.lt.s32.totalorder %s14, 3
      %p144 = pnand %p142, %p143
      %p145 = pneg %p144
      // Predicated region
      $region9: #{spatial_prior_module_forward.10} parent=5 // pred_check
        _
      $region10: #{spatial_prior_module_forward.10} parent=5 // pred_check_branch
        %147 = sbr.rel (%p144) target = $region12
      $region11: #{spatial_prior_module_forward.10} parent=5 // pred_region
        %s148 = ssub.s32 %s14, 1
        // Predicated region
        $region13: #{spatial_prior_module_forward.10} parent=11 // pred_check
          %p149 = pneg %p61
        $region14: #{spatial_prior_module_forward.10} parent=11 // pred_check_branch
          %151 = sbr.rel (%p149) target = $region16
        $region15: #{spatial_prior_module_forward.10} parent=11 // pred_region
          _
        $region16: #{spatial_prior_module_forward.10} parent=11 // pred_fallthru
          _
        // Predicated region
        $region17: #{spatial_prior_module_forward.10} parent=11 // pred_check
          %p152 = pneg %p82
        $region18: #{spatial_prior_module_forward.10} parent=11 // pred_check_branch
          %154 = sbr.rel (%p152) target = $region20
        $region19: #{spatial_prior_module_forward.10} parent=11 // pred_region
          _
        $region20: #{spatial_prior_module_forward.10} parent=11 // pred_fallthru
          _
      $region12: #{spatial_prior_module_forward.10} parent=5 // pred_fallthru
        _
      %p155 = scmp.lt.s32.totalorder %s14, 2
      // Predicated region
      $region21: #{spatial_prior_module_forward.10} parent=5 // pred_check
        %p156 = pneg %p155
      $region22: #{spatial_prior_module_forward.10} parent=5 // pred_check_branch
        %158 = sbr.rel (%p156) target = $region24
      $region23: #{spatial_prior_module_forward.10} parent=5 // pred_region
        // Predicated region
        $region25: #{spatial_prior_module_forward.10} parent=23 // pred_check
          %p159 = pneg %p34
        $region26: #{spatial_prior_module_forward.10} parent=23 // pred_check_branch
          %161 = sbr.rel (%p159) target = $region28
        $region27: #{spatial_prior_module_forward.10} parent=23 // pred_region
          %s162 = smul.u32 2, %s14
          %p163 = scmp.lt.s32.totalorder %s162, 3
          %s164 = scalar_select %p163, %s162, 3
          %s165 = smul.addr %s164, 4
          %s166 = scalar_lea.vmem %s0, %s165
          %s167 = smul.u32 2, %s14
        $region28: #{spatial_prior_module_forward.10} parent=23 // pred_fallthru
          _
      $region24: #{spatial_prior_module_forward.10} parent=5 // pred_fallthru
        _
      %p168 = scmp.le.s32.totalorder 1, %s14
      %p169 = scmp.lt.s32.totalorder %s14, 3
      %p170 = pnand %p168, %p169
      %p171 = pneg %p170
      // Predicated region
      $region29: #{spatial_prior_module_forward.10} parent=5 // pred_check
        _
      $region30: #{spatial_prior_module_forward.10} parent=5 // pred_check_branch
        %173 = sbr.rel (%p170) target = $region32
      $region31: #{spatial_prior_module_forward.10} parent=5 // pred_region
        %s174 = ssub.s32 %s14, 1
        %s175 = smul.u32 2, %s19
        %p176 = scmp.lt.s32.totalorder %s175, 3
        %s177 = scalar_select %p176, %s175, 3
        %s178 = smul.addr %s177, 4
        %s179 = scalar_lea.vmem %s0, %s178
        %p180 = pneg %p40
        %p181 = pneg %p37
        %p182 = pneg %p61
        %p183 = pneg %p58
        %p184 = pneg %p82
        %p185 = pneg %p79
        %p186 = pneg %p108
        %p187 = pneg %p105
        %s188 = smul.u32 2, %s19
        %p189 = scmp.lt.s32.totalorder %s188, 3
        %s190 = scalar_select %p189, %s188, 3
        %s191 = smul.addr %s190, 4
        %s192 = scalar_lea.vmem %s3, %s191
        %p193 = pneg %p134
        %p194 = pneg %p131
        %s195 = sand.u32 %s121, 1
        %s196 = scalar_lea.sflag [#allocation3], %s195
        %s197 = sand.u32 %s121, 1
        %s198 = smul.addr %s197, 16
        %s199 = scalar_lea.vmem [#allocation2], %s198
        %s200 = smul.u32 2, %s19
        %p201 = scmp.lt.s32.totalorder %s200, 3
        %s202 = scalar_select %p201, %s200, 3
        %s203 = smul.addr %s202, 4
        %s204 = scalar_lea.vmem %s0, %s203
        %s205 = smul.u32 2, %s19
        %s206 = smul.u32 2, %s19
        %p207 = scmp.lt.s32.totalorder %s206, 3
        %s208 = scalar_select %p207, %s206, 3
        %s209 = smul.addr %s208, 4
        %s210 = scalar_lea.vmem %s3, %s209
        %s211 = smul.u32 2, %s19
        %s212 = smul.u32 2, %s19
        %v214 = vld [vmem:[%s204] sm:$0xf]
        %v215 = vld [vmem:[%s204 + $0x4] sm:$0xf]
        %218 = vrot.lane.b32.xlu0 %v214, 120
        %v219 = vpop.permute.xlu0 %218
        %220 = vrot.lane.b32.xlu0 %v215, 120
        %v221 = vpop.permute.xlu0 %220
        %v224 = vmax.bf16 %v214, %v219
        %v225 = vmax.bf16 %v215, %v221
        %226 = vrot.lane.b32.xlu0 %v214, 112
        %v227 = vpop.permute.xlu0 %226
        %228 = vrot.lane.b32.xlu0 %v215, 112
        %v229 = vpop.permute.xlu0 %228
        %v232 = vmax.bf16 %v224, %v227
        %v233 = vmax.bf16 %v225, %v229
        %234 = vrot.lane.b32.xlu0 %v214, 104
        %v235 = vpop.permute.xlu0 %234
        %236 = vrot.lane.b32.xlu0 %v215, 104
        %v237 = vpop.permute.xlu0 %236
        %v240 = vmax.bf16 %v232, %v235
        %v241 = vmax.bf16 %v233, %v237
        %242 = vrot.lane.b32.xlu0 %v214, 96
        %v243 = vpop.permute.xlu0 %242
        %244 = vrot.lane.b32.xlu0 %v215, 96
        %v245 = vpop.permute.xlu0 %244
        %v248 = vmax.bf16 %v240, %v243
        %v249 = vmax.bf16 %v241, %v245
        %250 = vrot.lane.b32.xlu0 %v214, 88
        %v251 = vpop.permute.xlu0 %250
        %252 = vrot.lane.b32.xlu0 %v215, 88
        %v253 = vpop.permute.xlu0 %252
        %v256 = vmax.bf16 %v248, %v251
        %v257 = vmax.bf16 %v249, %v253
        %258 = vrot.lane.b32.xlu0 %v214, 80
        %v259 = vpop.permute.xlu0 %258
        %260 = vrot.lane.b32.xlu0 %v215, 80
        %v261 = vpop.permute.xlu0 %260
        %v264 = vmax.bf16 %v256, %v259
        %v265 = vmax.bf16 %v257, %v261
        %266 = vrot.lane.b32.xlu0 %v214, 72
        %v267 = vpop.permute.xlu0 %266
        %268 = vrot.lane.b32.xlu0 %v215, 72
        %v269 = vpop.permute.xlu0 %268
        %v272 = vmax.bf16 %v264, %v267
        %v273 = vmax.bf16 %v265, %v269
        %274 = vrot.lane.b32.xlu0 %v214, 64
        %v275 = vpop.permute.xlu0 %274
        %276 = vrot.lane.b32.xlu0 %v215, 64
        %v277 = vpop.permute.xlu0 %276
        %v280 = vmax.bf16 %v272, %v275
        %v281 = vmax.bf16 %v273, %v277
        %vm282 = vcmask 60416
        %283 = vst.msk [vmem:[%s210] sm:$0xf] %vm282, %v280
        %284 = vst.msk [vmem:[%s210 + $0x4] sm:$0xf] %vm282, %v281
        %v285 = vld [vmem:[%s1] sm:$0xf]
        %v286 = vld [vmem:[%s2] sm:$0x1]
        %v288 = vlaneseq
        %v289 = vshrl.u32 %v288, 7
        %v290 = vsub.s32 0, %v289
        %v291 = vrot.slane %v286, %v290
        %v295 = vunpack.c.l.b16 %v280
        %v296 = vunpack.c.l.b16 %v281
        %v297 = vpack.c.b16 %v296, %v295
        %vm298 = vcmask 64512
        %v300 = vsel %vm298, %v297, 0
        %vm302 = vcmask 1043456
        %v304 = vsel %vm302, %v285, 0
        %306 = vmatprep.subr.bf16.mxu0 0
        %307 = vmatpush1.bf16.msra.mxu0 %v304
        %308 = vmatprep.subr.bf16.mxu0 0
        %309 = vmatpush1.bf16.msra.mxu0 0
        %310 = vmatprep.subr.bf16.mxu0 0
        %311 = vmatpush1.bf16.msra.mxu0 0
        %312 = vmatprep.subr.bf16.mxu0 0
        %313 = vmatpush1.bf16.msra.mxu0 0
        %314 = vmatprep.subr.bf16.mxu0 0
        %315 = vmatpush1.bf16.msra.mxu0 0
        %316 = vmatprep.subr.bf16.mxu0 0
        %317 = vmatpush1.bf16.msra.mxu0 0
        %318 = vmatprep.subr.bf16.mxu0 0
        %319 = vmatpush1.bf16.msra.mxu0 0
        %320 = vmatprep.subr.bf16.mxu0 0
        %321 = vmatpush1.bf16.msra.mxu0 0
        %322 = vmatprep.subr.bf16.mxu0 0
        %323 = vmatpush1.bf16.msra.mxu0 0
        %324 = vmatprep.subr.bf16.mxu0 0
        %325 = vmatpush1.bf16.msra.mxu0 0
        %326 = vmatprep.subr.bf16.mxu0 0
        %327 = vmatpush1.bf16.msra.mxu0 0
        %328 = vmatprep.subr.bf16.mxu0 0
        %329 = vmatpush1.bf16.msra.mxu0 0
        %330 = vmatprep.subr.bf16.mxu0 0
        %331 = vmatpush1.bf16.msra.mxu0 0
        %332 = vmatprep.subr.bf16.mxu0 0
        %333 = vmatpush1.bf16.msra.mxu0 0
        %334 = vmatprep.subr.bf16.mxu0 0
        %335 = vmatpush1.bf16.msra.mxu0 0
        %336 = vmatprep.subr.bf16.mxu0 0
        %337 = vmatpush1.bf16.msra.mxu0 0
        %338 = vmatprep.mubr.bf16.mxu0 0
        %339 = vmatmul.mubr.bf16.gmra.mrb[0].mxu0 %v300
        %v340 = vpop.f32.mrb[0].mxu0
        %v341 = vadd.f32 %v291, %v340
        %v342 = vpop.f32.mrb[0].mxu0
        %v343 = vpop.f32.mrb[0].mxu0
        %v344 = vadd.f32 %v291, %v343
        %v345 = vpop.f32.mrb[0].mxu0
        %346 = vdwg.mxu0
        %vm347 = vcmask 261120
        %348 = vst.msk [vmem:[%s199] sm:$0xff] %vm347, %v341
        %349 = vst.msk [vmem:[%s199 + $0x8] sm:$0xff] %vm347, %v344
        %s350 = smul.u32 2, %s19
        %p351 = scmp.lt.s32.totalorder %s350, 3
        %s352 = scalar_select %p351, %s350, 3
        %s353 = smul.addr %s352, 4
        %s354 = scalar_lea.vmem %s3, %s353
        %s355 = sand.u32 %s121, 1
        %s356 = scalar_lea.sflag [#allocation3], %s355
        %s357 = sand.u32 %s121, 1
        %s358 = smul.addr %s357, 16
        %s359 = scalar_lea.vmem [#allocation2], %s358
        // Predicated region
        $region33: #{spatial_prior_module_forward.10} parent=31 // pred_check
          %p360 = pneg %p105
        $region34: #{spatial_prior_module_forward.10} parent=31 // pred_check_branch
          %362 = sbr.rel (%p360) target = $region36
        $region35: #{spatial_prior_module_forward.10} parent=31 // pred_region
          %s363 = smul.u32 2, %s19
        $region36: #{spatial_prior_module_forward.10} parent=31 // pred_fallthru
          _
        // Predicated region
        $region37: #{spatial_prior_module_forward.10} parent=31 // pred_check
          %p364 = pneg %p131
        $region38: #{spatial_prior_module_forward.10} parent=31 // pred_check_branch
          %366 = sbr.rel (%p364) target = $region40
        $region39: #{spatial_prior_module_forward.10} parent=31 // pred_region
          %s367 = smul.u32 2, %s19
          %s369 = ssub.s32 256, 256
          %370 = vsyncadd %s356, %s369
          %s371 = smul.addr %s367, 128
          %s372 = scalar_lea.hbm %s4, %s371
          %s373 = sshll.u32 %s359, 4
          %s374 = int_to_ptr.vmem [resolvable:$true] %s373
          %379 = dma.vmem_to_hbm [thread:$0]  %s374, 256, %s372, %s356, 128, 128, 8
        $region40: #{spatial_prior_module_forward.10} parent=31 // pred_fallthru
          _
      $region32: #{spatial_prior_module_forward.10} parent=5 // pred_fallthru
        _
      %p380 = scmp.le.s32.totalorder 2, %s14
      // Predicated region
      $region41: #{spatial_prior_module_forward.10} parent=5 // pred_check
        %p381 = pneg %p380
      $region42: #{spatial_prior_module_forward.10} parent=5 // pred_check_branch
        %383 = sbr.rel (%p381) target = $region44
      $region43: #{spatial_prior_module_forward.10} parent=5 // pred_region
        %s384 = ssub.s32 %s14, 2
        // Predicated region
        $region45: #{spatial_prior_module_forward.10} parent=43 // pred_check
          %p385 = pneg %p111
        $region46: #{spatial_prior_module_forward.10} parent=43 // pred_check_branch
          %387 = sbr.rel (%p385) target = $region48
        $region47: #{spatial_prior_module_forward.10} parent=43 // pred_region
          %s388 = smul.u32 2, %s20
          %p389 = scmp.lt.s32.totalorder %s388, 3
          %s390 = scalar_select %p389, %s388, 3
          %s391 = smul.addr %s390, 4
          %s392 = scalar_lea.vmem %s3, %s391
        $region48: #{spatial_prior_module_forward.10} parent=43 // pred_fallthru
          _
        // Predicated region
        $region49: #{spatial_prior_module_forward.10} parent=43 // pred_check
          %p393 = pneg %p137
        $region50: #{spatial_prior_module_forward.10} parent=43 // pred_check_branch
          %395 = sbr.rel (%p393) target = $region52
        $region51: #{spatial_prior_module_forward.10} parent=43 // pred_region
          %s396 = sand.u32 %s122, 1
          %s397 = scalar_lea.sflag [#allocation3], %s396
          %s398 = sand.u32 %s122, 1
          %s399 = smul.addr %s398, 16
          %s400 = scalar_lea.vmem [#allocation2], %s399
          %401 = dma.done %s397, 256
        $region52: #{spatial_prior_module_forward.10} parent=43 // pred_fallthru
          _
      $region44: #{spatial_prior_module_forward.10} parent=5 // pred_fallthru
        _
    $region6: #{spatial_prior_module_forward.10} parent=1 // loop_footer
      %s18 = sadd.s32 1, %s14
    $region7: #{spatial_prior_module_forward.10} parent=1 // loop_footer_branch
      %13 = sbr.rel target = $region3
    $region8: #{spatial_prior_module_forward.10} parent=1 // loop_exit
      _
    %402 = vsyncpa [#allocation3], 1
    %s403 = scalar_lea.sflag [#allocation3], 1
    %404 = vsyncpa %s403, 1

// kernel: spatial_prior_module_forward.11
$region0: #{spatial_prior_module_forward.11}
  #allocation0 [shape = 'u32[]', space=smem, size = 0x4, offset = 0x4, fixed_abs, tag = 'smem constant byte address 0x4 - core index']
  #allocation1 [shape = 'u32[144,128]{1,0:T(1,128)}', space=vmem, size = 0x12000, scoped, tag = 'internal scratch']
  %s0 = inlined_call_operand.vmem [shape: bf16[8,72], index: 0, kind: input, shape index: {}]
  %s1 = inlined_call_operand.vmem [shape: bf16[72,16], index: 1, kind: input, shape index: {}]
  %s2 = inlined_call_operand.vmem [shape: f32[1,16], index: 2, kind: input, shape index: {}]
  %s3 = inlined_call_operand.vmem [shape: f32[1,16], index: 3, kind: input, shape index: {}]
  %s4 = inlined_call_operand.vmem [shape: bf16[16,32], index: 4, kind: input, shape index: {}]
  %s5 = inlined_call_operand.vmem [shape: f32[1,32], index: 5, kind: input, shape index: {}]
  %s6 = inlined_call_operand.vmem [shape: bf16[8,16], index: 6, kind: output, shape index: {0}]
  %s7 = inlined_call_operand.hbm [shape: f32[8,32], index: 7, kind: output, shape index: {1}]
  %8 = xla_tuple %s6, %s7
  %s9 = sld [smem:[#allocation0]]
  $region42: #{spatial_prior_module_forward.11} parent=0
    _
  %s11 = ssub.s32 1, %s9
  %s12 = scalar_select 0, %s11, %s9
  $region1: #{spatial_prior_module_forward.11} parent=0
    #allocation2 [shape = 'u8[4096]{0}', space=vmem, size = 0x1000, scoped, tag = 'output window, operand 1, single buffered']
    #allocation3 [shape = 's32[1]{0}', space=sflag, size = 0x4, scoped, tag = 'scoped memory for spatial_prior_module_forward.11']
    %13 = vsyncpa [#allocation3], 0
    // Predicated region
    $region2: #{spatial_prior_module_forward.11} parent=1 // pred_check
      _
    $region3: #{spatial_prior_module_forward.11} parent=1 // pred_check_branch
      %15 = sbr.rel (0) target = $region5
    $region4: #{spatial_prior_module_forward.11} parent=1 // pred_region
      _
    $region5: #{spatial_prior_module_forward.11} parent=1 // pred_fallthru
      _
    // Predicated region
    $region6: #{spatial_prior_module_forward.11} parent=1 // pred_check
      _
    $region7: #{spatial_prior_module_forward.11} parent=1 // pred_check_branch
      %17 = sbr.rel (0) target = $region9
    $region8: #{spatial_prior_module_forward.11} parent=1 // pred_region
      _
    $region9: #{spatial_prior_module_forward.11} parent=1 // pred_fallthru
      _
    // Predicated region
    $region10: #{spatial_prior_module_forward.11} parent=1 // pred_check
      _
    $region11: #{spatial_prior_module_forward.11} parent=1 // pred_check_branch
      %19 = sbr.rel (0) target = $region13
    $region12: #{spatial_prior_module_forward.11} parent=1 // pred_region
      _
    $region13: #{spatial_prior_module_forward.11} parent=1 // pred_fallthru
      _
    // Predicated region
    $region14: #{spatial_prior_module_forward.11} parent=1 // pred_check
      _
    $region15: #{spatial_prior_module_forward.11} parent=1 // pred_check_branch
      %21 = sbr.rel (0) target = $region17
    $region16: #{spatial_prior_module_forward.11} parent=1 // pred_region
      _
    $region17: #{spatial_prior_module_forward.11} parent=1 // pred_fallthru
      _
    // Predicated region
    $region18: #{spatial_prior_module_forward.11} parent=1 // pred_check
      _
    $region19: #{spatial_prior_module_forward.11} parent=1 // pred_check_branch
      %23 = sbr.rel (0) target = $region21
    $region20: #{spatial_prior_module_forward.11} parent=1 // pred_region
      _
    $region21: #{spatial_prior_module_forward.11} parent=1 // pred_fallthru
      _
    // Predicated region
    $region22: #{spatial_prior_module_forward.11} parent=1 // pred_check
      _
    $region23: #{spatial_prior_module_forward.11} parent=1 // pred_check_branch
      %25 = sbr.rel (0) target = $region25
    $region24: #{spatial_prior_module_forward.11} parent=1 // pred_region
      _
    $region25: #{spatial_prior_module_forward.11} parent=1 // pred_fallthru
      _
    %v27 = vld [vmem:[%s0] sm:$0xf]
    %v28 = vld [vmem:[%s1] sm:$0xf]
    %v29 = vld [vmem:[%s1 + $0x4] sm:$0xf]
    %v30 = vld [vmem:[%s1 + $0x8] sm:$0xf]
    %v31 = vld [vmem:[%s1 + $0xc] sm:$0xf]
    %v32 = vld [vmem:[%s1 + $0x10] sm:$0xf]
    %v33 = vld [vmem:[%s1 + $0x14] sm:$0xf]
    %v34 = vld [vmem:[%s1 + $0x18] sm:$0xf]
    %v35 = vld [vmem:[%s1 + $0x1c] sm:$0xf]
    %v36 = vld [vmem:[%s1 + $0x20] sm:$0xf]
    %v46 = vunpack.c.l.b16 %v28
    %v47 = vunpack.c.l.b16 %v29
    %v48 = vunpack.c.l.b16 %v30
    %v49 = vunpack.c.l.b16 %v31
    %v50 = vunpack.c.l.b16 %v32
    %v51 = vunpack.c.l.b16 %v33
    %v52 = vunpack.c.l.b16 %v34
    %v53 = vunpack.c.l.b16 %v35
    %v54 = vunpack.c.l.b16 %v36
    %v55 = vpack.c.b16 %v47, %v46
    %v56 = vpack.c.b16 %v49, %v48
    %v57 = vpack.c.b16 %v51, %v50
    %v58 = vpack.c.b16 %v53, %v52
    %v59 = vpack.c.b16 %v54, %v54
    %vm64 = vcmask 588800
    %v66 = vsel %vm64, %v27, 0
    %vm68 = vcmask 1043456
    %v70 = vsel %vm68, %v59, 0
    %72 = vmatprep.subr.bf16.mxu0 0
    %73 = vmatpush1.bf16.msra.mxu0 %v55
    %74 = vmatprep.subr.bf16.mxu0 0
    %75 = vmatpush1.bf16.msra.mxu0 %v56
    %76 = vmatprep.subr.bf16.mxu0 0
    %77 = vmatpush1.bf16.msra.mxu0 %v57
    %78 = vmatprep.subr.bf16.mxu0 0
    %79 = vmatpush1.bf16.msra.mxu0 %v58
    %80 = vmatprep.subr.bf16.mxu0 0
    %81 = vmatpush1.bf16.msra.mxu0 %v70
    %82 = vmatprep.subr.bf16.mxu0 0
    %83 = vmatpush1.bf16.msra.mxu0 0
    %84 = vmatprep.subr.bf16.mxu0 0
    %85 = vmatpush1.bf16.msra.mxu0 0
    %86 = vmatprep.subr.bf16.mxu0 0
    %87 = vmatpush1.bf16.msra.mxu0 0
    %88 = vmatprep.subr.bf16.mxu0 0
    %89 = vmatpush1.bf16.msra.mxu0 0
    %90 = vmatprep.subr.bf16.mxu0 0
    %91 = vmatpush1.bf16.msra.mxu0 0
    %92 = vmatprep.subr.bf16.mxu0 0
    %93 = vmatpush1.bf16.msra.mxu0 0
    %94 = vmatprep.subr.bf16.mxu0 0
    %95 = vmatpush1.bf16.msra.mxu0 0
    %96 = vmatprep.subr.bf16.mxu0 0
    %97 = vmatpush1.bf16.msra.mxu0 0
    %98 = vmatprep.subr.bf16.mxu0 0
    %99 = vmatpush1.bf16.msra.mxu0 0
    %100 = vmatprep.subr.bf16.mxu0 0
    %101 = vmatpush1.bf16.msra.mxu0 0
    %102 = vmatprep.subr.bf16.mxu0 0
    %103 = vmatpush1.bf16.msra.mxu0 0
    %104 = vmatprep.mubr.bf16.mxu0 0
    %105 = vmatmul.mubr.bf16.gmra.mrb[0].mxu0 %v66
    %v106 = vpop.f32.mrb[0].mxu0
    %v107 = vadd.f32 0.0, %v106
    %v108 = vpop.f32.mrb[0].mxu0
    %v109 = vpop.f32.mrb[0].mxu0
    %v110 = vpop.f32.mrb[0].mxu0
    %111 = vdwg.mxu0
    %v112 = vld [vmem:[%s2] sm:$0x1]
    %v113 = vld [vmem:[%s3] sm:$0x1]
    %vm114 = vcmask 130048
    %v115 = vsel %vm114, %v107, 0.0
    %116 = vadd.xlane.f32.xlu0 %v115
    %v117 = vpop.xlane.xlu0 %116
    %v118 = vmul.f32 %v107, %v107
    %v119 = vsel %vm114, %v118, 0.0
    %120 = vadd.xlane.f32.xlu0 %v119
    %v121 = vpop.xlane.xlu0 %120
    %v122 = vmul.f32 %v117, 0.0625
    %v123 = vmul.f32 %v121, 0.0625
    %v124 = vmul.f32 %v122, %v122
    %v125 = vsub.f32 %v123, %v124
    %v126 = vmax.f32 %v125, 0.0
    %v127 = vsub.f32 %v107, %v122
    %v128 = vadd.f32 %v126, 1e-06
    %v129 = vrsqrt.pop %v128
    %v130 = vmul.f32 %v127, %v129
    %v132 = vlaneseq
    %v133 = vshrl.u32 %v132, 7
    %v134 = vsub.s32 0, %v133
    %v135 = vrot.slane %v112, %v134
    %v137 = vmul.f32 %v130, %v135
    %v139 = vlaneseq
    %v140 = vshrl.u32 %v139, 7
    %v141 = vsub.s32 0, %v140
    %v142 = vrot.slane %v113, %v141
    %v144 = vadd.f32 %v137, %v142
    %v145 = vmax.f32 %v144, 0.0
    %v146 = vpack.c.bf16 %v145, %v145
    %vm147 = vcmask 125952
    %148 = vst.msk [vmem:[%s6] sm:$0xf] %vm147, %v146
    %v149 = vld [vmem:[%s4] sm:$0xf]
    %v150 = vld [vmem:[%s4 + $0x4] sm:$0xf]
    %v151 = vld [vmem:[%s5] sm:$0x1]
    %v153 = vlaneseq
    %v154 = vshrl.u32 %v153, 7
    %v155 = vsub.s32 0, %v154
    %v156 = vrot.slane %v151, %v155
    %v160 = vunpack.c.l.b16 %v149
    %v161 = vunpack.c.l.b16 %v150
    %v162 = vpack.c.b16 %v161, %v160
    %v165 = vsel %vm114, %v146, 0
    %167 = vmatprep.subr.bf16.mxu0 0
    %168 = vmatpush1.bf16.msra.mxu0 %v162
    %169 = vmatprep.subr.bf16.mxu0 0
    %170 = vmatpush1.bf16.msra.mxu0 0
    %171 = vmatprep.subr.bf16.mxu0 0
    %172 = vmatpush1.bf16.msra.mxu0 0
    %173 = vmatprep.subr.bf16.mxu0 0
    %174 = vmatpush1.bf16.msra.mxu0 0
    %175 = vmatprep.subr.bf16.mxu0 0
    %176 = vmatpush1.bf16.msra.mxu0 0
    %177 = vmatprep.subr.bf16.mxu0 0
    %178 = vmatpush1.bf16.msra.mxu0 0
    %179 = vmatprep.subr.bf16.mxu0 0
    %180 = vmatpush1.bf16.msra.mxu0 0
    %181 = vmatprep.subr.bf16.mxu0 0
    %182 = vmatpush1.bf16.msra.mxu0 0
    %183 = vmatprep.subr.bf16.mxu0 0
    %184 = vmatpush1.bf16.msra.mxu0 0
    %185 = vmatprep.subr.bf16.mxu0 0
    %186 = vmatpush1.bf16.msra.mxu0 0
    %187 = vmatprep.subr.bf16.mxu0 0
    %188 = vmatpush1.bf16.msra.mxu0 0
    %189 = vmatprep.subr.bf16.mxu0 0
    %190 = vmatpush1.bf16.msra.mxu0 0
    %191 = vmatprep.subr.bf16.mxu0 0
    %192 = vmatpush1.bf16.msra.mxu0 0
    %193 = vmatprep.subr.bf16.mxu0 0
    %194 = vmatpush1.bf16.msra.mxu0 0
    %195 = vmatprep.subr.bf16.mxu0 0
    %196 = vmatpush1.bf16.msra.mxu0 0
    %197 = vmatprep.subr.bf16.mxu0 0
    %198 = vmatpush1.bf16.msra.mxu0 0
    %199 = vmatprep.mubr.bf16.mxu0 0
    %200 = vmatmul.mubr.bf16.gmra.mrb[0].mxu0 %v165
    %v201 = vpop.f32.mrb[0].mxu0
    %v202 = vadd.f32 %v156, %v201
    %v203 = vpop.f32.mrb[0].mxu0
    %v204 = vpop.f32.mrb[0].mxu0
    %v205 = vpop.f32.mrb[0].mxu0
    %206 = vdwg.mxu0
    %vm207 = vcmask 261120
    %208 = vst.msk [vmem:[#allocation2] sm:$0xff] %vm207, %v202
    // Predicated region
    $region26: #{spatial_prior_module_forward.11} parent=1 // pred_check
      _
    $region27: #{spatial_prior_module_forward.11} parent=1 // pred_check_branch
      %210 = sbr.rel (0) target = $region29
    $region28: #{spatial_prior_module_forward.11} parent=1 // pred_region
      _
    $region29: #{spatial_prior_module_forward.11} parent=1 // pred_fallthru
      _
    // Predicated region
    $region30: #{spatial_prior_module_forward.11} parent=1 // pred_check
      _
    $region31: #{spatial_prior_module_forward.11} parent=1 // pred_check_branch
      %212 = sbr.rel (0) target = $region33
    $region32: #{spatial_prior_module_forward.11} parent=1 // pred_region
      %s214 = ssub.s32 128, 128
      %215 = vsyncadd [#allocation3], %s214
      %s217 = sshll.u32 [#allocation2], 4
      %s218 = int_to_ptr.vmem [resolvable:$true] %s217
      %220 = dma.vmem_to_hbm [thread:$0]  %s218, 128, %s7, [#allocation3]
    $region33: #{spatial_prior_module_forward.11} parent=1 // pred_fallthru
      _
    // Predicated region
    $region34: #{spatial_prior_module_forward.11} parent=1 // pred_check
      _
    $region35: #{spatial_prior_module_forward.11} parent=1 // pred_check_branch
      %222 = sbr.rel (0) target = $region37
    $region36: #{spatial_prior_module_forward.11} parent=1 // pred_region
      _
    $region37: #{spatial_prior_module_forward.11} parent=1 // pred_fallthru
      _
    // Predicated region
    $region38: #{spatial_prior_module_forward.11} parent=1 // pred_check
      _
    $region39: #{spatial_prior_module_forward.11} parent=1 // pred_check_branch
      %224 = sbr.rel (0) target = $region41
    $region40: #{spatial_prior_module_forward.11} parent=1 // pred_region
      %225 = dma.done [#allocation3], 128
    $region41: #{spatial_prior_module_forward.11} parent=1 // pred_fallthru
      _
    %226 = vsyncpa [#allocation3], 1

// kernel: spatial_prior_module_forward.12
$region0: #{spatial_prior_module_forward.12}
  #allocation0 [shape = 'u32[]', space=smem, size = 0x4, offset = 0x4, fixed_abs, tag = 'smem constant byte address 0x4 - core index']
  #allocation1 [shape = 'u32[144,128]{1,0:T(1,128)}', space=vmem, size = 0x12000, scoped, tag = 'internal scratch']
  %s0 = inlined_call_operand.vmem [shape: bf16[8,144], index: 0, kind: input, shape index: {}]
  %s1 = inlined_call_operand.vmem [shape: bf16[144,32], index: 1, kind: input, shape index: {}]
  %s2 = inlined_call_operand.vmem [shape: f32[1,32], index: 2, kind: input, shape index: {}]
  %s3 = inlined_call_operand.vmem [shape: f32[1,32], index: 3, kind: input, shape index: {}]
  %s4 = inlined_call_operand.vmem [shape: bf16[32,32], index: 4, kind: input, shape index: {}]
  %s5 = inlined_call_operand.vmem [shape: f32[1,32], index: 5, kind: input, shape index: {}]
  %s6 = inlined_call_operand.vmem [shape: bf16[8,32], index: 6, kind: output, shape index: {0}]
  %s7 = inlined_call_operand.vmem [shape: f32[8,32], index: 7, kind: output, shape index: {1}]
  %8 = xla_tuple %s6, %s7
  %s9 = sld [smem:[#allocation0]]
  $region42: #{spatial_prior_module_forward.12} parent=0
    _
  %s11 = ssub.s32 1, %s9
  %s12 = scalar_select 0, %s11, %s9
  // Predicated region
  $region2: #{spatial_prior_module_forward.12} parent=0 // pred_check
    _
  $region3: #{spatial_prior_module_forward.12} parent=0 // pred_check_branch
    %14 = sbr.rel (0) target = $region5
  $region4: #{spatial_prior_module_forward.12} parent=0 // pred_region
    _
  $region5: #{spatial_prior_module_forward.12} parent=0 // pred_fallthru
    _
  // Predicated region
  $region6: #{spatial_prior_module_forward.12} parent=0 // pred_check
    _
  $region7: #{spatial_prior_module_forward.12} parent=0 // pred_check_branch
    %16 = sbr.rel (0) target = $region9
  $region8: #{spatial_prior_module_forward.12} parent=0 // pred_region
    _
  $region9: #{spatial_prior_module_forward.12} parent=0 // pred_fallthru
    _
  // Predicated region
  $region10: #{spatial_prior_module_forward.12} parent=0 // pred_check
    _
  $region11: #{spatial_prior_module_forward.12} parent=0 // pred_check_branch
    %18 = sbr.rel (0) target = $region13
  $region12: #{spatial_prior_module_forward.12} parent=0 // pred_region
    _
  $region13: #{spatial_prior_module_forward.12} parent=0 // pred_fallthru
    _
  // Predicated region
  $region14: #{spatial_prior_module_forward.12} parent=0 // pred_check
    _
  $region15: #{spatial_prior_module_forward.12} parent=0 // pred_check_branch
    %20 = sbr.rel (0) target = $region17
  $region16: #{spatial_prior_module_forward.12} parent=0 // pred_region
    _
  $region17: #{spatial_prior_module_forward.12} parent=0 // pred_fallthru
    _
  // Predicated region
  $region18: #{spatial_prior_module_forward.12} parent=0 // pred_check
    _
  $region19: #{spatial_prior_module_forward.12} parent=0 // pred_check_branch
    %22 = sbr.rel (0) target = $region21
  $region20: #{spatial_prior_module_forward.12} parent=0 // pred_region
    _
  $region21: #{spatial_prior_module_forward.12} parent=0 // pred_fallthru
    _
  // Predicated region
  $region22: #{spatial_prior_module_forward.12} parent=0 // pred_check
    _
  $region23: #{spatial_prior_module_forward.12} parent=0 // pred_check_branch
    %24 = sbr.rel (0) target = $region25
  $region24: #{spatial_prior_module_forward.12} parent=0 // pred_region
    _
  $region25: #{spatial_prior_module_forward.12} parent=0 // pred_fallthru
    _
  %v26 = vld [vmem:[%s0] sm:$0xff]
  %v27 = vld [vmem:[%s1] sm:$0xf]
  %v28 = vld [vmem:[%s1 + $0x4] sm:$0xf]
  %v29 = vld [vmem:[%s1 + $0x8] sm:$0xf]
  %v30 = vld [vmem:[%s1 + $0xc] sm:$0xf]
  %v31 = vld [vmem:[%s1 + $0x10] sm:$0xf]
  %v32 = vld [vmem:[%s1 + $0x14] sm:$0xf]
  %v33 = vld [vmem:[%s1 + $0x18] sm:$0xf]
  %v34 = vld [vmem:[%s1 + $0x1c] sm:$0xf]
  %v35 = vld [vmem:[%s1 + $0x20] sm:$0xf]
  %v36 = vld [vmem:[%s1 + $0x24] sm:$0xf]
  %v37 = vld [vmem:[%s1 + $0x28] sm:$0xf]
  %v38 = vld [vmem:[%s1 + $0x2c] sm:$0xf]
  %v39 = vld [vmem:[%s1 + $0x30] sm:$0xf]
  %v40 = vld [vmem:[%s1 + $0x34] sm:$0xf]
  %v41 = vld [vmem:[%s1 + $0x38] sm:$0xf]
  %v42 = vld [vmem:[%s1 + $0x3c] sm:$0xf]
  %v43 = vld [vmem:[%s1 + $0x40] sm:$0xf]
  %v44 = vld [vmem:[%s1 + $0x44] sm:$0xf]
  %v46 = vunpack.c.l.b16 %v26
  %v47 = vunpack.c.h.b16 %v26
  %v48 = vpack.c.b16 %v46, %v46
  %v49 = vpack.c.b16 %v47, %v47
  %v69 = vunpack.c.l.b16 %v27
  %v70 = vunpack.c.l.b16 %v28
  %v71 = vunpack.c.l.b16 %v29
  %v72 = vunpack.c.l.b16 %v30
  %v73 = vunpack.c.l.b16 %v31
  %v74 = vunpack.c.l.b16 %v32
  %v75 = vunpack.c.l.b16 %v33
  %v76 = vunpack.c.l.b16 %v34
  %v77 = vunpack.c.l.b16 %v35
  %v78 = vunpack.c.l.b16 %v36
  %v79 = vunpack.c.l.b16 %v37
  %v80 = vunpack.c.l.b16 %v38
  %v81 = vunpack.c.l.b16 %v39
  %v82 = vunpack.c.l.b16 %v40
  %v83 = vunpack.c.l.b16 %v41
  %v84 = vunpack.c.l.b16 %v42
  %v85 = vunpack.c.l.b16 %v43
  %v86 = vunpack.c.l.b16 %v44
  %v87 = vpack.c.b16 %v70, %v69
  %v88 = vpack.c.b16 %v72, %v71
  %v89 = vpack.c.b16 %v74, %v73
  %v90 = vpack.c.b16 %v76, %v75
  %v91 = vpack.c.b16 %v78, %v77
  %v92 = vpack.c.b16 %v80, %v79
  %v93 = vpack.c.b16 %v82, %v81
  %v94 = vpack.c.b16 %v84, %v83
  %v95 = vpack.c.b16 %v86, %v85
  %vm105 = vcmask 130048
  %v107 = vsel %vm105, %v49, 0
  %109 = vmatprep.subr.bf16.mxu0 0
  %110 = vmatpush1.bf16.msra.mxu0 %v87
  %111 = vmatprep.subr.bf16.mxu0 0
  %112 = vmatpush1.bf16.msra.mxu0 %v88
  %113 = vmatprep.subr.bf16.mxu0 0
  %114 = vmatpush1.bf16.msra.mxu0 %v89
  %115 = vmatprep.subr.bf16.mxu0 0
  %116 = vmatpush1.bf16.msra.mxu0 %v90
  %117 = vmatprep.subr.bf16.mxu0 0
  %118 = vmatpush1.bf16.msra.mxu0 %v91
  %119 = vmatprep.subr.bf16.mxu0 0
  %120 = vmatpush1.bf16.msra.mxu0 %v92
  %121 = vmatprep.subr.bf16.mxu0 0
  %122 = vmatpush1.bf16.msra.mxu0 %v93
  %123 = vmatprep.subr.bf16.mxu0 0
  %124 = vmatpush1.bf16.msra.mxu0 %v94
  %125 = vmatprep.subr.bf16.mxu0 0
  %126 = vmatpush1.bf16.msra.mxu0 %v95
  %127 = vmatprep.subr.bf16.mxu0 0
  %128 = vmatpush1.bf16.msra.mxu0 0
  %129 = vmatprep.subr.bf16.mxu0 0
  %130 = vmatpush1.bf16.msra.mxu0 0
  %131 = vmatprep.subr.bf16.mxu0 0
  %132 = vmatpush1.bf16.msra.mxu0 0
  %133 = vmatprep.subr.bf16.mxu0 0
  %134 = vmatpush1.bf16.msra.mxu0 0
  %135 = vmatprep.subr.bf16.mxu0 0
  %136 = vmatpush1.bf16.msra.mxu0 0
  %137 = vmatprep.subr.bf16.mxu0 0
  %138 = vmatpush1.bf16.msra.mxu0 0
  %139 = vmatprep.subr.bf16.mxu0 0
  %140 = vmatpush1.bf16.msra.mxu0 0
  %141 = vmatprep.mubr.bf16.mxu0 %v107
  %142 = vmatmul.mubr.bf16.gmra.mrb[0].mxu0 %v48
  %v143 = vpop.f32.mrb[0].mxu0
  %v144 = vadd.f32 0.0, %v143
  %v145 = vpop.f32.mrb[0].mxu0
  %v146 = vpop.f32.mrb[0].mxu0
  %v147 = vpop.f32.mrb[0].mxu0
  %148 = vdwg.mxu0
  %v149 = vld [vmem:[%s2] sm:$0x1]
  %v150 = vld [vmem:[%s3] sm:$0x1]
  %vm151 = vcmask 261120
  %v152 = vsel %vm151, %v144, 0.0
  %153 = vadd.xlane.f32.xlu0 %v152
  %v154 = vpop.xlane.xlu0 %153
  %v155 = vmul.f32 %v144, %v144
  %v156 = vsel %vm151, %v155, 0.0
  %157 = vadd.xlane.f32.xlu0 %v156
  %v158 = vpop.xlane.xlu0 %157
  %v159 = vmul.f32 %v154, 0.03125
  %v160 = vmul.f32 %v158, 0.03125
  %v161 = vmul.f32 %v159, %v159
  %v162 = vsub.f32 %v160, %v161
  %v163 = vmax.f32 %v162, 0.0
  %v164 = vsub.f32 %v144, %v159
  %v165 = vadd.f32 %v163, 1e-06
  %v166 = vrsqrt.pop %v165
  %v167 = vmul.f32 %v164, %v166
  %v169 = vlaneseq
  %v170 = vshrl.u32 %v169, 7
  %v171 = vsub.s32 0, %v170
  %v172 = vrot.slane %v149, %v171
  %v174 = vmul.f32 %v167, %v172
  %v176 = vlaneseq
  %v177 = vshrl.u32 %v176, 7
  %v178 = vsub.s32 0, %v177
  %v179 = vrot.slane %v150, %v178
  %v181 = vadd.f32 %v174, %v179
  %v182 = vmax.f32 %v181, 0.0
  %v183 = vpack.c.bf16 %v182, %v182
  %vm184 = vcmask 257024
  %185 = vst.msk [vmem:[%s6] sm:$0xf] %vm184, %v183
  %v186 = vld [vmem:[%s4] sm:$0xf]
  %v187 = vld [vmem:[%s4 + $0x4] sm:$0xf]
  %v188 = vld [vmem:[%s4 + $0x8] sm:$0xf]
  %v189 = vld [vmem:[%s4 + $0xc] sm:$0xf]
  %v190 = vld [vmem:[%s5] sm:$0x1]
  %v192 = vlaneseq
  %v193 = vshrl.u32 %v192, 7
  %v194 = vsub.s32 0, %v193
  %v195 = vrot.slane %v190, %v194
  %v201 = vunpack.c.l.b16 %v186
  %v202 = vunpack.c.l.b16 %v187
  %v203 = vunpack.c.l.b16 %v188
  %v204 = vunpack.c.l.b16 %v189
  %v205 = vpack.c.b16 %v202, %v201
  %v206 = vpack.c.b16 %v204, %v203
  %v210 = vsel %vm151, %v183, 0
  %212 = vmatprep.subr.bf16.mxu0 0
  %213 = vmatpush1.bf16.msra.mxu0 %v205
  %214 = vmatprep.subr.bf16.mxu0 0
  %215 = vmatpush1.bf16.msra.mxu0 %v206
  %216 = vmatprep.subr.bf16.mxu0 0
  %217 = vmatpush1.bf16.msra.mxu0 0
  %218 = vmatprep.subr.bf16.mxu0 0
  %219 = vmatpush1.bf16.msra.mxu0 0
  %220 = vmatprep.subr.bf16.mxu0 0
  %221 = vmatpush1.bf16.msra.mxu0 0
  %222 = vmatprep.subr.bf16.mxu0 0
  %223 = vmatpush1.bf16.msra.mxu0 0
  %224 = vmatprep.subr.bf16.mxu0 0
  %225 = vmatpush1.bf16.msra.mxu0 0
  %226 = vmatprep.subr.bf16.mxu0 0
  %227 = vmatpush1.bf16.msra.mxu0 0
  %228 = vmatprep.subr.bf16.mxu0 0
  %229 = vmatpush1.bf16.msra.mxu0 0
  %230 = vmatprep.subr.bf16.mxu0 0
  %231 = vmatpush1.bf16.msra.mxu0 0
  %232 = vmatprep.subr.bf16.mxu0 0
  %233 = vmatpush1.bf16.msra.mxu0 0
  %234 = vmatprep.subr.bf16.mxu0 0
  %235 = vmatpush1.bf16.msra.mxu0 0
  %236 = vmatprep.subr.bf16.mxu0 0
  %237 = vmatpush1.bf16.msra.mxu0 0
  %238 = vmatprep.subr.bf16.mxu0 0
  %239 = vmatpush1.bf16.msra.mxu0 0
  %240 = vmatprep.subr.bf16.mxu0 0
  %241 = vmatpush1.bf16.msra.mxu0 0
  %242 = vmatprep.subr.bf16.mxu0 0
  %243 = vmatpush1.bf16.msra.mxu0 0
  %244 = vmatprep.mubr.bf16.mxu0 0
  %245 = vmatmul.mubr.bf16.gmra.mrb[0].mxu0 %v210
  %v246 = vpop.f32.mrb[0].mxu0
  %v247 = vadd.f32 %v195, %v246
  %v248 = vpop.f32.mrb[0].mxu0
  %v249 = vpop.f32.mrb[0].mxu0
  %v250 = vpop.f32.mrb[0].mxu0
  %251 = vdwg.mxu0
  %252 = vst.msk [vmem:[%s7] sm:$0xff] %vm151, %v247
  // Predicated region
  $region26: #{spatial_prior_module_forward.12} parent=0 // pred_check
    _
  $region27: #{spatial_prior_module_forward.12} parent=0 // pred_check_branch
    %254 = sbr.rel (0) target = $region29
  $region28: #{spatial_prior_module_forward.12} parent=0 // pred_region
    _
  $region29: #{spatial_prior_module_forward.12} parent=0 // pred_fallthru
    _
  // Predicated region
  $region30: #{spatial_prior_module_forward.12} parent=0 // pred_check
    _
  $region31: #{spatial_prior_module_forward.12} parent=0 // pred_check_branch
    %256 = sbr.rel (0) target = $region33
  $region32: #{spatial_prior_module_forward.12} parent=0 // pred_region
    _
  $region33: #{spatial_prior_module_forward.12} parent=0 // pred_fallthru
    _
  // Predicated region
  $region34: #{spatial_prior_module_forward.12} parent=0 // pred_check
    _
  $region35: #{spatial_prior_module_forward.12} parent=0 // pred_check_branch
    %258 = sbr.rel (0) target = $region37
  $region36: #{spatial_prior_module_forward.12} parent=0 // pred_region
    _
  $region37: #{spatial_prior_module_forward.12} parent=0 // pred_fallthru
    _
  // Predicated region
  $region38: #{spatial_prior_module_forward.12} parent=0 // pred_check
    _
  $region39: #{spatial_prior_module_forward.12} parent=0 // pred_check_branch
    %260 = sbr.rel (0) target = $region41
  $region40: #{spatial_prior_module_forward.12} parent=0 // pred_region
    _
  $region41: #{spatial_prior_module_forward.12} parent=0 // pred_fallthru
    _

// kernel: spatial_prior_module_forward.13
$region0: #{spatial_prior_module_forward.13}
  #allocation0 [shape = 'u32[]', space=smem, size = 0x4, offset = 0x4, fixed_abs, tag = 'smem constant byte address 0x4 - core index']
  #allocation1 [shape = 'u32[144,128]{1,0:T(1,128)}', space=vmem, size = 0x12000, scoped, tag = 'internal scratch']
  %s0 = inlined_call_operand.vmem [shape: bf16[8,288], index: 0, kind: input, shape index: {}]
  %s1 = inlined_call_operand.vmem [shape: bf16[288,32], index: 1, kind: input, shape index: {}]
  %s2 = inlined_call_operand.vmem [shape: f32[1,32], index: 2, kind: input, shape index: {}]
  %s3 = inlined_call_operand.vmem [shape: f32[1,32], index: 3, kind: input, shape index: {}]
  %s4 = inlined_call_operand.vmem [shape: bf16[32,32], index: 4, kind: input, shape index: {}]
  %s5 = inlined_call_operand.vmem [shape: f32[1,32], index: 5, kind: input, shape index: {}]
  %s6 = inlined_call_operand.vmem [shape: f32[8,32], index: 6, kind: output, shape index: {}]
  %s7 = sld [smem:[#allocation0]]
  $region34: #{spatial_prior_module_forward.13} parent=0
    _
  %s9 = ssub.s32 1, %s7
  %s10 = scalar_select 0, %s9, %s7
  // Predicated region
  $region2: #{spatial_prior_module_forward.13} parent=0 // pred_check
    _
  $region3: #{spatial_prior_module_forward.13} parent=0 // pred_check_branch
    %12 = sbr.rel (0) target = $region5
  $region4: #{spatial_prior_module_forward.13} parent=0 // pred_region
    _
  $region5: #{spatial_prior_module_forward.13} parent=0 // pred_fallthru
    _
  // Predicated region
  $region6: #{spatial_prior_module_forward.13} parent=0 // pred_check
    _
  $region7: #{spatial_prior_module_forward.13} parent=0 // pred_check_branch
    %14 = sbr.rel (0) target = $region9
  $region8: #{spatial_prior_module_forward.13} parent=0 // pred_region
    _
  $region9: #{spatial_prior_module_forward.13} parent=0 // pred_fallthru
    _
  // Predicated region
  $region10: #{spatial_prior_module_forward.13} parent=0 // pred_check
    _
  $region11: #{spatial_prior_module_forward.13} parent=0 // pred_check_branch
    %16 = sbr.rel (0) target = $region13
  $region12: #{spatial_prior_module_forward.13} parent=0 // pred_region
    _
  $region13: #{spatial_prior_module_forward.13} parent=0 // pred_fallthru
    _
  // Predicated region
  $region14: #{spatial_prior_module_forward.13} parent=0 // pred_check
    _
  $region15: #{spatial_prior_module_forward.13} parent=0 // pred_check_branch
    %18 = sbr.rel (0) target = $region17
  $region16: #{spatial_prior_module_forward.13} parent=0 // pred_region
    _
  $region17: #{spatial_prior_module_forward.13} parent=0 // pred_fallthru
    _
  // Predicated region
  $region18: #{spatial_prior_module_forward.13} parent=0 // pred_check
    _
  $region19: #{spatial_prior_module_forward.13} parent=0 // pred_check_branch
    %20 = sbr.rel (0) target = $region21
  $region20: #{spatial_prior_module_forward.13} parent=0 // pred_region
    _
  $region21: #{spatial_prior_module_forward.13} parent=0 // pred_fallthru
    _
  // Predicated region
  $region22: #{spatial_prior_module_forward.13} parent=0 // pred_check
    _
  $region23: #{spatial_prior_module_forward.13} parent=0 // pred_check_branch
    %22 = sbr.rel (0) target = $region25
  $region24: #{spatial_prior_module_forward.13} parent=0 // pred_region
    _
  $region25: #{spatial_prior_module_forward.13} parent=0 // pred_fallthru
    _
  %v24 = vld [vmem:[%s0] sm:$0xff]
  %v25 = vld [vmem:[%s0 + $0x8] sm:$0xf]
  %v26 = vld [vmem:[%s1] sm:$0xf]
  %v27 = vld [vmem:[%s1 + $0x4] sm:$0xf]
  %v28 = vld [vmem:[%s1 + $0x8] sm:$0xf]
  %v29 = vld [vmem:[%s1 + $0xc] sm:$0xf]
  %v30 = vld [vmem:[%s1 + $0x10] sm:$0xf]
  %v31 = vld [vmem:[%s1 + $0x14] sm:$0xf]
  %v32 = vld [vmem:[%s1 + $0x18] sm:$0xf]
  %v33 = vld [vmem:[%s1 + $0x1c] sm:$0xf]
  %v34 = vld [vmem:[%s1 + $0x20] sm:$0xf]
  %v35 = vld [vmem:[%s1 + $0x24] sm:$0xf]
  %v36 = vld [vmem:[%s1 + $0x28] sm:$0xf]
  %v37 = vld [vmem:[%s1 + $0x2c] sm:$0xf]
  %v38 = vld [vmem:[%s1 + $0x30] sm:$0xf]
  %v39 = vld [vmem:[%s1 + $0x34] sm:$0xf]
  %v40 = vld [vmem:[%s1 + $0x38] sm:$0xf]
  %v41 = vld [vmem:[%s1 + $0x3c] sm:$0xf]
  %v42 = vld [vmem:[%s1 + $0x40] sm:$0xf]
  %v43 = vld [vmem:[%s1 + $0x44] sm:$0xf]
  %v44 = vld [vmem:[%s1 + $0x48] sm:$0xf]
  %v45 = vld [vmem:[%s1 + $0x4c] sm:$0xf]
  %v46 = vld [vmem:[%s1 + $0x50] sm:$0xf]
  %v47 = vld [vmem:[%s1 + $0x54] sm:$0xf]
  %v48 = vld [vmem:[%s1 + $0x58] sm:$0xf]
  %v49 = vld [vmem:[%s1 + $0x5c] sm:$0xf]
  %v50 = vld [vmem:[%s1 + $0x60] sm:$0xf]
  %v51 = vld [vmem:[%s1 + $0x64] sm:$0xf]
  %v52 = vld [vmem:[%s1 + $0x68] sm:$0xf]
  %v53 = vld [vmem:[%s1 + $0x6c] sm:$0xf]
  %v54 = vld [vmem:[%s1 + $0x70] sm:$0xf]
  %v55 = vld [vmem:[%s1 + $0x74] sm:$0xf]
  %v56 = vld [vmem:[%s1 + $0x78] sm:$0xf]
  %v57 = vld [vmem:[%s1 + $0x7c] sm:$0xf]
  %v58 = vld [vmem:[%s1 + $0x80] sm:$0xf]
  %v59 = vld [vmem:[%s1 + $0x84] sm:$0xf]
  %v60 = vld [vmem:[%s1 + $0x88] sm:$0xf]
  %v61 = vld [vmem:[%s1 + $0x8c] sm:$0xf]
  %v64 = vunpack.c.l.b16 %v24
  %v65 = vunpack.c.h.b16 %v24
  %v66 = vunpack.c.l.b16 %v25
  %v67 = vpack.c.b16 %v64, %v64
  %v68 = vpack.c.b16 %v65, %v65
  %v69 = vpack.c.b16 %v66, %v66
  %v108 = vunpack.c.l.b16 %v26
  %v109 = vunpack.c.l.b16 %v27
  %v110 = vunpack.c.l.b16 %v28
  %v111 = vunpack.c.l.b16 %v29
  %v112 = vunpack.c.l.b16 %v30
  %v113 = vunpack.c.l.b16 %v31
  %v114 = vunpack.c.l.b16 %v32
  %v115 = vunpack.c.l.b16 %v33
  %v116 = vunpack.c.l.b16 %v34
  %v117 = vunpack.c.l.b16 %v35
  %v118 = vunpack.c.l.b16 %v36
  %v119 = vunpack.c.l.b16 %v37
  %v120 = vunpack.c.l.b16 %v38
  %v121 = vunpack.c.l.b16 %v39
  %v122 = vunpack.c.l.b16 %v40
  %v123 = vunpack.c.l.b16 %v41
  %v124 = vunpack.c.l.b16 %v42
  %v125 = vunpack.c.l.b16 %v43
  %v126 = vunpack.c.l.b16 %v44
  %v127 = vunpack.c.l.b16 %v45
  %v128 = vunpack.c.l.b16 %v46
  %v129 = vunpack.c.l.b16 %v47
  %v130 = vunpack.c.l.b16 %v48
  %v131 = vunpack.c.l.b16 %v49
  %v132 = vunpack.c.l.b16 %v50
  %v133 = vunpack.c.l.b16 %v51
  %v134 = vunpack.c.l.b16 %v52
  %v135 = vunpack.c.l.b16 %v53
  %v136 = vunpack.c.l.b16 %v54
  %v137 = vunpack.c.l.b16 %v55
  %v138 = vunpack.c.l.b16 %v56
  %v139 = vunpack.c.l.b16 %v57
  %v140 = vunpack.c.l.b16 %v58
  %v141 = vunpack.c.l.b16 %v59
  %v142 = vunpack.c.l.b16 %v60
  %v143 = vunpack.c.l.b16 %v61
  %v144 = vpack.c.b16 %v109, %v108
  %v145 = vpack.c.b16 %v111, %v110
  %v146 = vpack.c.b16 %v113, %v112
  %v147 = vpack.c.b16 %v115, %v114
  %v148 = vpack.c.b16 %v117, %v116
  %v149 = vpack.c.b16 %v119, %v118
  %v150 = vpack.c.b16 %v121, %v120
  %v151 = vpack.c.b16 %v123, %v122
  %v152 = vpack.c.b16 %v125, %v124
  %v153 = vpack.c.b16 %v127, %v126
  %v154 = vpack.c.b16 %v129, %v128
  %v155 = vpack.c.b16 %v131, %v130
  %v156 = vpack.c.b16 %v133, %v132
  %v157 = vpack.c.b16 %v135, %v134
  %v158 = vpack.c.b16 %v137, %v136
  %v159 = vpack.c.b16 %v139, %v138
  %v160 = vpack.c.b16 %v141, %v140
  %v161 = vpack.c.b16 %v143, %v142
  %vm180 = vcmask 261120
  %v182 = vsel %vm180, %v69, 0
  %184 = vmatprep.subr.bf16.mxu0 0
  %185 = vmatpush1.bf16.msra.mxu0 %v144
  %186 = vmatprep.subr.bf16.mxu0 0
  %187 = vmatpush1.bf16.msra.mxu0 %v145
  %188 = vmatprep.subr.bf16.mxu0 0
  %189 = vmatpush1.bf16.msra.mxu0 %v146
  %190 = vmatprep.subr.bf16.mxu0 0
  %191 = vmatpush1.bf16.msra.mxu0 %v147
  %192 = vmatprep.subr.bf16.mxu0 0
  %193 = vmatpush1.bf16.msra.mxu0 %v148
  %194 = vmatprep.subr.bf16.mxu0 0
  %195 = vmatpush1.bf16.msra.mxu0 %v149
  %196 = vmatprep.subr.bf16.mxu0 0
  %197 = vmatpush1.bf16.msra.mxu0 %v150
  %198 = vmatprep.subr.bf16.mxu0 0
  %199 = vmatpush1.bf16.msra.mxu0 %v151
  %200 = vmatprep.subr.bf16.mxu0 0
  %201 = vmatpush1.bf16.msra.mxu0 %v152
  %202 = vmatprep.subr.bf16.mxu0 0
  %203 = vmatpush1.bf16.msra.mxu0 %v153
  %204 = vmatprep.subr.bf16.mxu0 0
  %205 = vmatpush1.bf16.msra.mxu0 %v154
  %206 = vmatprep.subr.bf16.mxu0 0
  %207 = vmatpush1.bf16.msra.mxu0 %v155
  %208 = vmatprep.subr.bf16.mxu0 0
  %209 = vmatpush1.bf16.msra.mxu0 %v156
  %210 = vmatprep.subr.bf16.mxu0 0
  %211 = vmatpush1.bf16.msra.mxu0 %v157
  %212 = vmatprep.subr.bf16.mxu0 0
  %213 = vmatpush1.bf16.msra.mxu0 %v158
  %214 = vmatprep.subr.bf16.mxu0 0
  %215 = vmatpush1.bf16.msra.mxu0 %v159
  %216 = vmatprep.mubr.bf16.mxu0 %v68
  %217 = vmatmul.mubr.bf16.gmra.mrb[0].mxu0 %v67
  %v218 = vpop.f32.mrb[0].mxu0
  %v219 = vadd.f32 0.0, %v218
  %v220 = vpop.f32.mrb[0].mxu0
  %v221 = vpop.f32.mrb[0].mxu0
  %v222 = vpop.f32.mrb[0].mxu0
  %223 = vdwg.mxu0
  %224 = vmatprep.subr.bf16.mxu0 0
  %225 = vmatpush1.bf16.msra.mxu0 %v160
  %226 = vmatprep.subr.bf16.mxu0 0
  %227 = vmatpush1.bf16.msra.mxu0 %v161
  %228 = vmatprep.subr.bf16.mxu0 0
  %229 = vmatpush1.bf16.msra.mxu0 0
  %230 = vmatprep.subr.bf16.mxu0 0
  %231 = vmatpush1.bf16.msra.mxu0 0
  %232 = vmatprep.subr.bf16.mxu0 0
  %233 = vmatpush1.bf16.msra.mxu0 0
  %234 = vmatprep.subr.bf16.mxu0 0
  %235 = vmatpush1.bf16.msra.mxu0 0
  %236 = vmatprep.subr.bf16.mxu0 0
  %237 = vmatpush1.bf16.msra.mxu0 0
  %238 = vmatprep.subr.bf16.mxu0 0
  %239 = vmatpush1.bf16.msra.mxu0 0
  %240 = vmatprep.subr.bf16.mxu0 0
  %241 = vmatpush1.bf16.msra.mxu0 0
  %242 = vmatprep.subr.bf16.mxu0 0
  %243 = vmatpush1.bf16.msra.mxu0 0
  %244 = vmatprep.subr.bf16.mxu0 0
  %245 = vmatpush1.bf16.msra.mxu0 0
  %246 = vmatprep.subr.bf16.mxu0 0
  %247 = vmatpush1.bf16.msra.mxu0 0
  %248 = vmatprep.subr.bf16.mxu0 0
  %249 = vmatpush1.bf16.msra.mxu0 0
  %250 = vmatprep.subr.bf16.mxu0 0
  %251 = vmatpush1.bf16.msra.mxu0 0
  %252 = vmatprep.subr.bf16.mxu0 0
  %253 = vmatpush1.bf16.msra.mxu0 0
  %254 = vmatprep.subr.bf16.mxu0 0
  %255 = vmatpush1.bf16.msra.mxu0 0
  %256 = vmatprep.mubr.bf16.mxu0 0
  %257 = vmatmul.mubr.bf16.gmra.mrb[0].mxu0 %v182
  %v258 = vpop.f32.mrb[0].mxu0
  %v259 = vadd.f32 %v219, %v258
  %v260 = vpop.f32.mrb[0].mxu0
  %v261 = vpop.f32.mrb[0].mxu0
  %v262 = vpop.f32.mrb[0].mxu0
  %263 = vdwg.mxu0
  %v264 = vld [vmem:[%s2] sm:$0x1]
  %v265 = vld [vmem:[%s3] sm:$0x1]
  %v266 = vsel %vm180, %v259, 0.0
  %267 = vadd.xlane.f32.xlu0 %v266
  %v268 = vpop.xlane.xlu0 %267
  %v269 = vmul.f32 %v259, %v259
  %v270 = vsel %vm180, %v269, 0.0
  %271 = vadd.xlane.f32.xlu0 %v270
  %v272 = vpop.xlane.xlu0 %271
  %v273 = vmul.f32 %v268, 0.03125
  %v274 = vmul.f32 %v272, 0.03125
  %v275 = vmul.f32 %v273, %v273
  %v276 = vsub.f32 %v274, %v275
  %v277 = vmax.f32 %v276, 0.0
  %v278 = vsub.f32 %v259, %v273
  %v279 = vadd.f32 %v277, 1e-06
  %v280 = vrsqrt.pop %v279
  %v281 = vmul.f32 %v278, %v280
  %v283 = vlaneseq
  %v284 = vshrl.u32 %v283, 7
  %v285 = vsub.s32 0, %v284
  %v286 = vrot.slane %v264, %v285
  %v288 = vmul.f32 %v281, %v286
  %v290 = vlaneseq
  %v291 = vshrl.u32 %v290, 7
  %v292 = vsub.s32 0, %v291
  %v293 = vrot.slane %v265, %v292
  %v295 = vadd.f32 %v288, %v293
  %v296 = vmax.f32 %v295, 0.0
  %v297 = vpack.c.bf16 %v296, %v296
  %v298 = vld [vmem:[%s4] sm:$0xf]
  %v299 = vld [vmem:[%s4 + $0x4] sm:$0xf]
  %v300 = vld [vmem:[%s4 + $0x8] sm:$0xf]
  %v301 = vld [vmem:[%s4 + $0xc] sm:$0xf]
  %v302 = vld [vmem:[%s5] sm:$0x1]
  %v304 = vlaneseq
  %v305 = vshrl.u32 %v304, 7
  %v306 = vsub.s32 0, %v305
  %v307 = vrot.slane %v302, %v306
  %v313 = vunpack.c.l.b16 %v298
  %v314 = vunpack.c.l.b16 %v299
  %v315 = vunpack.c.l.b16 %v300
  %v316 = vunpack.c.l.b16 %v301
  %v317 = vpack.c.b16 %v314, %v313
  %v318 = vpack.c.b16 %v316, %v315
  %v322 = vsel %vm180, %v297, 0
  %324 = vmatprep.subr.bf16.mxu0 0
  %325 = vmatpush1.bf16.msra.mxu0 %v317
  %326 = vmatprep.subr.bf16.mxu0 0
  %327 = vmatpush1.bf16.msra.mxu0 %v318
  %328 = vmatprep.subr.bf16.mxu0 0
  %329 = vmatpush1.bf16.msra.mxu0 0
  %330 = vmatprep.subr.bf16.mxu0 0
  %331 = vmatpush1.bf16.msra.mxu0 0
  %332 = vmatprep.subr.bf16.mxu0 0
  %333 = vmatpush1.bf16.msra.mxu0 0
  %334 = vmatprep.subr.bf16.mxu0 0
  %335 = vmatpush1.bf16.msra.mxu0 0
  %336 = vmatprep.subr.bf16.mxu0 0
  %337 = vmatpush1.bf16.msra.mxu0 0
  %338 = vmatprep.subr.bf16.mxu0 0
  %339 = vmatpush1.bf16.msra.mxu0 0
  %340 = vmatprep.subr.bf16.mxu0 0
  %341 = vmatpush1.bf16.msra.mxu0 0
  %342 = vmatprep.subr.bf16.mxu0 0
  %343 = vmatpush1.bf16.msra.mxu0 0
  %344 = vmatprep.subr.bf16.mxu0 0
  %345 = vmatpush1.bf16.msra.mxu0 0
  %346 = vmatprep.subr.bf16.mxu0 0
  %347 = vmatpush1.bf16.msra.mxu0 0
  %348 = vmatprep.subr.bf16.mxu0 0
  %349 = vmatpush1.bf16.msra.mxu0 0
  %350 = vmatprep.subr.bf16.mxu0 0
  %351 = vmatpush1.bf16.msra.mxu0 0
  %352 = vmatprep.subr.bf16.mxu0 0
  %353 = vmatpush1.bf16.msra.mxu0 0
  %354 = vmatprep.subr.bf16.mxu0 0
  %355 = vmatpush1.bf16.msra.mxu0 0
  %356 = vmatprep.mubr.bf16.mxu0 0
  %357 = vmatmul.mubr.bf16.gmra.mrb[0].mxu0 %v322
  %v358 = vpop.f32.mrb[0].mxu0
  %v359 = vadd.f32 %v307, %v358
  %v360 = vpop.f32.mrb[0].mxu0
  %v361 = vpop.f32.mrb[0].mxu0
  %v362 = vpop.f32.mrb[0].mxu0
  %363 = vdwg.mxu0
  %364 = vst.msk [vmem:[%s6] sm:$0xff] %vm180, %v359
  // Predicated region
  $region26: #{spatial_prior_module_forward.13} parent=0 // pred_check
    _
  $region27: #{spatial_prior_module_forward.13} parent=0 // pred_check_branch
    %366 = sbr.rel (0) target = $region29
  $region28: #{spatial_prior_module_forward.13} parent=0 // pred_region
    _
  $region29: #{spatial_prior_module_forward.13} parent=0 // pred_fallthru
    _
  // Predicated region
  $region30: #{spatial_prior_module_forward.13} parent=0 // pred_check
    _
  $region31: #{spatial_prior_module_forward.13} parent=0 // pred_check_branch
    %368 = sbr.rel (0) target = $region33
  $region32: #{spatial_prior_module_forward.13} parent=0 // pred_region
    _
  $region33: #{spatial_prior_module_forward.13} parent=0 // pred_fallthru
    _

</llo_original>
